<compile_context>
chip_gen: v5e
topology: v5e:2x2
jax: 0.10.0
libtpu: 0.0.40
codegen_flags: <defaults>
</compile_context>

<pallas_src>
import math
import jax
import jax.numpy as jnp
from jax.experimental import pallas as pl
from jax.experimental.pallas import tpu as pltpu

D_MODEL = 512
N_HEAD = 4
HEAD_DIM = D_MODEL // N_HEAD
LN_EPS = 1e-5


# --------------------------------------------------------------------------------------
# Pallas kernel: QstQueryClipAttn for a block of GB samples.
#   q_ref : (GB, C)      bf16   question query (one token per sample)
#   v_ref : (GB, T, C)   bf16   visual clip tokens (keys/values)
#   w_ref : (C, 6C)      bf16   [Wq*scale | Wk | Wv | Wo | Wl1 | Wl2]
#   b_ref : (1, 8C)      f32    [bq*scale | bk | bv | bo | bl1 | bl2 | ln_g | ln_b]
# outputs:
#   attn_ref : (GB, C)   f32    temp_clip_attn_feat (post FFN + residual + LayerNorm)
#   tw_ref   : (GB, T)   f32    head-averaged attention weights
# --------------------------------------------------------------------------------------
def _tp_kernel(q_ref, v_ref, w_ref, b_ref, attn_ref, tw_ref):
    C = D_MODEL
    GB, T, _ = v_ref.shape

    # ---- Q / K / V projections as wide bf16 GEMMs (f32 accumulation) ----------------
    q2 = jnp.dot(q_ref[...], w_ref[:, 0:C],
                 preferred_element_type=jnp.float32) + b_ref[:, 0:C]          # (GB, C)
    rows = v_ref[...].reshape(GB * T, C)                                       # (GB*T, C)
    kv = jnp.dot(rows, w_ref[:, C:3 * C],
                 preferred_element_type=jnp.float32) + b_ref[:, C:3 * C]       # (GB*T, 2C)
    k2 = kv[:, :C].reshape(GB, T, C)
    v2 = kv[:, C:].reshape(GB, T, C)

    # ---- per-head scores + softmax on VPU/XLU/EUP (M=1 matmuls would waste the MXU) --
    probs = []
    for h in range(N_HEAD):                    # static unroll; 128-lane-aligned slices
        lo = h * HEAD_DIM
        qh = q2[:, lo:lo + HEAD_DIM]                                   # (GB, 128)
        kh = k2[:, :, lo:lo + HEAD_DIM]                                # (GB, T, 128)
        sh = jnp.sum(kh * qh[:, None, :], axis=-1)                     # (GB, T) lane reduce
        sh = sh - jnp.max(sh, axis=-1, keepdims=True)
        eh = jnp.exp(sh)
        inv = pl.reciprocal(jnp.sum(eh, axis=-1, keepdims=True), approx=True)
        probs.append(eh * inv)                                         # (GB, T)

    # head-averaged attention weights (what SelectTopK consumes)
    tw_ref[...] = (probs[0] + probs[1] + probs[2] + probs[3]) * (1.0 / N_HEAD)

    # ---- weighted V per head (broadcast-multiply + sublane reduce), concat heads -----
    head_outs = []
    for h in range(N_HEAD):
        lo = h * HEAD_DIM
        vh = v2[:, :, lo:lo + HEAD_DIM]                                # (GB, T, 128)
        head_outs.append(jnp.sum(vh * probs[h][:, :, None], axis=1))   # (GB, 128)
    attn_cat = jnp.concatenate(head_outs, axis=-1)                     # (GB, C) f32

    # ---- out-projection + FFN + residual + LayerNorm (dropouts are identity) ---------
    attn_feat = jnp.dot(attn_cat.astype(jnp.bfloat16), w_ref[:, 3 * C:4 * C],
                        preferred_element_type=jnp.float32) + b_ref[:, 3 * C:4 * C]
    h1 = jnp.maximum(
        jnp.dot(attn_feat.astype(jnp.bfloat16), w_ref[:, 4 * C:5 * C],
                preferred_element_type=jnp.float32) + b_ref[:, 4 * C:5 * C], 0.0)
    src = jnp.dot(h1.astype(jnp.bfloat16), w_ref[:, 5 * C:6 * C],
                  preferred_element_type=jnp.float32) + b_ref[:, 5 * C:6 * C]

    y = attn_feat + src
    mu = jnp.mean(y, axis=-1, keepdims=True)
    yc = y - mu
    var = jnp.mean(yc * yc, axis=-1, keepdims=True)
    attn_ref[...] = (yc * jax.lax.rsqrt(var + LN_EPS)
                     * b_ref[:, 6 * C:7 * C] + b_ref[:, 7 * C:8 * C])


# --------------------------------------------------------------------------------------
# Host wrappers
# --------------------------------------------------------------------------------------
def _build_slabs(params):
    """Consolidate all parameters into one bf16 weight slab and one f32 bias slab;
    fold the 1/sqrt(head_dim) attention scale into Wq / bq."""
    scale = 1.0 / math.sqrt(HEAD_DIM)
    w_slab = jnp.concatenate(
        [params["w_q"] * scale, params["w_k"], params["w_v"],
         params["w_o"], params["w_l1"], params["w_l2"]], axis=1).astype(jnp.bfloat16)
    b_slab = jnp.concatenate(
        [params["b_q"] * scale, params["b_k"], params["b_v"],
         params["b_o"], params["b_l1"], params["b_l2"],
         params["ln_g"], params["ln_b"]], axis=1).astype(jnp.float32)
    return w_slab, b_slab          # (C, 6C) bf16 , (1, 8C) f32


def qst_query_clip_attn(params, qst_feat, visual_feat):
    """Pallas version of TemporalPerception.QstQueryClipAttn (eval mode).
    Returns (attn (B, C) f32, temp_weights (B, 1, T) f32)."""
    B, T, C = visual_feat.shape
    assert C == D_MODEL
    w_slab, b_slab = _build_slabs(params)

    # block of GB samples per grid step (all of B for small B; multiples of 8 otherwise
    # keep the (8,128) block constraint and give both v7x TensorCores balanced work).
    GB = B if B <= 8 else 8
    pad = (-B) % GB
    qst_p = qst_feat.astype(jnp.bfloat16)
    vis_p = visual_feat.astype(jnp.bfloat16)
    if pad:
        qst_p = jnp.concatenate([qst_p, jnp.zeros((pad, C), qst_p.dtype)], axis=0)
        vis_p = jnp.concatenate([vis_p, jnp.zeros((pad, T, C), vis_p.dtype)], axis=0)
    Bp = B + pad

    attn, tw = pl.pallas_call(
        _tp_kernel,
        out_shape=(jax.ShapeDtypeStruct((Bp, C), jnp.float32),
                   jax.ShapeDtypeStruct((Bp, T), jnp.float32)),
        grid=(Bp // GB,),
        in_specs=[
            pl.BlockSpec((GB, C), lambda i: (i, 0)),        # question query block
            pl.BlockSpec((GB, T, C), lambda i: (i, 0, 0)),  # visual tokens block
            pl.BlockSpec((C, 6 * C), lambda i: (0, 0)),     # weight slab (resident)
            pl.BlockSpec((1, 8 * C), lambda i: (0, 0)),     # bias/gamma/beta slab
        ],
        out_specs=(
            pl.BlockSpec((GB, C), lambda i: (i, 0)),        # attn feature (lane-dense)
            pl.BlockSpec((GB, T), lambda i: (i, 0)),        # averaged attention weights
        ),
        compiler_params=pltpu.CompilerParams(
            dimension_semantics=("parallel",)),
    )(qst_p, vis_p, w_slab, b_slab)

    return attn[:B], tw[:B].reshape(B, 1, T)


def temporal_perception_forward(params, audio_input, visual_input, qst_input, topK=10):
    """Equivalent of TemporalPerception.forward (eval mode).
    Returns (output_audio (B,topK,C), output_visual (B,topK,C), top_k_index_sort (B,1,topK))."""
    B, T, C = audio_input.shape
    _attn_feat, temp_weights = qst_query_clip_attn(params, qst_input, visual_input)

    # TODO(synk): SelectTopK (argsort / top-k index pick + index gather) stays in plain
    # JAX; an in-kernel version would need scalar-prefetch Element-indexed row gather.
    sort_index = jnp.argsort(temp_weights, axis=-1)          # ascending by weight
    top_k_index = sort_index[:, :, -topK:]                   # topK largest weights
    top_k_index_sort = jnp.sort(top_k_index, axis=-1)        # back to temporal order
    idx = top_k_index_sort[:, 0, :]                          # (B, topK)
    output_audio = jnp.take_along_axis(audio_input, idx[:, :, None], axis=1)
    output_visual = jnp.take_along_axis(visual_input, idx[:, :, None], axis=1)
    return output_audio, output_visual, top_k_index_sort


# --------------------------------------------------------------------------------------
# Parameters + pure-JAX f32 reference (for a correctness check of the Pallas part)
# --------------------------------------------------------------------------------------
def init_params(key):
    C = D_MODEL
    ks = jax.random.split(key, 12)

    def w(k, shape):
        return 0.02 * jax.random.normal(k, shape, jnp.float32)

    return {
        # attn_qst_query (nn.MultiheadAttention 512, 4 heads), stored right-multiply
        "w_q": w(ks[0], (C, C)), "b_q": w(ks[1], (1, C)),
        "w_k": w(ks[2], (C, C)), "b_k": w(ks[3], (1, C)),
        "w_v": w(ks[4], (C, C)), "b_v": w(ks[5], (1, C)),
        "w_o": w(ks[6], (C, C)), "b_o": w(ks[7], (1, C)),
        # qst_query_linear1 / linear2 + qst_query_visual_norm
        "w_l1": w(ks[8], (C, C)), "b_l1": w(ks[9], (1, C)),
        "w_l2": w(ks[10], (C, C)), "b_l2": w(ks[11], (1, C)),
        "ln_g": jnp.ones((1, C), jnp.float32), "ln_b": jnp.zeros((1, C), jnp.float32),
    }


def _reference_clip_attn(params, qst_feat, visual_feat):
    B, T, C = visual_feat.shape
    p = params
    scale = 1.0 / math.sqrt(HEAD_DIM)
    q = (qst_feat @ p["w_q"] + p["b_q"]) * scale                     # (B, C)
    k = visual_feat @ p["w_k"] + p["b_k"]                            # (B, T, C)
    v = visual_feat @ p["w_v"] + p["b_v"]                            # (B, T, C)
    qh = q.reshape(B, 1, N_HEAD, HEAD_DIM)
    kh = k.reshape(B, T, N_HEAD, HEAD_DIM)
    vh = v.reshape(B, T, N_HEAD, HEAD_DIM)
    s = jnp.einsum("bqhd,bkhd->bhqk", qh, kh)
    pw = jax.nn.softmax(s, axis=-1)                                  # (B, H, 1, T)
    temp_weights = jnp.mean(pw, axis=1)                              # (B, 1, T)
    o = jnp.einsum("bhqk,bkhd->bqhd", pw, vh).reshape(B, C)
    attn_feat = o @ p["w_o"] + p["b_o"]
    src = jax.nn.relu(attn_feat @ p["w_l1"] + p["b_l1"]) @ p["w_l2"] + p["b_l2"]
    y = attn_feat + src
    mu = jnp.mean(y, axis=-1, keepdims=True)
    yc = y - mu
    var = jnp.mean(yc * yc, axis=-1, keepdims=True)
    attn = yc * jax.lax.rsqrt(var + LN_EPS) * p["ln_g"] + p["ln_b"]
    return attn, temp_weights


if __name__ == "__main__":
    key = jax.random.PRNGKey(0)
    kp, ka, kvis, kq = jax.random.split(key, 4)
    params = init_params(kp)

    B, T, C, topK = 2, 16, D_MODEL, 10          # C=512 is hard-coded in the module
    audio_input = jax.random.normal(ka, (B, T, C), jnp.float32)
    visual_input = jax.random.normal(kvis, (B, T, C), jnp.float32)
    qst_input = jax.random.normal(kq, (B, C), jnp.float32)

    out_audio, out_visual, top_idx = temporal_perception_forward(
        params, audio_input, visual_input, qst_input, topK=topK)
    out_audio, out_visual, top_idx = jax.block_until_ready(
        (out_audio, out_visual, top_idx))

    # ---- correctness check of the Pallas hot path against a pure-JAX f32 reference ---
    attn_k, tw_k = qst_query_clip_attn(params, qst_input, visual_input)
    attn_r, tw_r = _reference_clip_attn(params, qst_input, visual_input)

    assert out_audio.shape == (B, topK, C) and out_visual.shape == (B, topK, C)
    assert top_idx.shape == (B, 1, topK)
    assert bool(jnp.all((top_idx >= 0) & (top_idx < T)))
    assert bool(jnp.all(top_idx[..., 1:] >= top_idx[..., :-1]))     # temporally sorted
    assert bool(jnp.allclose(tw_k, tw_r, atol=5e-3, rtol=5e-3)), \
        f"temp_weights max abs diff {float(jnp.max(jnp.abs(tw_k - tw_r)))}"
    assert bool(jnp.allclose(attn_k, attn_r, atol=5e-2, rtol=5e-2)), \
        f"attn max abs diff {float(jnp.max(jnp.abs(attn_k - attn_r)))}"

    print("KERNEL_OK")
</pallas_src>

<mosaic_0001>
module attributes {stable_mosaic.version = 11 : i64} {
  func.func @_tp_kernel(%arg0: i32, %arg1: memref<2x512xbf16, #tpu.memory_space<vmem>>, %arg2: memref<2x16x512xbf16, #tpu.memory_space<vmem>>, %arg3: memref<512x3072xbf16, #tpu.memory_space<vmem>>, %arg4: memref<1x4096xf32, #tpu.memory_space<vmem>>, %arg5: memref<2x512xf32, #tpu.memory_space<vmem>>, %arg6: memref<2x16xf32, #tpu.memory_space<vmem>>) attributes {dimension_semantics = [#tpu.dimension_semantics<parallel>], iteration_bounds = array<i64: 1>, scalar_prefetch = 0 : i64, scratch_operands = 0 : i64, tpu.core_type = #tpu.core_type<tc>, window_params = [{transform_indices = @transform_0, window_bounds = array<i64: 2, 512>}, {transform_indices = @transform_1, window_bounds = array<i64: 2, 16, 512>}, {pipeline_mode = #tpu.pipeline_mode<synchronous>, transform_indices = @transform_2, window_bounds = array<i64: 512, 3072>}, {pipeline_mode = #tpu.pipeline_mode<synchronous>, transform_indices = @transform_3, window_bounds = array<i64: 1, 4096>}, {transform_indices = @transform_4, window_bounds = array<i64: 2, 512>}, {transform_indices = @transform_5, window_bounds = array<i64: 2, 16>}]} {
    %c0 = arith.constant 0 : index
    %c0_0 = arith.constant 0 : index
    %0 = vector.load %arg1[%c0, %c0_0] : memref<2x512xbf16, #tpu.memory_space<vmem>>, vector<2x512xbf16>
    %c0_1 = arith.constant 0 : index
    %c0_2 = arith.constant 0 : index
    %1 = vector.load %arg3[%c0_1, %c0_2] : memref<512x3072xbf16, #tpu.memory_space<vmem>>, vector<512x512xbf16>
    %cst = arith.constant dense<0.000000e+00> : vector<2x512xf32>
    %2 = tpu.matmul %0, %1, %cst {dimension_numbers = #tpu.dot_dimension_numbers<[1], [0], [0], [1], [0, 0, 1, 1], [], []>} : vector<2x512xbf16>, vector<512x512xbf16>, vector<2x512xf32> -> vector<2x512xf32>
    %c0_3 = arith.constant 0 : index
    %c0_4 = arith.constant 0 : index
    %3 = vector.load %arg4[%c0_3, %c0_4] : memref<1x4096xf32, #tpu.memory_space<vmem>>, vector<1x512xf32>
    %4 = vector.broadcast %3 : vector<1x512xf32> to vector<2x512xf32>
    %5 = arith.addf %2, %4 : vector<2x512xf32>
    %c0_5 = arith.constant 0 : index
    %c0_6 = arith.constant 0 : index
    %c0_7 = arith.constant 0 : index
    %6 = vector.load %arg2[%c0_5, %c0_6, %c0_7] : memref<2x16x512xbf16, #tpu.memory_space<vmem>>, vector<2x16x512xbf16>
    %7 = vector.shape_cast %6 : vector<2x16x512xbf16> to vector<32x512xbf16>
    %c0_8 = arith.constant 0 : index
    %c512 = arith.constant 512 : index
    %8 = vector.load %arg3[%c0_8, %c512] : memref<512x3072xbf16, #tpu.memory_space<vmem>>, vector<512x1024xbf16>
    %cst_9 = arith.constant dense<0.000000e+00> : vector<32x1024xf32>
    %9 = tpu.matmul %7, %8, %cst_9 {dimension_numbers = #tpu.dot_dimension_numbers<[1], [0], [0], [1], [0, 0, 1, 1], [], []>} : vector<32x512xbf16>, vector<512x1024xbf16>, vector<32x1024xf32> -> vector<32x1024xf32>
    %c0_10 = arith.constant 0 : index
    %c512_11 = arith.constant 512 : index
    %10 = vector.load %arg4[%c0_10, %c512_11] : memref<1x4096xf32, #tpu.memory_space<vmem>>, vector<1x1024xf32>
    %11 = vector.broadcast %10 : vector<1x1024xf32> to vector<32x1024xf32>
    %12 = arith.addf %9, %11 : vector<32x1024xf32>
    %13 = vector.extract_strided_slice %12 {offsets = [0, 0], sizes = [32, 512], strides = [1, 1]} : vector<32x1024xf32> to vector<32x512xf32>
    %14 = vector.shape_cast %13 : vector<32x512xf32> to vector<2x16x512xf32>
    %15 = vector.extract_strided_slice %12 {offsets = [0, 512], sizes = [32, 512], strides = [1, 1]} : vector<32x1024xf32> to vector<32x512xf32>
    %16 = vector.shape_cast %15 : vector<32x512xf32> to vector<2x16x512xf32>
    %17 = vector.extract_strided_slice %5 {offsets = [0, 0], sizes = [2, 128], strides = [1, 1]} : vector<2x512xf32> to vector<2x128xf32>
    %18 = vector.extract_strided_slice %14 {offsets = [0, 0, 0], sizes = [2, 16, 128], strides = [1, 1, 1]} : vector<2x16x512xf32> to vector<2x16x128xf32>
    %19 = vector.shape_cast %17 : vector<2x128xf32> to vector<2x1x128xf32>
    %20 = vector.broadcast %19 : vector<2x1x128xf32> to vector<2x16x128xf32>
    %21 = arith.mulf %18, %20 : vector<2x16x128xf32>
    %cst_12 = arith.constant dense<0.000000e+00> : vector<2x16xf32>
    %22 = vector.multi_reduction <add>, %21, %cst_12 [2] : vector<2x16x128xf32> to vector<2x16xf32>
    %cst_13 = arith.constant dense<0xFF800000> : vector<2xf32>
    %23 = vector.multi_reduction <maximumf>, %22, %cst_13 [1] : vector<2x16xf32> to vector<2xf32>
    %24 = vector.shape_cast %23 : vector<2xf32> to vector<2x1xf32>
    %25 = vector.broadcast %24 : vector<2x1xf32> to vector<2x16xf32>
    %26 = arith.subf %22, %25 : vector<2x16xf32>
    %27 = math.exp %26 : vector<2x16xf32>
    %cst_14 = arith.constant dense<0.000000e+00> : vector<2xf32>
    %28 = vector.multi_reduction <add>, %27, %cst_14 [1] : vector<2x16xf32> to vector<2xf32>
    %29 = vector.shape_cast %28 : vector<2xf32> to vector<2x1xf32>
    %30 = tpu.reciprocal %29 {approx = true} : vector<2x1xf32> -> vector<2x1xf32>
    %31 = vector.broadcast %30 : vector<2x1xf32> to vector<2x16xf32>
    %32 = arith.mulf %27, %31 : vector<2x16xf32>
    %33 = vector.extract_strided_slice %5 {offsets = [0, 128], sizes = [2, 128], strides = [1, 1]} : vector<2x512xf32> to vector<2x128xf32>
    %34 = vector.extract_strided_slice %14 {offsets = [0, 0, 128], sizes = [2, 16, 128], strides = [1, 1, 1]} : vector<2x16x512xf32> to vector<2x16x128xf32>
    %35 = vector.shape_cast %33 : vector<2x128xf32> to vector<2x1x128xf32>
    %36 = vector.broadcast %35 : vector<2x1x128xf32> to vector<2x16x128xf32>
    %37 = arith.mulf %34, %36 : vector<2x16x128xf32>
    %cst_15 = arith.constant dense<0.000000e+00> : vector<2x16xf32>
    %38 = vector.multi_reduction <add>, %37, %cst_15 [2] : vector<2x16x128xf32> to vector<2x16xf32>
    %cst_16 = arith.constant dense<0xFF800000> : vector<2xf32>
    %39 = vector.multi_reduction <maximumf>, %38, %cst_16 [1] : vector<2x16xf32> to vector<2xf32>
    %40 = vector.shape_cast %39 : vector<2xf32> to vector<2x1xf32>
    %41 = vector.broadcast %40 : vector<2x1xf32> to vector<2x16xf32>
    %42 = arith.subf %38, %41 : vector<2x16xf32>
    %43 = math.exp %42 : vector<2x16xf32>
    %cst_17 = arith.constant dense<0.000000e+00> : vector<2xf32>
    %44 = vector.multi_reduction <add>, %43, %cst_17 [1] : vector<2x16xf32> to vector<2xf32>
    %45 = vector.shape_cast %44 : vector<2xf32> to vector<2x1xf32>
    %46 = tpu.reciprocal %45 {approx = true} : vector<2x1xf32> -> vector<2x1xf32>
    %47 = vector.broadcast %46 : vector<2x1xf32> to vector<2x16xf32>
    %48 = arith.mulf %43, %47 : vector<2x16xf32>
    %49 = vector.extract_strided_slice %5 {offsets = [0, 256], sizes = [2, 128], strides = [1, 1]} : vector<2x512xf32> to vector<2x128xf32>
    %50 = vector.extract_strided_slice %14 {offsets = [0, 0, 256], sizes = [2, 16, 128], strides = [1, 1, 1]} : vector<2x16x512xf32> to vector<2x16x128xf32>
    %51 = vector.shape_cast %49 : vector<2x128xf32> to vector<2x1x128xf32>
    %52 = vector.broadcast %51 : vector<2x1x128xf32> to vector<2x16x128xf32>
    %53 = arith.mulf %50, %52 : vector<2x16x128xf32>
    %cst_18 = arith.constant dense<0.000000e+00> : vector<2x16xf32>
    %54 = vector.multi_reduction <add>, %53, %cst_18 [2] : vector<2x16x128xf32> to vector<2x16xf32>
    %cst_19 = arith.constant dense<0xFF800000> : vector<2xf32>
    %55 = vector.multi_reduction <maximumf>, %54, %cst_19 [1] : vector<2x16xf32> to vector<2xf32>
    %56 = vector.shape_cast %55 : vector<2xf32> to vector<2x1xf32>
    %57 = vector.broadcast %56 : vector<2x1xf32> to vector<2x16xf32>
    %58 = arith.subf %54, %57 : vector<2x16xf32>
    %59 = math.exp %58 : vector<2x16xf32>
    %cst_20 = arith.constant dense<0.000000e+00> : vector<2xf32>
    %60 = vector.multi_reduction <add>, %59, %cst_20 [1] : vector<2x16xf32> to vector<2xf32>
    %61 = vector.shape_cast %60 : vector<2xf32> to vector<2x1xf32>
    %62 = tpu.reciprocal %61 {approx = true} : vector<2x1xf32> -> vector<2x1xf32>
    %63 = vector.broadcast %62 : vector<2x1xf32> to vector<2x16xf32>
    %64 = arith.mulf %59, %63 : vector<2x16xf32>
    %65 = vector.extract_strided_slice %5 {offsets = [0, 384], sizes = [2, 128], strides = [1, 1]} : vector<2x512xf32> to vector<2x128xf32>
    %66 = vector.extract_strided_slice %14 {offsets = [0, 0, 384], sizes = [2, 16, 128], strides = [1, 1, 1]} : vector<2x16x512xf32> to vector<2x16x128xf32>
    %67 = vector.shape_cast %65 : vector<2x128xf32> to vector<2x1x128xf32>
    %68 = vector.broadcast %67 : vector<2x1x128xf32> to vector<2x16x128xf32>
    %69 = arith.mulf %66, %68 : vector<2x16x128xf32>
    %cst_21 = arith.constant dense<0.000000e+00> : vector<2x16xf32>
    %70 = vector.multi_reduction <add>, %69, %cst_21 [2] : vector<2x16x128xf32> to vector<2x16xf32>
    %cst_22 = arith.constant dense<0xFF800000> : vector<2xf32>
    %71 = vector.multi_reduction <maximumf>, %70, %cst_22 [1] : vector<2x16xf32> to vector<2xf32>
    %72 = vector.shape_cast %71 : vector<2xf32> to vector<2x1xf32>
    %73 = vector.broadcast %72 : vector<2x1xf32> to vector<2x16xf32>
    %74 = arith.subf %70, %73 : vector<2x16xf32>
    %75 = math.exp %74 : vector<2x16xf32>
    %cst_23 = arith.constant dense<0.000000e+00> : vector<2xf32>
    %76 = vector.multi_reduction <add>, %75, %cst_23 [1] : vector<2x16xf32> to vector<2xf32>
    %77 = vector.shape_cast %76 : vector<2xf32> to vector<2x1xf32>
    %78 = tpu.reciprocal %77 {approx = true} : vector<2x1xf32> -> vector<2x1xf32>
    %79 = vector.broadcast %78 : vector<2x1xf32> to vector<2x16xf32>
    %80 = arith.mulf %75, %79 : vector<2x16xf32>
    %81 = arith.addf %32, %48 : vector<2x16xf32>
    %82 = arith.addf %81, %64 : vector<2x16xf32>
    %83 = arith.addf %82, %80 : vector<2x16xf32>
    %cst_24 = arith.constant 2.500000e-01 : f32
    %84 = vector.broadcast %cst_24 : f32 to vector<2x16xf32>
    %85 = arith.mulf %83, %84 : vector<2x16xf32>
    %c0_25 = arith.constant 0 : index
    %c0_26 = arith.constant 0 : index
    %86 = vector.load %arg6[%c0_25, %c0_26] : memref<2x16xf32, #tpu.memory_space<vmem>>, vector<2x16xf32>
    tpu.vector_store %arg6[%c0_25, %c0_26], %85 {strides = array<i32>} : memref<2x16xf32, #tpu.memory_space<vmem>>, vector<2x16xf32>,
    %87 = vector.extract_strided_slice %16 {offsets = [0, 0, 0], sizes = [2, 16, 128], strides = [1, 1, 1]} : vector<2x16x512xf32> to vector<2x16x128xf32>
    %88 = vector.shape_cast %32 : vector<2x16xf32> to vector<2x16x1xf32>
    %89 = vector.broadcast %88 : vector<2x16x1xf32> to vector<2x16x128xf32>
    %90 = arith.mulf %87, %89 : vector<2x16x128xf32>
    %cst_27 = arith.constant dense<0.000000e+00> : vector<2x128xf32>
    %91 = vector.multi_reduction <add>, %90, %cst_27 [1] : vector<2x16x128xf32> to vector<2x128xf32>
    %92 = vector.extract_strided_slice %16 {offsets = [0, 0, 128], sizes = [2, 16, 128], strides = [1, 1, 1]} : vector<2x16x512xf32> to vector<2x16x128xf32>
    %93 = vector.shape_cast %48 : vector<2x16xf32> to vector<2x16x1xf32>
    %94 = vector.broadcast %93 : vector<2x16x1xf32> to vector<2x16x128xf32>
    %95 = arith.mulf %92, %94 : vector<2x16x128xf32>
    %cst_28 = arith.constant dense<0.000000e+00> : vector<2x128xf32>
    %96 = vector.multi_reduction <add>, %95, %cst_28 [1] : vector<2x16x128xf32> to vector<2x128xf32>
    %97 = vector.extract_strided_slice %16 {offsets = [0, 0, 256], sizes = [2, 16, 128], strides = [1, 1, 1]} : vector<2x16x512xf32> to vector<2x16x128xf32>
    %98 = vector.shape_cast %64 : vector<2x16xf32> to vector<2x16x1xf32>
    %99 = vector.broadcast %98 : vector<2x16x1xf32> to vector<2x16x128xf32>
    %100 = arith.mulf %97, %99 : vector<2x16x128xf32>
    %cst_29 = arith.constant dense<0.000000e+00> : vector<2x128xf32>
    %101 = vector.multi_reduction <add>, %100, %cst_29 [1] : vector<2x16x128xf32> to vector<2x128xf32>
    %102 = vector.extract_strided_slice %16 {offsets = [0, 0, 384], sizes = [2, 16, 128], strides = [1, 1, 1]} : vector<2x16x512xf32> to vector<2x16x128xf32>
    %103 = vector.shape_cast %80 : vector<2x16xf32> to vector<2x16x1xf32>
    %104 = vector.broadcast %103 : vector<2x16x1xf32> to vector<2x16x128xf32>
    %105 = arith.mulf %102, %104 : vector<2x16x128xf32>
    %cst_30 = arith.constant dense<0.000000e+00> : vector<2x128xf32>
    %106 = vector.multi_reduction <add>, %105, %cst_30 [1] : vector<2x16x128xf32> to vector<2x128xf32>
    %107 = tpu.concatenate %91, %96, %101, %106 in 1 : vector<2x128xf32>, vector<2x128xf32>, vector<2x128xf32>, vector<2x128xf32> -> vector<2x512xf32>
    %108 = arith.truncf %107 : vector<2x512xf32> to vector<2x512xbf16>
    %c0_31 = arith.constant 0 : index
    %c1536 = arith.constant 1536 : index
    %109 = vector.load %arg3[%c0_31, %c1536] : memref<512x3072xbf16, #tpu.memory_space<vmem>>, vector<512x512xbf16>
    %cst_32 = arith.constant dense<0.000000e+00> : vector<2x512xf32>
    %110 = tpu.matmul %108, %109, %cst_32 {dimension_numbers = #tpu.dot_dimension_numbers<[1], [0], [0], [1], [0, 0, 1, 1], [], []>} : vector<2x512xbf16>, vector<512x512xbf16>, vector<2x512xf32> -> vector<2x512xf32>
    %c0_33 = arith.constant 0 : index
    %c1536_34 = arith.constant 1536 : index
    %111 = vector.load %arg4[%c0_33, %c1536_34] : memref<1x4096xf32, #tpu.memory_space<vmem>>, vector<1x512xf32>
    %112 = vector.broadcast %111 : vector<1x512xf32> to vector<2x512xf32>
    %113 = arith.addf %110, %112 : vector<2x512xf32>
    %114 = arith.truncf %113 : vector<2x512xf32> to vector<2x512xbf16>
    %c0_35 = arith.constant 0 : index
    %c2048 = arith.constant 2048 : index
    %115 = vector.load %arg3[%c0_35, %c2048] : memref<512x3072xbf16, #tpu.memory_space<vmem>>, vector<512x512xbf16>
    %cst_36 = arith.constant dense<0.000000e+00> : vector<2x512xf32>
    %116 = tpu.matmul %114, %115, %cst_36 {dimension_numbers = #tpu.dot_dimension_numbers<[1], [0], [0], [1], [0, 0, 1, 1], [], []>} : vector<2x512xbf16>, vector<512x512xbf16>, vector<2x512xf32> -> vector<2x512xf32>
    %c0_37 = arith.constant 0 : index
    %c2048_38 = arith.constant 2048 : index
    %117 = vector.load %arg4[%c0_37, %c2048_38] : memref<1x4096xf32, #tpu.memory_space<vmem>>, vector<1x512xf32>
    %118 = vector.broadcast %117 : vector<1x512xf32> to vector<2x512xf32>
    %119 = arith.addf %116, %118 : vector<2x512xf32>
    %cst_39 = arith.constant 0.000000e+00 : f32
    %120 = vector.broadcast %cst_39 : f32 to vector<2x512xf32>
    %121 = arith.maximumf %119, %120 : vector<2x512xf32>
    %122 = arith.truncf %121 : vector<2x512xf32> to vector<2x512xbf16>
    %c0_40 = arith.constant 0 : index
    %c2560 = arith.constant 2560 : index
    %123 = vector.load %arg3[%c0_40, %c2560] : memref<512x3072xbf16, #tpu.memory_space<vmem>>, vector<512x512xbf16>
    %cst_41 = arith.constant dense<0.000000e+00> : vector<2x512xf32>
    %124 = tpu.matmul %122, %123, %cst_41 {dimension_numbers = #tpu.dot_dimension_numbers<[1], [0], [0], [1], [0, 0, 1, 1], [], []>} : vector<2x512xbf16>, vector<512x512xbf16>, vector<2x512xf32> -> vector<2x512xf32>
    %c0_42 = arith.constant 0 : index
    %c2560_43 = arith.constant 2560 : index
    %125 = vector.load %arg4[%c0_42, %c2560_43] : memref<1x4096xf32, #tpu.memory_space<vmem>>, vector<1x512xf32>
    %126 = vector.broadcast %125 : vector<1x512xf32> to vector<2x512xf32>
    %127 = arith.addf %124, %126 : vector<2x512xf32>
    %128 = arith.addf %113, %127 : vector<2x512xf32>
    %cst_44 = arith.constant dense<0.000000e+00> : vector<2xf32>
    %129 = vector.multi_reduction <add>, %128, %cst_44 [1] : vector<2x512xf32> to vector<2xf32>
    %130 = vector.shape_cast %129 : vector<2xf32> to vector<2x1xf32>
    %cst_45 = arith.constant 5.120000e+02 : f32
    %131 = vector.broadcast %cst_45 : f32 to vector<2x1xf32>
    %132 = arith.divf %130, %131 : vector<2x1xf32>
    %133 = vector.broadcast %132 : vector<2x1xf32> to vector<2x512xf32>
    %134 = arith.subf %128, %133 : vector<2x512xf32>
    %135 = arith.mulf %134, %134 : vector<2x512xf32>
    %cst_46 = arith.constant dense<0.000000e+00> : vector<2xf32>
    %136 = vector.multi_reduction <add>, %135, %cst_46 [1] : vector<2x512xf32> to vector<2xf32>
    %137 = vector.shape_cast %136 : vector<2xf32> to vector<2x1xf32>
    %cst_47 = arith.constant 5.120000e+02 : f32
    %138 = vector.broadcast %cst_47 : f32 to vector<2x1xf32>
    %139 = arith.divf %137, %138 : vector<2x1xf32>
    %cst_48 = arith.constant 9.99999974E-6 : f32
    %140 = vector.broadcast %cst_48 : f32 to vector<2x1xf32>
    %141 = arith.addf %139, %140 : vector<2x1xf32>
    %142 = math.rsqrt %141 : vector<2x1xf32>
    %143 = vector.broadcast %142 : vector<2x1xf32> to vector<2x512xf32>
    %144 = arith.mulf %134, %143 : vector<2x512xf32>
    %c0_49 = arith.constant 0 : index
    %c3072 = arith.constant 3072 : index
    %145 = vector.load %arg4[%c0_49, %c3072] : memref<1x4096xf32, #tpu.memory_space<vmem>>, vector<1x512xf32>
    %146 = vector.broadcast %145 : vector<1x512xf32> to vector<2x512xf32>
    %147 = arith.mulf %144, %146 : vector<2x512xf32>
    %c0_50 = arith.constant 0 : index
    %c3584 = arith.constant 3584 : index
    %148 = vector.load %arg4[%c0_50, %c3584] : memref<1x4096xf32, #tpu.memory_space<vmem>>, vector<1x512xf32>
    %149 = vector.broadcast %148 : vector<1x512xf32> to vector<2x512xf32>
    %150 = arith.addf %147, %149 : vector<2x512xf32>
    %c0_51 = arith.constant 0 : index
    %c0_52 = arith.constant 0 : index
    %151 = vector.load %arg5[%c0_51, %c0_52] : memref<2x512xf32, #tpu.memory_space<vmem>>, vector<2x512xf32>
    tpu.vector_store %arg5[%c0_51, %c0_52], %150 {strides = array<i32>} : memref<2x512xf32, #tpu.memory_space<vmem>>, vector<2x512xf32>,
    return
  }
  func.func @transform_0(%arg0: i32) -> (i32, i32) {
    %c0_i32 = arith.constant 0 : i32
    %c0_i32_0 = arith.constant 0 : i32
    return %arg0, %c0_i32 : i32, i32
  }
  func.func @transform_1(%arg0: i32) -> (i32, i32, i32) {
    %c0_i32 = arith.constant 0 : i32
    %c0_i32_0 = arith.constant 0 : i32
    %c0_i32_1 = arith.constant 0 : i32
    return %arg0, %c0_i32, %c0_i32_0 : i32, i32, i32
  }
  func.func @transform_2(%arg0: i32) -> (i32, i32) {
    %c0_i32 = arith.constant 0 : i32
    %c0_i32_0 = arith.constant 0 : i32
    %c0_i32_1 = arith.constant 0 : i32
    return %c0_i32, %c0_i32_0 : i32, i32
  }
  func.func @transform_3(%arg0: i32) -> (i32, i32) {
    %c0_i32 = arith.constant 0 : i32
    %c0_i32_0 = arith.constant 0 : i32
    %c0_i32_1 = arith.constant 0 : i32
    return %c0_i32, %c0_i32_0 : i32, i32
  }
  func.func @transform_4(%arg0: i32) -> (i32, i32) {
    %c0_i32 = arith.constant 0 : i32
    %c0_i32_0 = arith.constant 0 : i32
    return %arg0, %c0_i32 : i32, i32
  }
  func.func @transform_5(%arg0: i32) -> (i32, i32) {
    %c0_i32 = arith.constant 0 : i32
    %c0_i32_0 = arith.constant 0 : i32
    return %arg0, %c0_i32 : i32, i32
  }
}

</mosaic_0001>

<llo_original>
// kernel: tpu_custom_call.1
$region0: #{tpu_custom_call.1}
  #allocation0 [shape = 'u32[]', space=smem, size = 0x4, offset = 0x4, fixed_abs, tag = 'smem constant byte address 0x4 - core index']
  #allocation1 [shape = 'u32[72,128]{1,0:T(1,128)}', space=vmem, size = 0x9000, scoped, tag = 'internal scratch']
  %s0 = inlined_call_operand.hbm [shape: bf16[2,512], index: 0, kind: input, shape index: {}]
  %s1 = inlined_call_operand.hbm [shape: bf16[2,16,512], index: 1, kind: input, shape index: {}]
  %s2 = inlined_call_operand.hbm [shape: bf16[512,3072], index: 2, kind: input, shape index: {}]
  %s3 = inlined_call_operand.hbm [shape: f32[1,4096], index: 3, kind: input, shape index: {}]
  %s4 = inlined_call_operand.hbm [shape: f32[2,512], index: 4, kind: output, shape index: {0}]
  %s5 = inlined_call_operand.hbm [shape: f32[2,16], index: 5, kind: output, shape index: {1}]
  %6 = xla_tuple %s4, %s5
  %s7 = sld [smem:[#allocation0]]
  $region50: #{tpu_custom_call.1} parent=0
    _
  %s9 = ssub.s32 1, %s7
  %s10 = scalar_select 0, %s9, %s7
  $region1: #{tpu_custom_call.1} parent=0
    #allocation2 [shape = 'u8[2048]{0}', space=vmem, size = 0x800, scoped, tag = 'input window, operand 0, single buffered']
    #allocation3 [shape = 's32[1]{0}', space=sflag, size = 0x4, scoped, tag = 'scoped memory for tpu_custom_call.1']
    #allocation4 [shape = 's32[1]{0}', space=sflag, size = 0x4, scoped, tag = 'scoped memory for tpu_custom_call.1']
    #allocation5 [shape = 'u8[32768]{0}', space=vmem, size = 0x8000, scoped, tag = 'input window, operand 1, single buffered']
    #allocation6 [shape = 's32[1]{0}', space=sflag, size = 0x4, scoped, tag = 'scoped memory for tpu_custom_call.1']
    #allocation7 [shape = 'u8[3145728]{0}', space=vmem, size = 0x300000, scoped, tag = 'input window, operand 2, single buffered']
    #allocation8 [shape = 'u8[16384]{0}', space=vmem, size = 0x4000, scoped, tag = 'input window, operand 3, single buffered']
    #allocation9 [shape = 's32[1]{0}', space=sflag, size = 0x4, scoped, tag = 'scoped memory for tpu_custom_call.1']
    #allocation10 [shape = 'u8[4096]{0}', space=vmem, size = 0x1000, scoped, tag = 'output window, operand 0, single buffered']
    #allocation11 [shape = 'u8[1024]{0}', space=vmem, size = 0x400, scoped, tag = 'output window, operand 1, single buffered']
    #allocation12 [shape = 's32[1]{0}', space=sflag, size = 0x4, scoped, tag = 'scoped memory for tpu_custom_call.1']
    %11 = vsyncpa [#allocation3], 0
    %12 = vsyncpa [#allocation6], 0
    %13 = vsyncpa [#allocation9], 0
    %14 = vsyncpa [#allocation4], 0
    %15 = vsyncpa [#allocation12], 0
    // Predicated region
    $region2: #{tpu_custom_call.1} parent=1 // pred_check
      _
    $region3: #{tpu_custom_call.1} parent=1 // pred_check_branch
      %17 = sbr.rel (0) target = $region5
    $region4: #{tpu_custom_call.1} parent=1 // pred_region
      %19 = vsyncadd [#allocation3], 0
      %s21 = sshll.u32 %s0, 4
      %s22 = int_to_ptr.hbm [resolvable:$true] %s21
      %s23 = sshll.u32 [#allocation2], 4
      %s24 = int_to_ptr.vmem [resolvable:$true] %s23
      %26 = dma.hbm_to_vmem [thread:$0]  %s22, 64, %s24, [#allocation3]
    $region5: #{tpu_custom_call.1} parent=1 // pred_fallthru
      _
    // Predicated region
    $region6: #{tpu_custom_call.1} parent=1 // pred_check
      _
    $region7: #{tpu_custom_call.1} parent=1 // pred_check_branch
      %28 = sbr.rel (0) target = $region9
    $region8: #{tpu_custom_call.1} parent=1 // pred_region
      %30 = vsyncadd [#allocation6], 0
      %s31 = sshll.u32 %s1, 4
      %s32 = int_to_ptr.hbm [resolvable:$true] %s31
      %s33 = sshll.u32 [#allocation5], 4
      %s34 = int_to_ptr.vmem [resolvable:$true] %s33
      %39 = dma.hbm_to_vmem [thread:$0]  %s32, 1024, %s34, [#allocation6], 256, 256, 16
    $region9: #{tpu_custom_call.1} parent=1 // pred_fallthru
      _
    // Predicated region
    $region10: #{tpu_custom_call.1} parent=1 // pred_check
      _
    $region11: #{tpu_custom_call.1} parent=1 // pred_check_branch
      %41 = sbr.rel (0) target = $region13
    $region12: #{tpu_custom_call.1} parent=1 // pred_region
      %43 = vsyncadd [#allocation6], 0
      %s44 = sshll.u32 %s2, 4
      %s45 = int_to_ptr.hbm [resolvable:$true] %s44
      %s46 = sshll.u32 [#allocation7], 4
      %s47 = int_to_ptr.vmem [resolvable:$true] %s46
      %52 = dma.hbm_to_vmem [thread:$0]  %s45, 98304, %s47, [#allocation6], 1536, 1536, 96
    $region13: #{tpu_custom_call.1} parent=1 // pred_fallthru
      _
    // Predicated region
    $region14: #{tpu_custom_call.1} parent=1 // pred_check
      _
    $region15: #{tpu_custom_call.1} parent=1 // pred_check_branch
      %54 = sbr.rel (0) target = $region17
    $region16: #{tpu_custom_call.1} parent=1 // pred_region
      %56 = vsyncadd [#allocation9], 0
      %s58 = sshll.u32 %s3, 4
      %s59 = int_to_ptr.hbm [resolvable:$true] %s58
      %s60 = sshll.u32 [#allocation8], 4
      %s61 = int_to_ptr.vmem [resolvable:$true] %s60
      %63 = dma.hbm_to_vmem [thread:$0]  %s59, 512, %s61, [#allocation9]
    $region17: #{tpu_custom_call.1} parent=1 // pred_fallthru
      _
    // Predicated region
    $region18: #{tpu_custom_call.1} parent=1 // pred_check
      _
    $region19: #{tpu_custom_call.1} parent=1 // pred_check_branch
      %65 = sbr.rel (0) target = $region21
    $region20: #{tpu_custom_call.1} parent=1 // pred_region
      %67 = dma.done [#allocation3], 64
    $region21: #{tpu_custom_call.1} parent=1 // pred_fallthru
      _
    // Predicated region
    $region22: #{tpu_custom_call.1} parent=1 // pred_check
      _
    $region23: #{tpu_custom_call.1} parent=1 // pred_check_branch
      %69 = sbr.rel (0) target = $region25
    $region24: #{tpu_custom_call.1} parent=1 // pred_region
      %71 = dma.done [#allocation6], 1024
    $region25: #{tpu_custom_call.1} parent=1 // pred_fallthru
      _
    // Predicated region
    $region26: #{tpu_custom_call.1} parent=1 // pred_check
      _
    $region27: #{tpu_custom_call.1} parent=1 // pred_check_branch
      %73 = sbr.rel (0) target = $region29
    $region28: #{tpu_custom_call.1} parent=1 // pred_region
      %75 = dma.done [#allocation6], 98304
    $region29: #{tpu_custom_call.1} parent=1 // pred_fallthru
      _
    // Predicated region
    $region30: #{tpu_custom_call.1} parent=1 // pred_check
      _
    $region31: #{tpu_custom_call.1} parent=1 // pred_check_branch
      %77 = sbr.rel (0) target = $region33
    $region32: #{tpu_custom_call.1} parent=1 // pred_region
      %79 = dma.done [#allocation9], 512
    $region33: #{tpu_custom_call.1} parent=1 // pred_fallthru
      _
    %v80 = vld [vmem:[#allocation2] sm:$0xf]
    %v81 = vld [vmem:[#allocation7] sm:$0xff]
    %v82 = vld [vmem:[#allocation7 + $0x8] sm:$0xff]
    %v83 = vld [vmem:[#allocation7 + $0x60] sm:$0xff]
    %v84 = vld [vmem:[#allocation7 + $0x68] sm:$0xff]
    %v85 = vld [vmem:[#allocation7 + $0xc0] sm:$0xff]
    %v86 = vld [vmem:[#allocation7 + $0xc8] sm:$0xff]
    %v87 = vld [vmem:[#allocation7 + $0x120] sm:$0xff]
    %v88 = vld [vmem:[#allocation7 + $0x128] sm:$0xff]
    %v89 = vld [vmem:[#allocation7 + $0x180] sm:$0xff]
    %v90 = vld [vmem:[#allocation7 + $0x188] sm:$0xff]
    %v91 = vld [vmem:[#allocation7 + $0x1e0] sm:$0xff]
    %v92 = vld [vmem:[#allocation7 + $0x1e8] sm:$0xff]
    %v93 = vld [vmem:[#allocation7 + $0x240] sm:$0xff]
    %v94 = vld [vmem:[#allocation7 + $0x248] sm:$0xff]
    %v95 = vld [vmem:[#allocation7 + $0x2a0] sm:$0xff]
    %v96 = vld [vmem:[#allocation7 + $0x2a8] sm:$0xff]
    %v97 = vld [vmem:[#allocation7 + $0x300] sm:$0xff]
    %v98 = vld [vmem:[#allocation7 + $0x308] sm:$0xff]
    %v99 = vld [vmem:[#allocation7 + $0x360] sm:$0xff]
    %v100 = vld [vmem:[#allocation7 + $0x368] sm:$0xff]
    %v101 = vld [vmem:[#allocation7 + $0x3c0] sm:$0xff]
    %v102 = vld [vmem:[#allocation7 + $0x3c8] sm:$0xff]
    %v103 = vld [vmem:[#allocation7 + $0x420] sm:$0xff]
    %v104 = vld [vmem:[#allocation7 + $0x428] sm:$0xff]
    %v105 = vld [vmem:[#allocation7 + $0x480] sm:$0xff]
    %v106 = vld [vmem:[#allocation7 + $0x488] sm:$0xff]
    %v107 = vld [vmem:[#allocation7 + $0x4e0] sm:$0xff]
    %v108 = vld [vmem:[#allocation7 + $0x4e8] sm:$0xff]
    %v109 = vld [vmem:[#allocation7 + $0x540] sm:$0xff]
    %v110 = vld [vmem:[#allocation7 + $0x548] sm:$0xff]
    %v111 = vld [vmem:[#allocation7 + $0x5a0] sm:$0xff]
    %v112 = vld [vmem:[#allocation7 + $0x5a8] sm:$0xff]
    %v113 = vld [vmem:[#allocation7 + $0x600] sm:$0xff]
    %v114 = vld [vmem:[#allocation7 + $0x608] sm:$0xff]
    %v115 = vld [vmem:[#allocation7 + $0x660] sm:$0xff]
    %v116 = vld [vmem:[#allocation7 + $0x668] sm:$0xff]
    %v117 = vld [vmem:[#allocation7 + $0x6c0] sm:$0xff]
    %v118 = vld [vmem:[#allocation7 + $0x6c8] sm:$0xff]
    %v119 = vld [vmem:[#allocation7 + $0x720] sm:$0xff]
    %v120 = vld [vmem:[#allocation7 + $0x728] sm:$0xff]
    %v121 = vld [vmem:[#allocation7 + $0x780] sm:$0xff]
    %v122 = vld [vmem:[#allocation7 + $0x788] sm:$0xff]
    %v123 = vld [vmem:[#allocation7 + $0x7e0] sm:$0xff]
    %v124 = vld [vmem:[#allocation7 + $0x7e8] sm:$0xff]
    %v125 = vld [vmem:[#allocation7 + $0x840] sm:$0xff]
    %v126 = vld [vmem:[#allocation7 + $0x848] sm:$0xff]
    %v127 = vld [vmem:[#allocation7 + $0x8a0] sm:$0xff]
    %v128 = vld [vmem:[#allocation7 + $0x8a8] sm:$0xff]
    %v129 = vld [vmem:[#allocation7 + $0x900] sm:$0xff]
    %v130 = vld [vmem:[#allocation7 + $0x908] sm:$0xff]
    %v131 = vld [vmem:[#allocation7 + $0x960] sm:$0xff]
    %v132 = vld [vmem:[#allocation7 + $0x968] sm:$0xff]
    %v133 = vld [vmem:[#allocation7 + $0x9c0] sm:$0xff]
    %v134 = vld [vmem:[#allocation7 + $0x9c8] sm:$0xff]
    %v135 = vld [vmem:[#allocation7 + $0xa20] sm:$0xff]
    %v136 = vld [vmem:[#allocation7 + $0xa28] sm:$0xff]
    %v137 = vld [vmem:[#allocation7 + $0xa80] sm:$0xff]
    %v138 = vld [vmem:[#allocation7 + $0xa88] sm:$0xff]
    %v139 = vld [vmem:[#allocation7 + $0xae0] sm:$0xff]
    %v140 = vld [vmem:[#allocation7 + $0xae8] sm:$0xff]
    %v141 = vld [vmem:[#allocation7 + $0xb40] sm:$0xff]
    %v142 = vld [vmem:[#allocation7 + $0xb48] sm:$0xff]
    %v143 = vld [vmem:[#allocation7 + $0xba0] sm:$0xff]
    %v144 = vld [vmem:[#allocation7 + $0xba8] sm:$0xff]
    %v145 = vld [vmem:[#allocation7 + $0xc00] sm:$0xff]
    %v146 = vld [vmem:[#allocation7 + $0xc08] sm:$0xff]
    %v147 = vld [vmem:[#allocation7 + $0xc60] sm:$0xff]
    %v148 = vld [vmem:[#allocation7 + $0xc68] sm:$0xff]
    %v149 = vld [vmem:[#allocation7 + $0xcc0] sm:$0xff]
    %v150 = vld [vmem:[#allocation7 + $0xcc8] sm:$0xff]
    %v151 = vld [vmem:[#allocation7 + $0xd20] sm:$0xff]
    %v152 = vld [vmem:[#allocation7 + $0xd28] sm:$0xff]
    %v153 = vld [vmem:[#allocation7 + $0xd80] sm:$0xff]
    %v154 = vld [vmem:[#allocation7 + $0xd88] sm:$0xff]
    %v155 = vld [vmem:[#allocation7 + $0xde0] sm:$0xff]
    %v156 = vld [vmem:[#allocation7 + $0xde8] sm:$0xff]
    %v157 = vld [vmem:[#allocation7 + $0xe40] sm:$0xff]
    %v158 = vld [vmem:[#allocation7 + $0xe48] sm:$0xff]
    %v159 = vld [vmem:[#allocation7 + $0xea0] sm:$0xff]
    %v160 = vld [vmem:[#allocation7 + $0xea8] sm:$0xff]
    %v161 = vld [vmem:[#allocation7 + $0xf00] sm:$0xff]
    %v162 = vld [vmem:[#allocation7 + $0xf08] sm:$0xff]
    %v163 = vld [vmem:[#allocation7 + $0xf60] sm:$0xff]
    %v164 = vld [vmem:[#allocation7 + $0xf68] sm:$0xff]
    %v165 = vld [vmem:[#allocation7 + $0xfc0] sm:$0xff]
    %v166 = vld [vmem:[#allocation7 + $0xfc8] sm:$0xff]
    %v167 = vld [vmem:[#allocation7 + $0x1020] sm:$0xff]
    %v168 = vld [vmem:[#allocation7 + $0x1028] sm:$0xff]
    %v169 = vld [vmem:[#allocation7 + $0x1080] sm:$0xff]
    %v170 = vld [vmem:[#allocation7 + $0x1088] sm:$0xff]
    %v171 = vld [vmem:[#allocation7 + $0x10e0] sm:$0xff]
    %v172 = vld [vmem:[#allocation7 + $0x10e8] sm:$0xff]
    %v173 = vld [vmem:[#allocation7 + $0x1140] sm:$0xff]
    %v174 = vld [vmem:[#allocation7 + $0x1148] sm:$0xff]
    %v175 = vld [vmem:[#allocation7 + $0x11a0] sm:$0xff]
    %v176 = vld [vmem:[#allocation7 + $0x11a8] sm:$0xff]
    %v177 = vld [vmem:[#allocation7 + $0x1200] sm:$0xff]
    %v178 = vld [vmem:[#allocation7 + $0x1208] sm:$0xff]
    %v179 = vld [vmem:[#allocation7 + $0x1260] sm:$0xff]
    %v180 = vld [vmem:[#allocation7 + $0x1268] sm:$0xff]
    %v181 = vld [vmem:[#allocation7 + $0x12c0] sm:$0xff]
    %v182 = vld [vmem:[#allocation7 + $0x12c8] sm:$0xff]
    %v183 = vld [vmem:[#allocation7 + $0x1320] sm:$0xff]
    %v184 = vld [vmem:[#allocation7 + $0x1328] sm:$0xff]
    %v185 = vld [vmem:[#allocation7 + $0x1380] sm:$0xff]
    %v186 = vld [vmem:[#allocation7 + $0x1388] sm:$0xff]
    %v187 = vld [vmem:[#allocation7 + $0x13e0] sm:$0xff]
    %v188 = vld [vmem:[#allocation7 + $0x13e8] sm:$0xff]
    %v189 = vld [vmem:[#allocation7 + $0x1440] sm:$0xff]
    %v190 = vld [vmem:[#allocation7 + $0x1448] sm:$0xff]
    %v191 = vld [vmem:[#allocation7 + $0x14a0] sm:$0xff]
    %v192 = vld [vmem:[#allocation7 + $0x14a8] sm:$0xff]
    %v193 = vld [vmem:[#allocation7 + $0x1500] sm:$0xff]
    %v194 = vld [vmem:[#allocation7 + $0x1508] sm:$0xff]
    %v195 = vld [vmem:[#allocation7 + $0x1560] sm:$0xff]
    %v196 = vld [vmem:[#allocation7 + $0x1568] sm:$0xff]
    %v197 = vld [vmem:[#allocation7 + $0x15c0] sm:$0xff]
    %v198 = vld [vmem:[#allocation7 + $0x15c8] sm:$0xff]
    %v199 = vld [vmem:[#allocation7 + $0x1620] sm:$0xff]
    %v200 = vld [vmem:[#allocation7 + $0x1628] sm:$0xff]
    %v201 = vld [vmem:[#allocation7 + $0x1680] sm:$0xff]
    %v202 = vld [vmem:[#allocation7 + $0x1688] sm:$0xff]
    %v203 = vld [vmem:[#allocation7 + $0x16e0] sm:$0xff]
    %v204 = vld [vmem:[#allocation7 + $0x16e8] sm:$0xff]
    %v205 = vld [vmem:[#allocation7 + $0x1740] sm:$0xff]
    %v206 = vld [vmem:[#allocation7 + $0x1748] sm:$0xff]
    %v207 = vld [vmem:[#allocation7 + $0x17a0] sm:$0xff]
    %v208 = vld [vmem:[#allocation7 + $0x17a8] sm:$0xff]
    %v209 = vld [vmem:[#allocation8] sm:$0xf]
    %v211 = vperm.slane %v209, 0
    %v212 = vperm.slane %v209, 1
    %v213 = vperm.slane %v209, 2
    %v214 = vperm.slane %v209, 3
    %220 = vst [vmem:[#allocation1] ss:$9 sm:$0xff] %v80
    %v221 = vld [vmem:[#allocation1] sm:$0xff]
    %v222 = vld [vmem:[#allocation1 + $0x9] sm:$0xff]
    %v223 = vld [vmem:[#allocation1 + $0x12] sm:$0xff]
    %v224 = vld [vmem:[#allocation1 + $0x1b] sm:$0xff]
    %v357 = vunpack.c.l.b16 %v81
    %v358 = vunpack.c.h.b16 %v81
    %v359 = vunpack.c.l.b16 %v82
    %v360 = vunpack.c.h.b16 %v82
    %v361 = vunpack.c.l.b16 %v83
    %v362 = vunpack.c.h.b16 %v83
    %v363 = vunpack.c.l.b16 %v84
    %v364 = vunpack.c.h.b16 %v84
    %v365 = vunpack.c.l.b16 %v85
    %v366 = vunpack.c.h.b16 %v85
    %v367 = vunpack.c.l.b16 %v86
    %v368 = vunpack.c.h.b16 %v86
    %v369 = vunpack.c.l.b16 %v87
    %v370 = vunpack.c.h.b16 %v87
    %v371 = vunpack.c.l.b16 %v88
    %v372 = vunpack.c.h.b16 %v88
    %v373 = vunpack.c.l.b16 %v89
    %v374 = vunpack.c.h.b16 %v89
    %v375 = vunpack.c.l.b16 %v90
    %v376 = vunpack.c.h.b16 %v90
    %v377 = vunpack.c.l.b16 %v91
    %v378 = vunpack.c.h.b16 %v91
    %v379 = vunpack.c.l.b16 %v92
    %v380 = vunpack.c.h.b16 %v92
    %v381 = vunpack.c.l.b16 %v93
    %v382 = vunpack.c.h.b16 %v93
    %v383 = vunpack.c.l.b16 %v94
    %v384 = vunpack.c.h.b16 %v94
    %v385 = vunpack.c.l.b16 %v95
    %v386 = vunpack.c.h.b16 %v95
    %v387 = vunpack.c.l.b16 %v96
    %v388 = vunpack.c.h.b16 %v96
    %v389 = vunpack.c.l.b16 %v97
    %v390 = vunpack.c.h.b16 %v97
    %v391 = vunpack.c.l.b16 %v98
    %v392 = vunpack.c.h.b16 %v98
    %v393 = vunpack.c.l.b16 %v99
    %v394 = vunpack.c.h.b16 %v99
    %v395 = vunpack.c.l.b16 %v100
    %v396 = vunpack.c.h.b16 %v100
    %v397 = vunpack.c.l.b16 %v101
    %v398 = vunpack.c.h.b16 %v101
    %v399 = vunpack.c.l.b16 %v102
    %v400 = vunpack.c.h.b16 %v102
    %v401 = vunpack.c.l.b16 %v103
    %v402 = vunpack.c.h.b16 %v103
    %v403 = vunpack.c.l.b16 %v104
    %v404 = vunpack.c.h.b16 %v104
    %v405 = vunpack.c.l.b16 %v105
    %v406 = vunpack.c.h.b16 %v105
    %v407 = vunpack.c.l.b16 %v106
    %v408 = vunpack.c.h.b16 %v106
    %v409 = vunpack.c.l.b16 %v107
    %v410 = vunpack.c.h.b16 %v107
    %v411 = vunpack.c.l.b16 %v108
    %v412 = vunpack.c.h.b16 %v108
    %v413 = vunpack.c.l.b16 %v109
    %v414 = vunpack.c.h.b16 %v109
    %v415 = vunpack.c.l.b16 %v110
    %v416 = vunpack.c.h.b16 %v110
    %v417 = vunpack.c.l.b16 %v111
    %v418 = vunpack.c.h.b16 %v111
    %v419 = vunpack.c.l.b16 %v112
    %v420 = vunpack.c.h.b16 %v112
    %v421 = vunpack.c.l.b16 %v113
    %v422 = vunpack.c.h.b16 %v113
    %v423 = vunpack.c.l.b16 %v114
    %v424 = vunpack.c.h.b16 %v114
    %v425 = vunpack.c.l.b16 %v115
    %v426 = vunpack.c.h.b16 %v115
    %v427 = vunpack.c.l.b16 %v116
    %v428 = vunpack.c.h.b16 %v116
    %v429 = vunpack.c.l.b16 %v117
    %v430 = vunpack.c.h.b16 %v117
    %v431 = vunpack.c.l.b16 %v118
    %v432 = vunpack.c.h.b16 %v118
    %v433 = vunpack.c.l.b16 %v119
    %v434 = vunpack.c.h.b16 %v119
    %v435 = vunpack.c.l.b16 %v120
    %v436 = vunpack.c.h.b16 %v120
    %v437 = vunpack.c.l.b16 %v121
    %v438 = vunpack.c.h.b16 %v121
    %v439 = vunpack.c.l.b16 %v122
    %v440 = vunpack.c.h.b16 %v122
    %v441 = vunpack.c.l.b16 %v123
    %v442 = vunpack.c.h.b16 %v123
    %v443 = vunpack.c.l.b16 %v124
    %v444 = vunpack.c.h.b16 %v124
    %v445 = vunpack.c.l.b16 %v125
    %v446 = vunpack.c.h.b16 %v125
    %v447 = vunpack.c.l.b16 %v126
    %v448 = vunpack.c.h.b16 %v126
    %v449 = vunpack.c.l.b16 %v127
    %v450 = vunpack.c.h.b16 %v127
    %v451 = vunpack.c.l.b16 %v128
    %v452 = vunpack.c.h.b16 %v128
    %v453 = vunpack.c.l.b16 %v129
    %v454 = vunpack.c.h.b16 %v129
    %v455 = vunpack.c.l.b16 %v130
    %v456 = vunpack.c.h.b16 %v130
    %v457 = vunpack.c.l.b16 %v131
    %v458 = vunpack.c.h.b16 %v131
    %v459 = vunpack.c.l.b16 %v132
    %v460 = vunpack.c.h.b16 %v132
    %v461 = vunpack.c.l.b16 %v133
    %v462 = vunpack.c.h.b16 %v133
    %v463 = vunpack.c.l.b16 %v134
    %v464 = vunpack.c.h.b16 %v134
    %v465 = vunpack.c.l.b16 %v135
    %v466 = vunpack.c.h.b16 %v135
    %v467 = vunpack.c.l.b16 %v136
    %v468 = vunpack.c.h.b16 %v136
    %v469 = vunpack.c.l.b16 %v137
    %v470 = vunpack.c.h.b16 %v137
    %v471 = vunpack.c.l.b16 %v138
    %v472 = vunpack.c.h.b16 %v138
    %v473 = vunpack.c.l.b16 %v139
    %v474 = vunpack.c.h.b16 %v139
    %v475 = vunpack.c.l.b16 %v140
    %v476 = vunpack.c.h.b16 %v140
    %v477 = vunpack.c.l.b16 %v141
    %v478 = vunpack.c.h.b16 %v141
    %v479 = vunpack.c.l.b16 %v142
    %v480 = vunpack.c.h.b16 %v142
    %v481 = vunpack.c.l.b16 %v143
    %v482 = vunpack.c.h.b16 %v143
    %v483 = vunpack.c.l.b16 %v144
    %v484 = vunpack.c.h.b16 %v144
    %v485 = vunpack.c.l.b16 %v145
    %v486 = vunpack.c.h.b16 %v145
    %v487 = vunpack.c.l.b16 %v146
    %v488 = vunpack.c.h.b16 %v146
    %v489 = vunpack.c.l.b16 %v147
    %v490 = vunpack.c.h.b16 %v147
    %v491 = vunpack.c.l.b16 %v148
    %v492 = vunpack.c.h.b16 %v148
    %v493 = vunpack.c.l.b16 %v149
    %v494 = vunpack.c.h.b16 %v149
    %v495 = vunpack.c.l.b16 %v150
    %v496 = vunpack.c.h.b16 %v150
    %v497 = vunpack.c.l.b16 %v151
    %v498 = vunpack.c.h.b16 %v151
    %v499 = vunpack.c.l.b16 %v152
    %v500 = vunpack.c.h.b16 %v152
    %v501 = vunpack.c.l.b16 %v153
    %v502 = vunpack.c.h.b16 %v153
    %v503 = vunpack.c.l.b16 %v154
    %v504 = vunpack.c.h.b16 %v154
    %v505 = vunpack.c.l.b16 %v155
    %v506 = vunpack.c.h.b16 %v155
    %v507 = vunpack.c.l.b16 %v156
    %v508 = vunpack.c.h.b16 %v156
    %v509 = vunpack.c.l.b16 %v157
    %v510 = vunpack.c.h.b16 %v157
    %v511 = vunpack.c.l.b16 %v158
    %v512 = vunpack.c.h.b16 %v158
    %v513 = vunpack.c.l.b16 %v159
    %v514 = vunpack.c.h.b16 %v159
    %v515 = vunpack.c.l.b16 %v160
    %v516 = vunpack.c.h.b16 %v160
    %v517 = vunpack.c.l.b16 %v161
    %v518 = vunpack.c.h.b16 %v161
    %v519 = vunpack.c.l.b16 %v162
    %v520 = vunpack.c.h.b16 %v162
    %v521 = vunpack.c.l.b16 %v163
    %v522 = vunpack.c.h.b16 %v163
    %v523 = vunpack.c.l.b16 %v164
    %v524 = vunpack.c.h.b16 %v164
    %v525 = vunpack.c.l.b16 %v165
    %v526 = vunpack.c.h.b16 %v165
    %v527 = vunpack.c.l.b16 %v166
    %v528 = vunpack.c.h.b16 %v166
    %v529 = vunpack.c.l.b16 %v167
    %v530 = vunpack.c.h.b16 %v167
    %v531 = vunpack.c.l.b16 %v168
    %v532 = vunpack.c.h.b16 %v168
    %v533 = vunpack.c.l.b16 %v169
    %v534 = vunpack.c.h.b16 %v169
    %v535 = vunpack.c.l.b16 %v170
    %v536 = vunpack.c.h.b16 %v170
    %v537 = vunpack.c.l.b16 %v171
    %v538 = vunpack.c.h.b16 %v171
    %v539 = vunpack.c.l.b16 %v172
    %v540 = vunpack.c.h.b16 %v172
    %v541 = vunpack.c.l.b16 %v173
    %v542 = vunpack.c.h.b16 %v173
    %v543 = vunpack.c.l.b16 %v174
    %v544 = vunpack.c.h.b16 %v174
    %v545 = vunpack.c.l.b16 %v175
    %v546 = vunpack.c.h.b16 %v175
    %v547 = vunpack.c.l.b16 %v176
    %v548 = vunpack.c.h.b16 %v176
    %v549 = vunpack.c.l.b16 %v177
    %v550 = vunpack.c.h.b16 %v177
    %v551 = vunpack.c.l.b16 %v178
    %v552 = vunpack.c.h.b16 %v178
    %v553 = vunpack.c.l.b16 %v179
    %v554 = vunpack.c.h.b16 %v179
    %v555 = vunpack.c.l.b16 %v180
    %v556 = vunpack.c.h.b16 %v180
    %v557 = vunpack.c.l.b16 %v181
    %v558 = vunpack.c.h.b16 %v181
    %v559 = vunpack.c.l.b16 %v182
    %v560 = vunpack.c.h.b16 %v182
    %v561 = vunpack.c.l.b16 %v183
    %v562 = vunpack.c.h.b16 %v183
    %v563 = vunpack.c.l.b16 %v184
    %v564 = vunpack.c.h.b16 %v184
    %v565 = vunpack.c.l.b16 %v185
    %v566 = vunpack.c.h.b16 %v185
    %v567 = vunpack.c.l.b16 %v186
    %v568 = vunpack.c.h.b16 %v186
    %v569 = vunpack.c.l.b16 %v187
    %v570 = vunpack.c.h.b16 %v187
    %v571 = vunpack.c.l.b16 %v188
    %v572 = vunpack.c.h.b16 %v188
    %v573 = vunpack.c.l.b16 %v189
    %v574 = vunpack.c.h.b16 %v189
    %v575 = vunpack.c.l.b16 %v190
    %v576 = vunpack.c.h.b16 %v190
    %v577 = vunpack.c.l.b16 %v191
    %v578 = vunpack.c.h.b16 %v191
    %v579 = vunpack.c.l.b16 %v192
    %v580 = vunpack.c.h.b16 %v192
    %v581 = vunpack.c.l.b16 %v193
    %v582 = vunpack.c.h.b16 %v193
    %v583 = vunpack.c.l.b16 %v194
    %v584 = vunpack.c.h.b16 %v194
    %v585 = vunpack.c.l.b16 %v195
    %v586 = vunpack.c.h.b16 %v195
    %v587 = vunpack.c.l.b16 %v196
    %v588 = vunpack.c.h.b16 %v196
    %v589 = vunpack.c.l.b16 %v197
    %v590 = vunpack.c.h.b16 %v197
    %v591 = vunpack.c.l.b16 %v198
    %v592 = vunpack.c.h.b16 %v198
    %v593 = vunpack.c.l.b16 %v199
    %v594 = vunpack.c.h.b16 %v199
    %v595 = vunpack.c.l.b16 %v200
    %v596 = vunpack.c.h.b16 %v200
    %v597 = vunpack.c.l.b16 %v201
    %v598 = vunpack.c.h.b16 %v201
    %v599 = vunpack.c.l.b16 %v202
    %v600 = vunpack.c.h.b16 %v202
    %v601 = vunpack.c.l.b16 %v203
    %v602 = vunpack.c.h.b16 %v203
    %v603 = vunpack.c.l.b16 %v204
    %v604 = vunpack.c.h.b16 %v204
    %v605 = vunpack.c.l.b16 %v205
    %v606 = vunpack.c.h.b16 %v205
    %v607 = vunpack.c.l.b16 %v206
    %v608 = vunpack.c.h.b16 %v206
    %v609 = vunpack.c.l.b16 %v207
    %v610 = vunpack.c.h.b16 %v207
    %v611 = vunpack.c.l.b16 %v208
    %v612 = vunpack.c.h.b16 %v208
    %v613 = vpack.c.b16 %v361, %v357
    %v614 = vpack.c.b16 %v362, %v358
    %v615 = vpack.c.b16 %v363, %v359
    %v616 = vpack.c.b16 %v364, %v360
    %v617 = vpack.c.b16 %v369, %v365
    %v618 = vpack.c.b16 %v370, %v366
    %v619 = vpack.c.b16 %v371, %v367
    %v620 = vpack.c.b16 %v372, %v368
    %v621 = vpack.c.b16 %v377, %v373
    %v622 = vpack.c.b16 %v378, %v374
    %v623 = vpack.c.b16 %v379, %v375
    %v624 = vpack.c.b16 %v380, %v376
    %v625 = vpack.c.b16 %v385, %v381
    %v626 = vpack.c.b16 %v386, %v382
    %v627 = vpack.c.b16 %v387, %v383
    %v628 = vpack.c.b16 %v388, %v384
    %v629 = vpack.c.b16 %v393, %v389
    %v630 = vpack.c.b16 %v394, %v390
    %v631 = vpack.c.b16 %v395, %v391
    %v632 = vpack.c.b16 %v396, %v392
    %v633 = vpack.c.b16 %v401, %v397
    %v634 = vpack.c.b16 %v402, %v398
    %v635 = vpack.c.b16 %v403, %v399
    %v636 = vpack.c.b16 %v404, %v400
    %v637 = vpack.c.b16 %v409, %v405
    %v638 = vpack.c.b16 %v410, %v406
    %v639 = vpack.c.b16 %v411, %v407
    %v640 = vpack.c.b16 %v412, %v408
    %v641 = vpack.c.b16 %v417, %v413
    %v642 = vpack.c.b16 %v418, %v414
    %v643 = vpack.c.b16 %v419, %v415
    %v644 = vpack.c.b16 %v420, %v416
    %v645 = vpack.c.b16 %v425, %v421
    %v646 = vpack.c.b16 %v426, %v422
    %v647 = vpack.c.b16 %v427, %v423
    %v648 = vpack.c.b16 %v428, %v424
    %v649 = vpack.c.b16 %v433, %v429
    %v650 = vpack.c.b16 %v434, %v430
    %v651 = vpack.c.b16 %v435, %v431
    %v652 = vpack.c.b16 %v436, %v432
    %v653 = vpack.c.b16 %v441, %v437
    %v654 = vpack.c.b16 %v442, %v438
    %v655 = vpack.c.b16 %v443, %v439
    %v656 = vpack.c.b16 %v444, %v440
    %v657 = vpack.c.b16 %v449, %v445
    %v658 = vpack.c.b16 %v450, %v446
    %v659 = vpack.c.b16 %v451, %v447
    %v660 = vpack.c.b16 %v452, %v448
    %v661 = vpack.c.b16 %v457, %v453
    %v662 = vpack.c.b16 %v458, %v454
    %v663 = vpack.c.b16 %v459, %v455
    %v664 = vpack.c.b16 %v460, %v456
    %v665 = vpack.c.b16 %v465, %v461
    %v666 = vpack.c.b16 %v466, %v462
    %v667 = vpack.c.b16 %v467, %v463
    %v668 = vpack.c.b16 %v468, %v464
    %v669 = vpack.c.b16 %v473, %v469
    %v670 = vpack.c.b16 %v474, %v470
    %v671 = vpack.c.b16 %v475, %v471
    %v672 = vpack.c.b16 %v476, %v472
    %v673 = vpack.c.b16 %v481, %v477
    %v674 = vpack.c.b16 %v482, %v478
    %v675 = vpack.c.b16 %v483, %v479
    %v676 = vpack.c.b16 %v484, %v480
    %v677 = vpack.c.b16 %v489, %v485
    %v678 = vpack.c.b16 %v490, %v486
    %v679 = vpack.c.b16 %v491, %v487
    %v680 = vpack.c.b16 %v492, %v488
    %v681 = vpack.c.b16 %v497, %v493
    %v682 = vpack.c.b16 %v498, %v494
    %v683 = vpack.c.b16 %v499, %v495
    %v684 = vpack.c.b16 %v500, %v496
    %v685 = vpack.c.b16 %v505, %v501
    %v686 = vpack.c.b16 %v506, %v502
    %v687 = vpack.c.b16 %v507, %v503
    %v688 = vpack.c.b16 %v508, %v504
    %v689 = vpack.c.b16 %v513, %v509
    %v690 = vpack.c.b16 %v514, %v510
    %v691 = vpack.c.b16 %v515, %v511
    %v692 = vpack.c.b16 %v516, %v512
    %v693 = vpack.c.b16 %v521, %v517
    %v694 = vpack.c.b16 %v522, %v518
    %v695 = vpack.c.b16 %v523, %v519
    %v696 = vpack.c.b16 %v524, %v520
    %v697 = vpack.c.b16 %v529, %v525
    %v698 = vpack.c.b16 %v530, %v526
    %v699 = vpack.c.b16 %v531, %v527
    %v700 = vpack.c.b16 %v532, %v528
    %v701 = vpack.c.b16 %v537, %v533
    %v702 = vpack.c.b16 %v538, %v534
    %v703 = vpack.c.b16 %v539, %v535
    %v704 = vpack.c.b16 %v540, %v536
    %v705 = vpack.c.b16 %v545, %v541
    %v706 = vpack.c.b16 %v546, %v542
    %v707 = vpack.c.b16 %v547, %v543
    %v708 = vpack.c.b16 %v548, %v544
    %v709 = vpack.c.b16 %v553, %v549
    %v710 = vpack.c.b16 %v554, %v550
    %v711 = vpack.c.b16 %v555, %v551
    %v712 = vpack.c.b16 %v556, %v552
    %v713 = vpack.c.b16 %v561, %v557
    %v714 = vpack.c.b16 %v562, %v558
    %v715 = vpack.c.b16 %v563, %v559
    %v716 = vpack.c.b16 %v564, %v560
    %v717 = vpack.c.b16 %v569, %v565
    %v718 = vpack.c.b16 %v570, %v566
    %v719 = vpack.c.b16 %v571, %v567
    %v720 = vpack.c.b16 %v572, %v568
    %v721 = vpack.c.b16 %v577, %v573
    %v722 = vpack.c.b16 %v578, %v574
    %v723 = vpack.c.b16 %v579, %v575
    %v724 = vpack.c.b16 %v580, %v576
    %v725 = vpack.c.b16 %v585, %v581
    %v726 = vpack.c.b16 %v586, %v582
    %v727 = vpack.c.b16 %v587, %v583
    %v728 = vpack.c.b16 %v588, %v584
    %v729 = vpack.c.b16 %v593, %v589
    %v730 = vpack.c.b16 %v594, %v590
    %v731 = vpack.c.b16 %v595, %v591
    %v732 = vpack.c.b16 %v596, %v592
    %v733 = vpack.c.b16 %v601, %v597
    %v734 = vpack.c.b16 %v602, %v598
    %v735 = vpack.c.b16 %v603, %v599
    %v736 = vpack.c.b16 %v604, %v600
    %v737 = vpack.c.b16 %v609, %v605
    %v738 = vpack.c.b16 %v610, %v606
    %v739 = vpack.c.b16 %v611, %v607
    %v740 = vpack.c.b16 %v612, %v608
    %869 = vmatpush.bf16.msra.mxu0 %v641
    %870 = vmatpush.bf16.msra.mxu0 %v637
    %871 = vmatpush.bf16.msra.mxu0 %v633
    %872 = vmatpush.bf16.msra.mxu0 %v629
    %873 = vmatpush.bf16.msra.mxu0 %v625
    %874 = vmatpush.bf16.msra.mxu0 %v621
    %875 = vmatpush.bf16.msra.mxu0 %v617
    %876 = vmatpush.bf16.msra.mxu0 %v613
    %877 = vmatmul.bf16.gmra.mxu0 %v221
    %v878 = vpop.f32.mrf.mxu0
    %v879 = vadd.f32 %v211, %v878
    %v880 = vpop.f32.mrf.mxu0
    %881 = vdwg.mxu0
    %882 = vmatpush.bf16.msra.mxu0 %v673
    %883 = vmatpush.bf16.msra.mxu0 %v669
    %884 = vmatpush.bf16.msra.mxu0 %v665
    %885 = vmatpush.bf16.msra.mxu0 %v661
    %886 = vmatpush.bf16.msra.mxu0 %v657
    %887 = vmatpush.bf16.msra.mxu0 %v653
    %888 = vmatpush.bf16.msra.mxu0 %v649
    %889 = vmatpush.bf16.msra.mxu0 %v645
    %890 = vmatmul.bf16.gmra.mxu0 %v222
    %v891 = vpop.f32.mrf.mxu0
    %v892 = vadd.f32 %v879, %v891
    %v893 = vpop.f32.mrf.mxu0
    %894 = vdwg.mxu0
    %895 = vmatpush.bf16.msra.mxu0 %v705
    %896 = vmatpush.bf16.msra.mxu0 %v701
    %897 = vmatpush.bf16.msra.mxu0 %v697
    %898 = vmatpush.bf16.msra.mxu0 %v693
    %899 = vmatpush.bf16.msra.mxu0 %v689
    %900 = vmatpush.bf16.msra.mxu0 %v685
    %901 = vmatpush.bf16.msra.mxu0 %v681
    %902 = vmatpush.bf16.msra.mxu0 %v677
    %903 = vmatmul.bf16.gmra.mxu0 %v223
    %v904 = vpop.f32.mrf.mxu0
    %v905 = vadd.f32 %v892, %v904
    %v906 = vpop.f32.mrf.mxu0
    %907 = vdwg.mxu0
    %908 = vmatpush.bf16.msra.mxu0 %v737
    %909 = vmatpush.bf16.msra.mxu0 %v733
    %910 = vmatpush.bf16.msra.mxu0 %v729
    %911 = vmatpush.bf16.msra.mxu0 %v725
    %912 = vmatpush.bf16.msra.mxu0 %v721
    %913 = vmatpush.bf16.msra.mxu0 %v717
    %914 = vmatpush.bf16.msra.mxu0 %v713
    %915 = vmatpush.bf16.msra.mxu0 %v709
    %916 = vmatmul.bf16.gmra.mxu0 %v224
    %v917 = vpop.f32.mrf.mxu0
    %v918 = vadd.f32 %v905, %v917
    %v919 = vpop.f32.mrf.mxu0
    %920 = vdwg.mxu0
    %921 = vmatpush.bf16.msra.mxu0 %v642
    %922 = vmatpush.bf16.msra.mxu0 %v638
    %923 = vmatpush.bf16.msra.mxu0 %v634
    %924 = vmatpush.bf16.msra.mxu0 %v630
    %925 = vmatpush.bf16.msra.mxu0 %v626
    %926 = vmatpush.bf16.msra.mxu0 %v622
    %927 = vmatpush.bf16.msra.mxu0 %v618
    %928 = vmatpush.bf16.msra.mxu0 %v614
    %929 = vmatmul.bf16.gmra.mxu0 %v221
    %v930 = vpop.f32.mrf.mxu0
    %v931 = vadd.f32 %v212, %v930
    %v932 = vpop.f32.mrf.mxu0
    %933 = vdwg.mxu0
    %934 = vmatpush.bf16.msra.mxu0 %v674
    %935 = vmatpush.bf16.msra.mxu0 %v670
    %936 = vmatpush.bf16.msra.mxu0 %v666
    %937 = vmatpush.bf16.msra.mxu0 %v662
    %938 = vmatpush.bf16.msra.mxu0 %v658
    %939 = vmatpush.bf16.msra.mxu0 %v654
    %940 = vmatpush.bf16.msra.mxu0 %v650
    %941 = vmatpush.bf16.msra.mxu0 %v646
    %942 = vmatmul.bf16.gmra.mxu0 %v222
    %v943 = vpop.f32.mrf.mxu0
    %v944 = vadd.f32 %v931, %v943
    %v945 = vpop.f32.mrf.mxu0
    %946 = vdwg.mxu0
    %947 = vmatpush.bf16.msra.mxu0 %v706
    %948 = vmatpush.bf16.msra.mxu0 %v702
    %949 = vmatpush.bf16.msra.mxu0 %v698
    %950 = vmatpush.bf16.msra.mxu0 %v694
    %951 = vmatpush.bf16.msra.mxu0 %v690
    %952 = vmatpush.bf16.msra.mxu0 %v686
    %953 = vmatpush.bf16.msra.mxu0 %v682
    %954 = vmatpush.bf16.msra.mxu0 %v678
    %955 = vmatmul.bf16.gmra.mxu0 %v223
    %v956 = vpop.f32.mrf.mxu0
    %v957 = vadd.f32 %v944, %v956
    %v958 = vpop.f32.mrf.mxu0
    %959 = vdwg.mxu0
    %960 = vmatpush.bf16.msra.mxu0 %v738
    %961 = vmatpush.bf16.msra.mxu0 %v734
    %962 = vmatpush.bf16.msra.mxu0 %v730
    %963 = vmatpush.bf16.msra.mxu0 %v726
    %964 = vmatpush.bf16.msra.mxu0 %v722
    %965 = vmatpush.bf16.msra.mxu0 %v718
    %966 = vmatpush.bf16.msra.mxu0 %v714
    %967 = vmatpush.bf16.msra.mxu0 %v710
    %968 = vmatmul.bf16.gmra.mxu0 %v224
    %v969 = vpop.f32.mrf.mxu0
    %v970 = vadd.f32 %v957, %v969
    %v971 = vpop.f32.mrf.mxu0
    %972 = vdwg.mxu0
    %973 = vmatpush.bf16.msra.mxu0 %v643
    %974 = vmatpush.bf16.msra.mxu0 %v639
    %975 = vmatpush.bf16.msra.mxu0 %v635
    %976 = vmatpush.bf16.msra.mxu0 %v631
    %977 = vmatpush.bf16.msra.mxu0 %v627
    %978 = vmatpush.bf16.msra.mxu0 %v623
    %979 = vmatpush.bf16.msra.mxu0 %v619
    %980 = vmatpush.bf16.msra.mxu0 %v615
    %981 = vmatmul.bf16.gmra.mxu0 %v221
    %v982 = vpop.f32.mrf.mxu0
    %v983 = vadd.f32 %v213, %v982
    %v984 = vpop.f32.mrf.mxu0
    %985 = vdwg.mxu0
    %986 = vmatpush.bf16.msra.mxu0 %v675
    %987 = vmatpush.bf16.msra.mxu0 %v671
    %988 = vmatpush.bf16.msra.mxu0 %v667
    %989 = vmatpush.bf16.msra.mxu0 %v663
    %990 = vmatpush.bf16.msra.mxu0 %v659
    %991 = vmatpush.bf16.msra.mxu0 %v655
    %992 = vmatpush.bf16.msra.mxu0 %v651
    %993 = vmatpush.bf16.msra.mxu0 %v647
    %994 = vmatmul.bf16.gmra.mxu0 %v222
    %v995 = vpop.f32.mrf.mxu0
    %v996 = vadd.f32 %v983, %v995
    %v997 = vpop.f32.mrf.mxu0
    %998 = vdwg.mxu0
    %999 = vmatpush.bf16.msra.mxu0 %v707
    %1000 = vmatpush.bf16.msra.mxu0 %v703
    %1001 = vmatpush.bf16.msra.mxu0 %v699
    %1002 = vmatpush.bf16.msra.mxu0 %v695
    %1003 = vmatpush.bf16.msra.mxu0 %v691
    %1004 = vmatpush.bf16.msra.mxu0 %v687
    %1005 = vmatpush.bf16.msra.mxu0 %v683
    %1006 = vmatpush.bf16.msra.mxu0 %v679
    %1007 = vmatmul.bf16.gmra.mxu0 %v223
    %v1008 = vpop.f32.mrf.mxu0
    %v1009 = vadd.f32 %v996, %v1008
    %v1010 = vpop.f32.mrf.mxu0
    %1011 = vdwg.mxu0
    %1012 = vmatpush.bf16.msra.mxu0 %v739
    %1013 = vmatpush.bf16.msra.mxu0 %v735
    %1014 = vmatpush.bf16.msra.mxu0 %v731
    %1015 = vmatpush.bf16.msra.mxu0 %v727
    %1016 = vmatpush.bf16.msra.mxu0 %v723
    %1017 = vmatpush.bf16.msra.mxu0 %v719
    %1018 = vmatpush.bf16.msra.mxu0 %v715
    %1019 = vmatpush.bf16.msra.mxu0 %v711
    %1020 = vmatmul.bf16.gmra.mxu0 %v224
    %v1021 = vpop.f32.mrf.mxu0
    %v1022 = vadd.f32 %v1009, %v1021
    %v1023 = vpop.f32.mrf.mxu0
    %1024 = vdwg.mxu0
    %1025 = vmatpush.bf16.msra.mxu0 %v644
    %1026 = vmatpush.bf16.msra.mxu0 %v640
    %1027 = vmatpush.bf16.msra.mxu0 %v636
    %1028 = vmatpush.bf16.msra.mxu0 %v632
    %1029 = vmatpush.bf16.msra.mxu0 %v628
    %1030 = vmatpush.bf16.msra.mxu0 %v624
    %1031 = vmatpush.bf16.msra.mxu0 %v620
    %1032 = vmatpush.bf16.msra.mxu0 %v616
    %1033 = vmatmul.bf16.gmra.mxu0 %v221
    %v1034 = vpop.f32.mrf.mxu0
    %v1035 = vadd.f32 %v214, %v1034
    %v1036 = vpop.f32.mrf.mxu0
    %1037 = vdwg.mxu0
    %1038 = vmatpush.bf16.msra.mxu0 %v676
    %1039 = vmatpush.bf16.msra.mxu0 %v672
    %1040 = vmatpush.bf16.msra.mxu0 %v668
    %1041 = vmatpush.bf16.msra.mxu0 %v664
    %1042 = vmatpush.bf16.msra.mxu0 %v660
    %1043 = vmatpush.bf16.msra.mxu0 %v656
    %1044 = vmatpush.bf16.msra.mxu0 %v652
    %1045 = vmatpush.bf16.msra.mxu0 %v648
    %1046 = vmatmul.bf16.gmra.mxu0 %v222
    %v1047 = vpop.f32.mrf.mxu0
    %v1048 = vadd.f32 %v1035, %v1047
    %v1049 = vpop.f32.mrf.mxu0
    %1050 = vdwg.mxu0
    %1051 = vmatpush.bf16.msra.mxu0 %v708
    %1052 = vmatpush.bf16.msra.mxu0 %v704
    %1053 = vmatpush.bf16.msra.mxu0 %v700
    %1054 = vmatpush.bf16.msra.mxu0 %v696
    %1055 = vmatpush.bf16.msra.mxu0 %v692
    %1056 = vmatpush.bf16.msra.mxu0 %v688
    %1057 = vmatpush.bf16.msra.mxu0 %v684
    %1058 = vmatpush.bf16.msra.mxu0 %v680
    %1059 = vmatmul.bf16.gmra.mxu0 %v223
    %v1060 = vpop.f32.mrf.mxu0
    %v1061 = vadd.f32 %v1048, %v1060
    %v1062 = vpop.f32.mrf.mxu0
    %1063 = vdwg.mxu0
    %1064 = vmatpush.bf16.msra.mxu0 %v740
    %1065 = vmatpush.bf16.msra.mxu0 %v736
    %1066 = vmatpush.bf16.msra.mxu0 %v732
    %1067 = vmatpush.bf16.msra.mxu0 %v728
    %1068 = vmatpush.bf16.msra.mxu0 %v724
    %1069 = vmatpush.bf16.msra.mxu0 %v720
    %1070 = vmatpush.bf16.msra.mxu0 %v716
    %1071 = vmatpush.bf16.msra.mxu0 %v712
    %1072 = vmatmul.bf16.gmra.mxu0 %v224
    %v1073 = vpop.f32.mrf.mxu0
    %v1074 = vadd.f32 %v1061, %v1073
    %v1075 = vpop.f32.mrf.mxu0
    %1076 = vdwg.mxu0
    %v1077 = vld [vmem:[#allocation5] sm:$0xff]
    %v1078 = vld [vmem:[#allocation5 + $0x8] sm:$0xff]
    %v1079 = vld [vmem:[#allocation5 + $0x10] sm:$0xff]
    %v1080 = vld [vmem:[#allocation5 + $0x18] sm:$0xff]
    %v1081 = vld [vmem:[#allocation5 + $0x20] sm:$0xff]
    %v1082 = vld [vmem:[#allocation5 + $0x28] sm:$0xff]
    %v1083 = vld [vmem:[#allocation5 + $0x30] sm:$0xff]
    %v1084 = vld [vmem:[#allocation5 + $0x38] sm:$0xff]
    %v1085 = vld [vmem:[#allocation7 + $0x10] sm:$0xff]
    %v1086 = vld [vmem:[#allocation7 + $0x18] sm:$0xff]
    %v1087 = vld [vmem:[#allocation7 + $0x20] sm:$0xff]
    %v1088 = vld [vmem:[#allocation7 + $0x28] sm:$0xff]
    %v1089 = vld [vmem:[#allocation7 + $0x70] sm:$0xff]
    %v1090 = vld [vmem:[#allocation7 + $0x78] sm:$0xff]
    %v1091 = vld [vmem:[#allocation7 + $0x80] sm:$0xff]
    %v1092 = vld [vmem:[#allocation7 + $0x88] sm:$0xff]
    %v1093 = vld [vmem:[#allocation7 + $0xd0] sm:$0xff]
    %v1094 = vld [vmem:[#allocation7 + $0xd8] sm:$0xff]
    %v1095 = vld [vmem:[#allocation7 + $0xe0] sm:$0xff]
    %v1096 = vld [vmem:[#allocation7 + $0xe8] sm:$0xff]
    %v1097 = vld [vmem:[#allocation7 + $0x130] sm:$0xff]
    %v1098 = vld [vmem:[#allocation7 + $0x138] sm:$0xff]
    %v1099 = vld [vmem:[#allocation7 + $0x140] sm:$0xff]
    %v1100 = vld [vmem:[#allocation7 + $0x148] sm:$0xff]
    %v1101 = vld [vmem:[#allocation7 + $0x190] sm:$0xff]
    %v1102 = vld [vmem:[#allocation7 + $0x198] sm:$0xff]
    %v1103 = vld [vmem:[#allocation7 + $0x1a0] sm:$0xff]
    %v1104 = vld [vmem:[#allocation7 + $0x1a8] sm:$0xff]
    %v1105 = vld [vmem:[#allocation7 + $0x1f0] sm:$0xff]
    %v1106 = vld [vmem:[#allocation7 + $0x1f8] sm:$0xff]
    %v1107 = vld [vmem:[#allocation7 + $0x200] sm:$0xff]
    %v1108 = vld [vmem:[#allocation7 + $0x208] sm:$0xff]
    %v1109 = vld [vmem:[#allocation7 + $0x250] sm:$0xff]
    %v1110 = vld [vmem:[#allocation7 + $0x258] sm:$0xff]
    %v1111 = vld [vmem:[#allocation7 + $0x260] sm:$0xff]
    %v1112 = vld [vmem:[#allocation7 + $0x268] sm:$0xff]
    %v1113 = vld [vmem:[#allocation7 + $0x2b0] sm:$0xff]
    %v1114 = vld [vmem:[#allocation7 + $0x2b8] sm:$0xff]
    %v1115 = vld [vmem:[#allocation7 + $0x2c0] sm:$0xff]
    %v1116 = vld [vmem:[#allocation7 + $0x2c8] sm:$0xff]
    %v1117 = vld [vmem:[#allocation7 + $0x310] sm:$0xff]
    %v1118 = vld [vmem:[#allocation7 + $0x318] sm:$0xff]
    %v1119 = vld [vmem:[#allocation7 + $0x320] sm:$0xff]
    %v1120 = vld [vmem:[#allocation7 + $0x328] sm:$0xff]
    %v1121 = vld [vmem:[#allocation7 + $0x370] sm:$0xff]
    %v1122 = vld [vmem:[#allocation7 + $0x378] sm:$0xff]
    %v1123 = vld [vmem:[#allocation7 + $0x380] sm:$0xff]
    %v1124 = vld [vmem:[#allocation7 + $0x388] sm:$0xff]
    %v1125 = vld [vmem:[#allocation7 + $0x3d0] sm:$0xff]
    %v1126 = vld [vmem:[#allocation7 + $0x3d8] sm:$0xff]
    %v1127 = vld [vmem:[#allocation7 + $0x3e0] sm:$0xff]
    %v1128 = vld [vmem:[#allocation7 + $0x3e8] sm:$0xff]
    %v1129 = vld [vmem:[#allocation7 + $0x430] sm:$0xff]
    %v1130 = vld [vmem:[#allocation7 + $0x438] sm:$0xff]
    %v1131 = vld [vmem:[#allocation7 + $0x440] sm:$0xff]
    %v1132 = vld [vmem:[#allocation7 + $0x448] sm:$0xff]
    %v1133 = vld [vmem:[#allocation7 + $0x490] sm:$0xff]
    %v1134 = vld [vmem:[#allocation7 + $0x498] sm:$0xff]
    %v1135 = vld [vmem:[#allocation7 + $0x4a0] sm:$0xff]
    %v1136 = vld [vmem:[#allocation7 + $0x4a8] sm:$0xff]
    %v1137 = vld [vmem:[#allocation7 + $0x4f0] sm:$0xff]
    %v1138 = vld [vmem:[#allocation7 + $0x4f8] sm:$0xff]
    %v1139 = vld [vmem:[#allocation7 + $0x500] sm:$0xff]
    %v1140 = vld [vmem:[#allocation7 + $0x508] sm:$0xff]
    %v1141 = vld [vmem:[#allocation7 + $0x550] sm:$0xff]
    %v1142 = vld [vmem:[#allocation7 + $0x558] sm:$0xff]
    %v1143 = vld [vmem:[#allocation7 + $0x560] sm:$0xff]
    %v1144 = vld [vmem:[#allocation7 + $0x568] sm:$0xff]
    %v1145 = vld [vmem:[#allocation7 + $0x5b0] sm:$0xff]
    %v1146 = vld [vmem:[#allocation7 + $0x5b8] sm:$0xff]
    %v1147 = vld [vmem:[#allocation7 + $0x5c0] sm:$0xff]
    %v1148 = vld [vmem:[#allocation7 + $0x5c8] sm:$0xff]
    %v1149 = vld [vmem:[#allocation7 + $0x610] sm:$0xff]
    %v1150 = vld [vmem:[#allocation7 + $0x618] sm:$0xff]
    %v1151 = vld [vmem:[#allocation7 + $0x620] sm:$0xff]
    %v1152 = vld [vmem:[#allocation7 + $0x628] sm:$0xff]
    %v1153 = vld [vmem:[#allocation7 + $0x670] sm:$0xff]
    %v1154 = vld [vmem:[#allocation7 + $0x678] sm:$0xff]
    %v1155 = vld [vmem:[#allocation7 + $0x680] sm:$0xff]
    %v1156 = vld [vmem:[#allocation7 + $0x688] sm:$0xff]
    %v1157 = vld [vmem:[#allocation7 + $0x6d0] sm:$0xff]
    %v1158 = vld [vmem:[#allocation7 + $0x6d8] sm:$0xff]
    %v1159 = vld [vmem:[#allocation7 + $0x6e0] sm:$0xff]
    %v1160 = vld [vmem:[#allocation7 + $0x6e8] sm:$0xff]
    %v1161 = vld [vmem:[#allocation7 + $0x730] sm:$0xff]
    %v1162 = vld [vmem:[#allocation7 + $0x738] sm:$0xff]
    %v1163 = vld [vmem:[#allocation7 + $0x740] sm:$0xff]
    %v1164 = vld [vmem:[#allocation7 + $0x748] sm:$0xff]
    %v1165 = vld [vmem:[#allocation7 + $0x790] sm:$0xff]
    %v1166 = vld [vmem:[#allocation7 + $0x798] sm:$0xff]
    %v1167 = vld [vmem:[#allocation7 + $0x7a0] sm:$0xff]
    %v1168 = vld [vmem:[#allocation7 + $0x7a8] sm:$0xff]
    %v1169 = vld [vmem:[#allocation7 + $0x7f0] sm:$0xff]
    %v1170 = vld [vmem:[#allocation7 + $0x7f8] sm:$0xff]
    %v1171 = vld [vmem:[#allocation7 + $0x800] sm:$0xff]
    %v1172 = vld [vmem:[#allocation7 + $0x808] sm:$0xff]
    %v1173 = vld [vmem:[#allocation7 + $0x850] sm:$0xff]
    %v1174 = vld [vmem:[#allocation7 + $0x858] sm:$0xff]
    %v1175 = vld [vmem:[#allocation7 + $0x860] sm:$0xff]
    %v1176 = vld [vmem:[#allocation7 + $0x868] sm:$0xff]
    %v1177 = vld [vmem:[#allocation7 + $0x8b0] sm:$0xff]
    %v1178 = vld [vmem:[#allocation7 + $0x8b8] sm:$0xff]
    %v1179 = vld [vmem:[#allocation7 + $0x8c0] sm:$0xff]
    %v1180 = vld [vmem:[#allocation7 + $0x8c8] sm:$0xff]
    %v1181 = vld [vmem:[#allocation7 + $0x910] sm:$0xff]
    %v1182 = vld [vmem:[#allocation7 + $0x918] sm:$0xff]
    %v1183 = vld [vmem:[#allocation7 + $0x920] sm:$0xff]
    %v1184 = vld [vmem:[#allocation7 + $0x928] sm:$0xff]
    %v1185 = vld [vmem:[#allocation7 + $0x970] sm:$0xff]
    %v1186 = vld [vmem:[#allocation7 + $0x978] sm:$0xff]
    %v1187 = vld [vmem:[#allocation7 + $0x980] sm:$0xff]
    %v1188 = vld [vmem:[#allocation7 + $0x988] sm:$0xff]
    %v1189 = vld [vmem:[#allocation7 + $0x9d0] sm:$0xff]
    %v1190 = vld [vmem:[#allocation7 + $0x9d8] sm:$0xff]
    %v1191 = vld [vmem:[#allocation7 + $0x9e0] sm:$0xff]
    %v1192 = vld [vmem:[#allocation7 + $0x9e8] sm:$0xff]
    %v1193 = vld [vmem:[#allocation7 + $0xa30] sm:$0xff]
    %v1194 = vld [vmem:[#allocation7 + $0xa38] sm:$0xff]
    %v1195 = vld [vmem:[#allocation7 + $0xa40] sm:$0xff]
    %v1196 = vld [vmem:[#allocation7 + $0xa48] sm:$0xff]
    %v1197 = vld [vmem:[#allocation7 + $0xa90] sm:$0xff]
    %v1198 = vld [vmem:[#allocation7 + $0xa98] sm:$0xff]
    %v1199 = vld [vmem:[#allocation7 + $0xaa0] sm:$0xff]
    %v1200 = vld [vmem:[#allocation7 + $0xaa8] sm:$0xff]
    %v1201 = vld [vmem:[#allocation7 + $0xaf0] sm:$0xff]
    %v1202 = vld [vmem:[#allocation7 + $0xaf8] sm:$0xff]
    %v1203 = vld [vmem:[#allocation7 + $0xb00] sm:$0xff]
    %v1204 = vld [vmem:[#allocation7 + $0xb08] sm:$0xff]
    %v1205 = vld [vmem:[#allocation7 + $0xb50] sm:$0xff]
    %v1206 = vld [vmem:[#allocation7 + $0xb58] sm:$0xff]
    %v1207 = vld [vmem:[#allocation7 + $0xb60] sm:$0xff]
    %v1208 = vld [vmem:[#allocation7 + $0xb68] sm:$0xff]
    %v1209 = vld [vmem:[#allocation7 + $0xbb0] sm:$0xff]
    %v1210 = vld [vmem:[#allocation7 + $0xbb8] sm:$0xff]
    %v1211 = vld [vmem:[#allocation7 + $0xbc0] sm:$0xff]
    %v1212 = vld [vmem:[#allocation7 + $0xbc8] sm:$0xff]
    %v1213 = vld [vmem:[#allocation7 + $0xc10] sm:$0xff]
    %v1214 = vld [vmem:[#allocation7 + $0xc18] sm:$0xff]
    %v1215 = vld [vmem:[#allocation7 + $0xc20] sm:$0xff]
    %v1216 = vld [vmem:[#allocation7 + $0xc28] sm:$0xff]
    %v1217 = vld [vmem:[#allocation7 + $0xc70] sm:$0xff]
    %v1218 = vld [vmem:[#allocation7 + $0xc78] sm:$0xff]
    %v1219 = vld [vmem:[#allocation7 + $0xc80] sm:$0xff]
    %v1220 = vld [vmem:[#allocation7 + $0xc88] sm:$0xff]
    %v1221 = vld [vmem:[#allocation7 + $0xcd0] sm:$0xff]
    %v1222 = vld [vmem:[#allocation7 + $0xcd8] sm:$0xff]
    %v1223 = vld [vmem:[#allocation7 + $0xce0] sm:$0xff]
    %v1224 = vld [vmem:[#allocation7 + $0xce8] sm:$0xff]
    %v1225 = vld [vmem:[#allocation7 + $0xd30] sm:$0xff]
    %v1226 = vld [vmem:[#allocation7 + $0xd38] sm:$0xff]
    %v1227 = vld [vmem:[#allocation7 + $0xd40] sm:$0xff]
    %v1228 = vld [vmem:[#allocation7 + $0xd48] sm:$0xff]
    %v1229 = vld [vmem:[#allocation7 + $0xd90] sm:$0xff]
    %v1230 = vld [vmem:[#allocation7 + $0xd98] sm:$0xff]
    %v1231 = vld [vmem:[#allocation7 + $0xda0] sm:$0xff]
    %v1232 = vld [vmem:[#allocation7 + $0xda8] sm:$0xff]
    %v1233 = vld [vmem:[#allocation7 + $0xdf0] sm:$0xff]
    %v1234 = vld [vmem:[#allocation7 + $0xdf8] sm:$0xff]
    %v1235 = vld [vmem:[#allocation7 + $0xe00] sm:$0xff]
    %v1236 = vld [vmem:[#allocation7 + $0xe08] sm:$0xff]
    %v1237 = vld [vmem:[#allocation7 + $0xe50] sm:$0xff]
    %v1238 = vld [vmem:[#allocation7 + $0xe58] sm:$0xff]
    %v1239 = vld [vmem:[#allocation7 + $0xe60] sm:$0xff]
    %v1240 = vld [vmem:[#allocation7 + $0xe68] sm:$0xff]
    %v1241 = vld [vmem:[#allocation7 + $0xeb0] sm:$0xff]
    %v1242 = vld [vmem:[#allocation7 + $0xeb8] sm:$0xff]
    %v1243 = vld [vmem:[#allocation7 + $0xec0] sm:$0xff]
    %v1244 = vld [vmem:[#allocation7 + $0xec8] sm:$0xff]
    %v1245 = vld [vmem:[#allocation7 + $0xf10] sm:$0xff]
    %v1246 = vld [vmem:[#allocation7 + $0xf18] sm:$0xff]
    %v1247 = vld [vmem:[#allocation7 + $0xf20] sm:$0xff]
    %v1248 = vld [vmem:[#allocation7 + $0xf28] sm:$0xff]
    %v1249 = vld [vmem:[#allocation7 + $0xf70] sm:$0xff]
    %v1250 = vld [vmem:[#allocation7 + $0xf78] sm:$0xff]
    %v1251 = vld [vmem:[#allocation7 + $0xf80] sm:$0xff]
    %v1252 = vld [vmem:[#allocation7 + $0xf88] sm:$0xff]
    %v1253 = vld [vmem:[#allocation7 + $0xfd0] sm:$0xff]
    %v1254 = vld [vmem:[#allocation7 + $0xfd8] sm:$0xff]
    %v1255 = vld [vmem:[#allocation7 + $0xfe0] sm:$0xff]
    %v1256 = vld [vmem:[#allocation7 + $0xfe8] sm:$0xff]
    %v1257 = vld [vmem:[#allocation7 + $0x1030] sm:$0xff]
    %v1258 = vld [vmem:[#allocation7 + $0x1038] sm:$0xff]
    %v1259 = vld [vmem:[#allocation7 + $0x1040] sm:$0xff]
    %v1260 = vld [vmem:[#allocation7 + $0x1048] sm:$0xff]
    %v1261 = vld [vmem:[#allocation7 + $0x1090] sm:$0xff]
    %v1262 = vld [vmem:[#allocation7 + $0x1098] sm:$0xff]
    %v1263 = vld [vmem:[#allocation7 + $0x10a0] sm:$0xff]
    %v1264 = vld [vmem:[#allocation7 + $0x10a8] sm:$0xff]
    %v1265 = vld [vmem:[#allocation7 + $0x10f0] sm:$0xff]
    %v1266 = vld [vmem:[#allocation7 + $0x10f8] sm:$0xff]
    %v1267 = vld [vmem:[#allocation7 + $0x1100] sm:$0xff]
    %v1268 = vld [vmem:[#allocation7 + $0x1108] sm:$0xff]
    %v1269 = vld [vmem:[#allocation7 + $0x1150] sm:$0xff]
    %v1270 = vld [vmem:[#allocation7 + $0x1158] sm:$0xff]
    %v1271 = vld [vmem:[#allocation7 + $0x1160] sm:$0xff]
    %v1272 = vld [vmem:[#allocation7 + $0x1168] sm:$0xff]
    %v1273 = vld [vmem:[#allocation7 + $0x11b0] sm:$0xff]
    %v1274 = vld [vmem:[#allocation7 + $0x11b8] sm:$0xff]
    %v1275 = vld [vmem:[#allocation7 + $0x11c0] sm:$0xff]
    %v1276 = vld [vmem:[#allocation7 + $0x11c8] sm:$0xff]
    %v1277 = vld [vmem:[#allocation7 + $0x1210] sm:$0xff]
    %v1278 = vld [vmem:[#allocation7 + $0x1218] sm:$0xff]
    %v1279 = vld [vmem:[#allocation7 + $0x1220] sm:$0xff]
    %v1280 = vld [vmem:[#allocation7 + $0x1228] sm:$0xff]
    %v1281 = vld [vmem:[#allocation7 + $0x1270] sm:$0xff]
    %v1282 = vld [vmem:[#allocation7 + $0x1278] sm:$0xff]
    %v1283 = vld [vmem:[#allocation7 + $0x1280] sm:$0xff]
    %v1284 = vld [vmem:[#allocation7 + $0x1288] sm:$0xff]
    %v1285 = vld [vmem:[#allocation7 + $0x12d0] sm:$0xff]
    %v1286 = vld [vmem:[#allocation7 + $0x12d8] sm:$0xff]
    %v1287 = vld [vmem:[#allocation7 + $0x12e0] sm:$0xff]
    %v1288 = vld [vmem:[#allocation7 + $0x12e8] sm:$0xff]
    %v1289 = vld [vmem:[#allocation7 + $0x1330] sm:$0xff]
    %v1290 = vld [vmem:[#allocation7 + $0x1338] sm:$0xff]
    %v1291 = vld [vmem:[#allocation7 + $0x1340] sm:$0xff]
    %v1292 = vld [vmem:[#allocation7 + $0x1348] sm:$0xff]
    %v1293 = vld [vmem:[#allocation7 + $0x1390] sm:$0xff]
    %v1294 = vld [vmem:[#allocation7 + $0x1398] sm:$0xff]
    %v1295 = vld [vmem:[#allocation7 + $0x13a0] sm:$0xff]
    %v1296 = vld [vmem:[#allocation7 + $0x13a8] sm:$0xff]
    %v1297 = vld [vmem:[#allocation7 + $0x13f0] sm:$0xff]
    %v1298 = vld [vmem:[#allocation7 + $0x13f8] sm:$0xff]
    %v1299 = vld [vmem:[#allocation7 + $0x1400] sm:$0xff]
    %v1300 = vld [vmem:[#allocation7 + $0x1408] sm:$0xff]
    %v1301 = vld [vmem:[#allocation7 + $0x1450] sm:$0xff]
    %v1302 = vld [vmem:[#allocation7 + $0x1458] sm:$0xff]
    %v1303 = vld [vmem:[#allocation7 + $0x1460] sm:$0xff]
    %v1304 = vld [vmem:[#allocation7 + $0x1468] sm:$0xff]
    %v1305 = vld [vmem:[#allocation7 + $0x14b0] sm:$0xff]
    %v1306 = vld [vmem:[#allocation7 + $0x14b8] sm:$0xff]
    %v1307 = vld [vmem:[#allocation7 + $0x14c0] sm:$0xff]
    %v1308 = vld [vmem:[#allocation7 + $0x14c8] sm:$0xff]
    %v1309 = vld [vmem:[#allocation7 + $0x1510] sm:$0xff]
    %v1310 = vld [vmem:[#allocation7 + $0x1518] sm:$0xff]
    %v1311 = vld [vmem:[#allocation7 + $0x1520] sm:$0xff]
    %v1312 = vld [vmem:[#allocation7 + $0x1528] sm:$0xff]
    %v1313 = vld [vmem:[#allocation7 + $0x1570] sm:$0xff]
    %v1314 = vld [vmem:[#allocation7 + $0x1578] sm:$0xff]
    %v1315 = vld [vmem:[#allocation7 + $0x1580] sm:$0xff]
    %v1316 = vld [vmem:[#allocation7 + $0x1588] sm:$0xff]
    %v1317 = vld [vmem:[#allocation7 + $0x15d0] sm:$0xff]
    %v1318 = vld [vmem:[#allocation7 + $0x15d8] sm:$0xff]
    %v1319 = vld [vmem:[#allocation7 + $0x15e0] sm:$0xff]
    %v1320 = vld [vmem:[#allocation7 + $0x15e8] sm:$0xff]
    %v1321 = vld [vmem:[#allocation7 + $0x1630] sm:$0xff]
    %v1322 = vld [vmem:[#allocation7 + $0x1638] sm:$0xff]
    %v1323 = vld [vmem:[#allocation7 + $0x1640] sm:$0xff]
    %v1324 = vld [vmem:[#allocation7 + $0x1648] sm:$0xff]
    %v1325 = vld [vmem:[#allocation7 + $0x1690] sm:$0xff]
    %v1326 = vld [vmem:[#allocation7 + $0x1698] sm:$0xff]
    %v1327 = vld [vmem:[#allocation7 + $0x16a0] sm:$0xff]
    %v1328 = vld [vmem:[#allocation7 + $0x16a8] sm:$0xff]
    %v1329 = vld [vmem:[#allocation7 + $0x16f0] sm:$0xff]
    %v1330 = vld [vmem:[#allocation7 + $0x16f8] sm:$0xff]
    %v1331 = vld [vmem:[#allocation7 + $0x1700] sm:$0xff]
    %v1332 = vld [vmem:[#allocation7 + $0x1708] sm:$0xff]
    %v1333 = vld [vmem:[#allocation7 + $0x1750] sm:$0xff]
    %v1334 = vld [vmem:[#allocation7 + $0x1758] sm:$0xff]
    %v1335 = vld [vmem:[#allocation7 + $0x1760] sm:$0xff]
    %v1336 = vld [vmem:[#allocation7 + $0x1768] sm:$0xff]
    %v1337 = vld [vmem:[#allocation7 + $0x17b0] sm:$0xff]
    %v1338 = vld [vmem:[#allocation7 + $0x17b8] sm:$0xff]
    %v1339 = vld [vmem:[#allocation7 + $0x17c0] sm:$0xff]
    %v1340 = vld [vmem:[#allocation7 + $0x17c8] sm:$0xff]
    %v1341 = vld [vmem:[#allocation8 + $0x4] sm:$0xff]
    %v1343 = vperm.slane %v1341, 0
    %v1344 = vperm.slane %v1341, 1
    %v1345 = vperm.slane %v1341, 2
    %v1346 = vperm.slane %v1341, 3
    %v1347 = vperm.slane %v1341, 4
    %v1348 = vperm.slane %v1341, 5
    %v1349 = vperm.slane %v1341, 6
    %v1350 = vperm.slane %v1341, 7
    %v1367 = vunpack.c.l.b16 %v1077
    %v1368 = vunpack.c.h.b16 %v1077
    %v1369 = vunpack.c.l.b16 %v1078
    %v1370 = vunpack.c.h.b16 %v1078
    %v1371 = vunpack.c.l.b16 %v1079
    %v1372 = vunpack.c.h.b16 %v1079
    %v1373 = vunpack.c.l.b16 %v1080
    %v1374 = vunpack.c.h.b16 %v1080
    %v1375 = vunpack.c.l.b16 %v1081
    %v1376 = vunpack.c.h.b16 %v1081
    %v1377 = vunpack.c.l.b16 %v1082
    %v1378 = vunpack.c.h.b16 %v1082
    %v1379 = vunpack.c.l.b16 %v1083
    %v1380 = vunpack.c.h.b16 %v1083
    %v1381 = vunpack.c.l.b16 %v1084
    %v1382 = vunpack.c.h.b16 %v1084
    %v1383 = vpack.c.b16 %v1371, %v1367
    %v1384 = vpack.c.b16 %v1372, %v1368
    %v1385 = vpack.c.b16 %v1373, %v1369
    %v1386 = vpack.c.b16 %v1374, %v1370
    %v1387 = vpack.c.b16 %v1379, %v1375
    %v1388 = vpack.c.b16 %v1380, %v1376
    %v1389 = vpack.c.b16 %v1381, %v1377
    %v1390 = vpack.c.b16 %v1382, %v1378
    %v1655 = vunpack.c.l.b16 %v1085
    %v1656 = vunpack.c.h.b16 %v1085
    %v1657 = vunpack.c.l.b16 %v1086
    %v1658 = vunpack.c.h.b16 %v1086
    %v1659 = vunpack.c.l.b16 %v1087
    %v1660 = vunpack.c.h.b16 %v1087
    %v1661 = vunpack.c.l.b16 %v1088
    %v1662 = vunpack.c.h.b16 %v1088
    %v1663 = vunpack.c.l.b16 %v1089
    %v1664 = vunpack.c.h.b16 %v1089
    %v1665 = vunpack.c.l.b16 %v1090
    %v1666 = vunpack.c.h.b16 %v1090
    %v1667 = vunpack.c.l.b16 %v1091
    %v1668 = vunpack.c.h.b16 %v1091
    %v1669 = vunpack.c.l.b16 %v1092
    %v1670 = vunpack.c.h.b16 %v1092
    %v1671 = vunpack.c.l.b16 %v1093
    %v1672 = vunpack.c.h.b16 %v1093
    %v1673 = vunpack.c.l.b16 %v1094
    %v1674 = vunpack.c.h.b16 %v1094
    %v1675 = vunpack.c.l.b16 %v1095
    %v1676 = vunpack.c.h.b16 %v1095
    %v1677 = vunpack.c.l.b16 %v1096
    %v1678 = vunpack.c.h.b16 %v1096
    %v1679 = vunpack.c.l.b16 %v1097
    %v1680 = vunpack.c.h.b16 %v1097
    %v1681 = vunpack.c.l.b16 %v1098
    %v1682 = vunpack.c.h.b16 %v1098
    %v1683 = vunpack.c.l.b16 %v1099
    %v1684 = vunpack.c.h.b16 %v1099
    %v1685 = vunpack.c.l.b16 %v1100
    %v1686 = vunpack.c.h.b16 %v1100
    %v1687 = vunpack.c.l.b16 %v1101
    %v1688 = vunpack.c.h.b16 %v1101
    %v1689 = vunpack.c.l.b16 %v1102
    %v1690 = vunpack.c.h.b16 %v1102
    %v1691 = vunpack.c.l.b16 %v1103
    %v1692 = vunpack.c.h.b16 %v1103
    %v1693 = vunpack.c.l.b16 %v1104
    %v1694 = vunpack.c.h.b16 %v1104
    %v1695 = vunpack.c.l.b16 %v1105
    %v1696 = vunpack.c.h.b16 %v1105
    %v1697 = vunpack.c.l.b16 %v1106
    %v1698 = vunpack.c.h.b16 %v1106
    %v1699 = vunpack.c.l.b16 %v1107
    %v1700 = vunpack.c.h.b16 %v1107
    %v1701 = vunpack.c.l.b16 %v1108
    %v1702 = vunpack.c.h.b16 %v1108
    %v1703 = vunpack.c.l.b16 %v1109
    %v1704 = vunpack.c.h.b16 %v1109
    %v1705 = vunpack.c.l.b16 %v1110
    %v1706 = vunpack.c.h.b16 %v1110
    %v1707 = vunpack.c.l.b16 %v1111
    %v1708 = vunpack.c.h.b16 %v1111
    %v1709 = vunpack.c.l.b16 %v1112
    %v1710 = vunpack.c.h.b16 %v1112
    %v1711 = vunpack.c.l.b16 %v1113
    %v1712 = vunpack.c.h.b16 %v1113
    %v1713 = vunpack.c.l.b16 %v1114
    %v1714 = vunpack.c.h.b16 %v1114
    %v1715 = vunpack.c.l.b16 %v1115
    %v1716 = vunpack.c.h.b16 %v1115
    %v1717 = vunpack.c.l.b16 %v1116
    %v1718 = vunpack.c.h.b16 %v1116
    %v1719 = vunpack.c.l.b16 %v1117
    %v1720 = vunpack.c.h.b16 %v1117
    %v1721 = vunpack.c.l.b16 %v1118
    %v1722 = vunpack.c.h.b16 %v1118
    %v1723 = vunpack.c.l.b16 %v1119
    %v1724 = vunpack.c.h.b16 %v1119
    %v1725 = vunpack.c.l.b16 %v1120
    %v1726 = vunpack.c.h.b16 %v1120
    %v1727 = vunpack.c.l.b16 %v1121
    %v1728 = vunpack.c.h.b16 %v1121
    %v1729 = vunpack.c.l.b16 %v1122
    %v1730 = vunpack.c.h.b16 %v1122
    %v1731 = vunpack.c.l.b16 %v1123
    %v1732 = vunpack.c.h.b16 %v1123
    %v1733 = vunpack.c.l.b16 %v1124
    %v1734 = vunpack.c.h.b16 %v1124
    %v1735 = vunpack.c.l.b16 %v1125
    %v1736 = vunpack.c.h.b16 %v1125
    %v1737 = vunpack.c.l.b16 %v1126
    %v1738 = vunpack.c.h.b16 %v1126
    %v1739 = vunpack.c.l.b16 %v1127
    %v1740 = vunpack.c.h.b16 %v1127
    %v1741 = vunpack.c.l.b16 %v1128
    %v1742 = vunpack.c.h.b16 %v1128
    %v1743 = vunpack.c.l.b16 %v1129
    %v1744 = vunpack.c.h.b16 %v1129
    %v1745 = vunpack.c.l.b16 %v1130
    %v1746 = vunpack.c.h.b16 %v1130
    %v1747 = vunpack.c.l.b16 %v1131
    %v1748 = vunpack.c.h.b16 %v1131
    %v1749 = vunpack.c.l.b16 %v1132
    %v1750 = vunpack.c.h.b16 %v1132
    %v1751 = vunpack.c.l.b16 %v1133
    %v1752 = vunpack.c.h.b16 %v1133
    %v1753 = vunpack.c.l.b16 %v1134
    %v1754 = vunpack.c.h.b16 %v1134
    %v1755 = vunpack.c.l.b16 %v1135
    %v1756 = vunpack.c.h.b16 %v1135
    %v1757 = vunpack.c.l.b16 %v1136
    %v1758 = vunpack.c.h.b16 %v1136
    %v1759 = vunpack.c.l.b16 %v1137
    %v1760 = vunpack.c.h.b16 %v1137
    %v1761 = vunpack.c.l.b16 %v1138
    %v1762 = vunpack.c.h.b16 %v1138
    %v1763 = vunpack.c.l.b16 %v1139
    %v1764 = vunpack.c.h.b16 %v1139
    %v1765 = vunpack.c.l.b16 %v1140
    %v1766 = vunpack.c.h.b16 %v1140
    %v1767 = vunpack.c.l.b16 %v1141
    %v1768 = vunpack.c.h.b16 %v1141
    %v1769 = vunpack.c.l.b16 %v1142
    %v1770 = vunpack.c.h.b16 %v1142
    %v1771 = vunpack.c.l.b16 %v1143
    %v1772 = vunpack.c.h.b16 %v1143
    %v1773 = vunpack.c.l.b16 %v1144
    %v1774 = vunpack.c.h.b16 %v1144
    %v1775 = vunpack.c.l.b16 %v1145
    %v1776 = vunpack.c.h.b16 %v1145
    %v1777 = vunpack.c.l.b16 %v1146
    %v1778 = vunpack.c.h.b16 %v1146
    %v1779 = vunpack.c.l.b16 %v1147
    %v1780 = vunpack.c.h.b16 %v1147
    %v1781 = vunpack.c.l.b16 %v1148
    %v1782 = vunpack.c.h.b16 %v1148
    %v1783 = vunpack.c.l.b16 %v1149
    %v1784 = vunpack.c.h.b16 %v1149
    %v1785 = vunpack.c.l.b16 %v1150
    %v1786 = vunpack.c.h.b16 %v1150
    %v1787 = vunpack.c.l.b16 %v1151
    %v1788 = vunpack.c.h.b16 %v1151
    %v1789 = vunpack.c.l.b16 %v1152
    %v1790 = vunpack.c.h.b16 %v1152
    %v1791 = vunpack.c.l.b16 %v1153
    %v1792 = vunpack.c.h.b16 %v1153
    %v1793 = vunpack.c.l.b16 %v1154
    %v1794 = vunpack.c.h.b16 %v1154
    %v1795 = vunpack.c.l.b16 %v1155
    %v1796 = vunpack.c.h.b16 %v1155
    %v1797 = vunpack.c.l.b16 %v1156
    %v1798 = vunpack.c.h.b16 %v1156
    %v1799 = vunpack.c.l.b16 %v1157
    %v1800 = vunpack.c.h.b16 %v1157
    %v1801 = vunpack.c.l.b16 %v1158
    %v1802 = vunpack.c.h.b16 %v1158
    %v1803 = vunpack.c.l.b16 %v1159
    %v1804 = vunpack.c.h.b16 %v1159
    %v1805 = vunpack.c.l.b16 %v1160
    %v1806 = vunpack.c.h.b16 %v1160
    %v1807 = vunpack.c.l.b16 %v1161
    %v1808 = vunpack.c.h.b16 %v1161
    %v1809 = vunpack.c.l.b16 %v1162
    %v1810 = vunpack.c.h.b16 %v1162
    %v1811 = vunpack.c.l.b16 %v1163
    %v1812 = vunpack.c.h.b16 %v1163
    %v1813 = vunpack.c.l.b16 %v1164
    %v1814 = vunpack.c.h.b16 %v1164
    %v1815 = vunpack.c.l.b16 %v1165
    %v1816 = vunpack.c.h.b16 %v1165
    %v1817 = vunpack.c.l.b16 %v1166
    %v1818 = vunpack.c.h.b16 %v1166
    %v1819 = vunpack.c.l.b16 %v1167
    %v1820 = vunpack.c.h.b16 %v1167
    %v1821 = vunpack.c.l.b16 %v1168
    %v1822 = vunpack.c.h.b16 %v1168
    %v1823 = vunpack.c.l.b16 %v1169
    %v1824 = vunpack.c.h.b16 %v1169
    %v1825 = vunpack.c.l.b16 %v1170
    %v1826 = vunpack.c.h.b16 %v1170
    %v1827 = vunpack.c.l.b16 %v1171
    %v1828 = vunpack.c.h.b16 %v1171
    %v1829 = vunpack.c.l.b16 %v1172
    %v1830 = vunpack.c.h.b16 %v1172
    %v1831 = vunpack.c.l.b16 %v1173
    %v1832 = vunpack.c.h.b16 %v1173
    %v1833 = vunpack.c.l.b16 %v1174
    %v1834 = vunpack.c.h.b16 %v1174
    %v1835 = vunpack.c.l.b16 %v1175
    %v1836 = vunpack.c.h.b16 %v1175
    %v1837 = vunpack.c.l.b16 %v1176
    %v1838 = vunpack.c.h.b16 %v1176
    %v1839 = vunpack.c.l.b16 %v1177
    %v1840 = vunpack.c.h.b16 %v1177
    %v1841 = vunpack.c.l.b16 %v1178
    %v1842 = vunpack.c.h.b16 %v1178
    %v1843 = vunpack.c.l.b16 %v1179
    %v1844 = vunpack.c.h.b16 %v1179
    %v1845 = vunpack.c.l.b16 %v1180
    %v1846 = vunpack.c.h.b16 %v1180
    %v1847 = vunpack.c.l.b16 %v1181
    %v1848 = vunpack.c.h.b16 %v1181
    %v1849 = vunpack.c.l.b16 %v1182
    %v1850 = vunpack.c.h.b16 %v1182
    %v1851 = vunpack.c.l.b16 %v1183
    %v1852 = vunpack.c.h.b16 %v1183
    %v1853 = vunpack.c.l.b16 %v1184
    %v1854 = vunpack.c.h.b16 %v1184
    %v1855 = vunpack.c.l.b16 %v1185
    %v1856 = vunpack.c.h.b16 %v1185
    %v1857 = vunpack.c.l.b16 %v1186
    %v1858 = vunpack.c.h.b16 %v1186
    %v1859 = vunpack.c.l.b16 %v1187
    %v1860 = vunpack.c.h.b16 %v1187
    %v1861 = vunpack.c.l.b16 %v1188
    %v1862 = vunpack.c.h.b16 %v1188
    %v1863 = vunpack.c.l.b16 %v1189
    %v1864 = vunpack.c.h.b16 %v1189
    %v1865 = vunpack.c.l.b16 %v1190
    %v1866 = vunpack.c.h.b16 %v1190
    %v1867 = vunpack.c.l.b16 %v1191
    %v1868 = vunpack.c.h.b16 %v1191
    %v1869 = vunpack.c.l.b16 %v1192
    %v1870 = vunpack.c.h.b16 %v1192
    %v1871 = vunpack.c.l.b16 %v1193
    %v1872 = vunpack.c.h.b16 %v1193
    %v1873 = vunpack.c.l.b16 %v1194
    %v1874 = vunpack.c.h.b16 %v1194
    %v1875 = vunpack.c.l.b16 %v1195
    %v1876 = vunpack.c.h.b16 %v1195
    %v1877 = vunpack.c.l.b16 %v1196
    %v1878 = vunpack.c.h.b16 %v1196
    %v1879 = vunpack.c.l.b16 %v1197
    %v1880 = vunpack.c.h.b16 %v1197
    %v1881 = vunpack.c.l.b16 %v1198
    %v1882 = vunpack.c.h.b16 %v1198
    %v1883 = vunpack.c.l.b16 %v1199
    %v1884 = vunpack.c.h.b16 %v1199
    %v1885 = vunpack.c.l.b16 %v1200
    %v1886 = vunpack.c.h.b16 %v1200
    %v1887 = vunpack.c.l.b16 %v1201
    %v1888 = vunpack.c.h.b16 %v1201
    %v1889 = vunpack.c.l.b16 %v1202
    %v1890 = vunpack.c.h.b16 %v1202
    %v1891 = vunpack.c.l.b16 %v1203
    %v1892 = vunpack.c.h.b16 %v1203
    %v1893 = vunpack.c.l.b16 %v1204
    %v1894 = vunpack.c.h.b16 %v1204
    %v1895 = vunpack.c.l.b16 %v1205
    %v1896 = vunpack.c.h.b16 %v1205
    %v1897 = vunpack.c.l.b16 %v1206
    %v1898 = vunpack.c.h.b16 %v1206
    %v1899 = vunpack.c.l.b16 %v1207
    %v1900 = vunpack.c.h.b16 %v1207
    %v1901 = vunpack.c.l.b16 %v1208
    %v1902 = vunpack.c.h.b16 %v1208
    %v1903 = vunpack.c.l.b16 %v1209
    %v1904 = vunpack.c.h.b16 %v1209
    %v1905 = vunpack.c.l.b16 %v1210
    %v1906 = vunpack.c.h.b16 %v1210
    %v1907 = vunpack.c.l.b16 %v1211
    %v1908 = vunpack.c.h.b16 %v1211
    %v1909 = vunpack.c.l.b16 %v1212
    %v1910 = vunpack.c.h.b16 %v1212
    %v1911 = vunpack.c.l.b16 %v1213
    %v1912 = vunpack.c.h.b16 %v1213
    %v1913 = vunpack.c.l.b16 %v1214
    %v1914 = vunpack.c.h.b16 %v1214
    %v1915 = vunpack.c.l.b16 %v1215
    %v1916 = vunpack.c.h.b16 %v1215
    %v1917 = vunpack.c.l.b16 %v1216
    %v1918 = vunpack.c.h.b16 %v1216
    %v1919 = vunpack.c.l.b16 %v1217
    %v1920 = vunpack.c.h.b16 %v1217
    %v1921 = vunpack.c.l.b16 %v1218
    %v1922 = vunpack.c.h.b16 %v1218
    %v1923 = vunpack.c.l.b16 %v1219
    %v1924 = vunpack.c.h.b16 %v1219
    %v1925 = vunpack.c.l.b16 %v1220
    %v1926 = vunpack.c.h.b16 %v1220
    %v1927 = vunpack.c.l.b16 %v1221
    %v1928 = vunpack.c.h.b16 %v1221
    %v1929 = vunpack.c.l.b16 %v1222
    %v1930 = vunpack.c.h.b16 %v1222
    %v1931 = vunpack.c.l.b16 %v1223
    %v1932 = vunpack.c.h.b16 %v1223
    %v1933 = vunpack.c.l.b16 %v1224
    %v1934 = vunpack.c.h.b16 %v1224
    %v1935 = vunpack.c.l.b16 %v1225
    %v1936 = vunpack.c.h.b16 %v1225
    %v1937 = vunpack.c.l.b16 %v1226
    %v1938 = vunpack.c.h.b16 %v1226
    %v1939 = vunpack.c.l.b16 %v1227
    %v1940 = vunpack.c.h.b16 %v1227
    %v1941 = vunpack.c.l.b16 %v1228
    %v1942 = vunpack.c.h.b16 %v1228
    %v1943 = vunpack.c.l.b16 %v1229
    %v1944 = vunpack.c.h.b16 %v1229
    %v1945 = vunpack.c.l.b16 %v1230
    %v1946 = vunpack.c.h.b16 %v1230
    %v1947 = vunpack.c.l.b16 %v1231
    %v1948 = vunpack.c.h.b16 %v1231
    %v1949 = vunpack.c.l.b16 %v1232
    %v1950 = vunpack.c.h.b16 %v1232
    %v1951 = vunpack.c.l.b16 %v1233
    %v1952 = vunpack.c.h.b16 %v1233
    %v1953 = vunpack.c.l.b16 %v1234
    %v1954 = vunpack.c.h.b16 %v1234
    %v1955 = vunpack.c.l.b16 %v1235
    %v1956 = vunpack.c.h.b16 %v1235
    %v1957 = vunpack.c.l.b16 %v1236
    %v1958 = vunpack.c.h.b16 %v1236
    %v1959 = vunpack.c.l.b16 %v1237
    %v1960 = vunpack.c.h.b16 %v1237
    %v1961 = vunpack.c.l.b16 %v1238
    %v1962 = vunpack.c.h.b16 %v1238
    %v1963 = vunpack.c.l.b16 %v1239
    %v1964 = vunpack.c.h.b16 %v1239
    %v1965 = vunpack.c.l.b16 %v1240
    %v1966 = vunpack.c.h.b16 %v1240
    %v1967 = vunpack.c.l.b16 %v1241
    %v1968 = vunpack.c.h.b16 %v1241
    %v1969 = vunpack.c.l.b16 %v1242
    %v1970 = vunpack.c.h.b16 %v1242
    %v1971 = vunpack.c.l.b16 %v1243
    %v1972 = vunpack.c.h.b16 %v1243
    %v1973 = vunpack.c.l.b16 %v1244
    %v1974 = vunpack.c.h.b16 %v1244
    %v1975 = vunpack.c.l.b16 %v1245
    %v1976 = vunpack.c.h.b16 %v1245
    %v1977 = vunpack.c.l.b16 %v1246
    %v1978 = vunpack.c.h.b16 %v1246
    %v1979 = vunpack.c.l.b16 %v1247
    %v1980 = vunpack.c.h.b16 %v1247
    %v1981 = vunpack.c.l.b16 %v1248
    %v1982 = vunpack.c.h.b16 %v1248
    %v1983 = vunpack.c.l.b16 %v1249
    %v1984 = vunpack.c.h.b16 %v1249
    %v1985 = vunpack.c.l.b16 %v1250
    %v1986 = vunpack.c.h.b16 %v1250
    %v1987 = vunpack.c.l.b16 %v1251
    %v1988 = vunpack.c.h.b16 %v1251
    %v1989 = vunpack.c.l.b16 %v1252
    %v1990 = vunpack.c.h.b16 %v1252
    %v1991 = vunpack.c.l.b16 %v1253
    %v1992 = vunpack.c.h.b16 %v1253
    %v1993 = vunpack.c.l.b16 %v1254
    %v1994 = vunpack.c.h.b16 %v1254
    %v1995 = vunpack.c.l.b16 %v1255
    %v1996 = vunpack.c.h.b16 %v1255
    %v1997 = vunpack.c.l.b16 %v1256
    %v1998 = vunpack.c.h.b16 %v1256
    %v1999 = vunpack.c.l.b16 %v1257
    %v2000 = vunpack.c.h.b16 %v1257
    %v2001 = vunpack.c.l.b16 %v1258
    %v2002 = vunpack.c.h.b16 %v1258
    %v2003 = vunpack.c.l.b16 %v1259
    %v2004 = vunpack.c.h.b16 %v1259
    %v2005 = vunpack.c.l.b16 %v1260
    %v2006 = vunpack.c.h.b16 %v1260
    %v2007 = vunpack.c.l.b16 %v1261
    %v2008 = vunpack.c.h.b16 %v1261
    %v2009 = vunpack.c.l.b16 %v1262
    %v2010 = vunpack.c.h.b16 %v1262
    %v2011 = vunpack.c.l.b16 %v1263
    %v2012 = vunpack.c.h.b16 %v1263
    %v2013 = vunpack.c.l.b16 %v1264
    %v2014 = vunpack.c.h.b16 %v1264
    %v2015 = vunpack.c.l.b16 %v1265
    %v2016 = vunpack.c.h.b16 %v1265
    %v2017 = vunpack.c.l.b16 %v1266
    %v2018 = vunpack.c.h.b16 %v1266
    %v2019 = vunpack.c.l.b16 %v1267
    %v2020 = vunpack.c.h.b16 %v1267
    %v2021 = vunpack.c.l.b16 %v1268
    %v2022 = vunpack.c.h.b16 %v1268
    %v2023 = vunpack.c.l.b16 %v1269
    %v2024 = vunpack.c.h.b16 %v1269
    %v2025 = vunpack.c.l.b16 %v1270
    %v2026 = vunpack.c.h.b16 %v1270
    %v2027 = vunpack.c.l.b16 %v1271
    %v2028 = vunpack.c.h.b16 %v1271
    %v2029 = vunpack.c.l.b16 %v1272
    %v2030 = vunpack.c.h.b16 %v1272
    %v2031 = vunpack.c.l.b16 %v1273
    %v2032 = vunpack.c.h.b16 %v1273
    %v2033 = vunpack.c.l.b16 %v1274
    %v2034 = vunpack.c.h.b16 %v1274
    %v2035 = vunpack.c.l.b16 %v1275
    %v2036 = vunpack.c.h.b16 %v1275
    %v2037 = vunpack.c.l.b16 %v1276
    %v2038 = vunpack.c.h.b16 %v1276
    %v2039 = vunpack.c.l.b16 %v1277
    %v2040 = vunpack.c.h.b16 %v1277
    %v2041 = vunpack.c.l.b16 %v1278
    %v2042 = vunpack.c.h.b16 %v1278
    %v2043 = vunpack.c.l.b16 %v1279
    %v2044 = vunpack.c.h.b16 %v1279
    %v2045 = vunpack.c.l.b16 %v1280
    %v2046 = vunpack.c.h.b16 %v1280
    %v2047 = vunpack.c.l.b16 %v1281
    %v2048 = vunpack.c.h.b16 %v1281
    %v2049 = vunpack.c.l.b16 %v1282
    %v2050 = vunpack.c.h.b16 %v1282
    %v2051 = vunpack.c.l.b16 %v1283
    %v2052 = vunpack.c.h.b16 %v1283
    %v2053 = vunpack.c.l.b16 %v1284
    %v2054 = vunpack.c.h.b16 %v1284
    %v2055 = vunpack.c.l.b16 %v1285
    %v2056 = vunpack.c.h.b16 %v1285
    %v2057 = vunpack.c.l.b16 %v1286
    %v2058 = vunpack.c.h.b16 %v1286
    %v2059 = vunpack.c.l.b16 %v1287
    %v2060 = vunpack.c.h.b16 %v1287
    %v2061 = vunpack.c.l.b16 %v1288
    %v2062 = vunpack.c.h.b16 %v1288
    %v2063 = vunpack.c.l.b16 %v1289
    %v2064 = vunpack.c.h.b16 %v1289
    %v2065 = vunpack.c.l.b16 %v1290
    %v2066 = vunpack.c.h.b16 %v1290
    %v2067 = vunpack.c.l.b16 %v1291
    %v2068 = vunpack.c.h.b16 %v1291
    %v2069 = vunpack.c.l.b16 %v1292
    %v2070 = vunpack.c.h.b16 %v1292
    %v2071 = vunpack.c.l.b16 %v1293
    %v2072 = vunpack.c.h.b16 %v1293
    %v2073 = vunpack.c.l.b16 %v1294
    %v2074 = vunpack.c.h.b16 %v1294
    %v2075 = vunpack.c.l.b16 %v1295
    %v2076 = vunpack.c.h.b16 %v1295
    %v2077 = vunpack.c.l.b16 %v1296
    %v2078 = vunpack.c.h.b16 %v1296
    %v2079 = vunpack.c.l.b16 %v1297
    %v2080 = vunpack.c.h.b16 %v1297
    %v2081 = vunpack.c.l.b16 %v1298
    %v2082 = vunpack.c.h.b16 %v1298
    %v2083 = vunpack.c.l.b16 %v1299
    %v2084 = vunpack.c.h.b16 %v1299
    %v2085 = vunpack.c.l.b16 %v1300
    %v2086 = vunpack.c.h.b16 %v1300
    %v2087 = vunpack.c.l.b16 %v1301
    %v2088 = vunpack.c.h.b16 %v1301
    %v2089 = vunpack.c.l.b16 %v1302
    %v2090 = vunpack.c.h.b16 %v1302
    %v2091 = vunpack.c.l.b16 %v1303
    %v2092 = vunpack.c.h.b16 %v1303
    %v2093 = vunpack.c.l.b16 %v1304
    %v2094 = vunpack.c.h.b16 %v1304
    %v2095 = vunpack.c.l.b16 %v1305
    %v2096 = vunpack.c.h.b16 %v1305
    %v2097 = vunpack.c.l.b16 %v1306
    %v2098 = vunpack.c.h.b16 %v1306
    %v2099 = vunpack.c.l.b16 %v1307
    %v2100 = vunpack.c.h.b16 %v1307
    %v2101 = vunpack.c.l.b16 %v1308
    %v2102 = vunpack.c.h.b16 %v1308
    %v2103 = vunpack.c.l.b16 %v1309
    %v2104 = vunpack.c.h.b16 %v1309
    %v2105 = vunpack.c.l.b16 %v1310
    %v2106 = vunpack.c.h.b16 %v1310
    %v2107 = vunpack.c.l.b16 %v1311
    %v2108 = vunpack.c.h.b16 %v1311
    %v2109 = vunpack.c.l.b16 %v1312
    %v2110 = vunpack.c.h.b16 %v1312
    %v2111 = vunpack.c.l.b16 %v1313
    %v2112 = vunpack.c.h.b16 %v1313
    %v2113 = vunpack.c.l.b16 %v1314
    %v2114 = vunpack.c.h.b16 %v1314
    %v2115 = vunpack.c.l.b16 %v1315
    %v2116 = vunpack.c.h.b16 %v1315
    %v2117 = vunpack.c.l.b16 %v1316
    %v2118 = vunpack.c.h.b16 %v1316
    %v2119 = vunpack.c.l.b16 %v1317
    %v2120 = vunpack.c.h.b16 %v1317
    %v2121 = vunpack.c.l.b16 %v1318
    %v2122 = vunpack.c.h.b16 %v1318
    %v2123 = vunpack.c.l.b16 %v1319
    %v2124 = vunpack.c.h.b16 %v1319
    %v2125 = vunpack.c.l.b16 %v1320
    %v2126 = vunpack.c.h.b16 %v1320
    %v2127 = vunpack.c.l.b16 %v1321
    %v2128 = vunpack.c.h.b16 %v1321
    %v2129 = vunpack.c.l.b16 %v1322
    %v2130 = vunpack.c.h.b16 %v1322
    %v2131 = vunpack.c.l.b16 %v1323
    %v2132 = vunpack.c.h.b16 %v1323
    %v2133 = vunpack.c.l.b16 %v1324
    %v2134 = vunpack.c.h.b16 %v1324
    %v2135 = vunpack.c.l.b16 %v1325
    %v2136 = vunpack.c.h.b16 %v1325
    %v2137 = vunpack.c.l.b16 %v1326
    %v2138 = vunpack.c.h.b16 %v1326
    %v2139 = vunpack.c.l.b16 %v1327
    %v2140 = vunpack.c.h.b16 %v1327
    %v2141 = vunpack.c.l.b16 %v1328
    %v2142 = vunpack.c.h.b16 %v1328
    %v2143 = vunpack.c.l.b16 %v1329
    %v2144 = vunpack.c.h.b16 %v1329
    %v2145 = vunpack.c.l.b16 %v1330
    %v2146 = vunpack.c.h.b16 %v1330
    %v2147 = vunpack.c.l.b16 %v1331
    %v2148 = vunpack.c.h.b16 %v1331
    %v2149 = vunpack.c.l.b16 %v1332
    %v2150 = vunpack.c.h.b16 %v1332
    %v2151 = vunpack.c.l.b16 %v1333
    %v2152 = vunpack.c.h.b16 %v1333
    %v2153 = vunpack.c.l.b16 %v1334
    %v2154 = vunpack.c.h.b16 %v1334
    %v2155 = vunpack.c.l.b16 %v1335
    %v2156 = vunpack.c.h.b16 %v1335
    %v2157 = vunpack.c.l.b16 %v1336
    %v2158 = vunpack.c.h.b16 %v1336
    %v2159 = vunpack.c.l.b16 %v1337
    %v2160 = vunpack.c.h.b16 %v1337
    %v2161 = vunpack.c.l.b16 %v1338
    %v2162 = vunpack.c.h.b16 %v1338
    %v2163 = vunpack.c.l.b16 %v1339
    %v2164 = vunpack.c.h.b16 %v1339
    %v2165 = vunpack.c.l.b16 %v1340
    %v2166 = vunpack.c.h.b16 %v1340
    %v2167 = vpack.c.b16 %v1663, %v1655
    %v2168 = vpack.c.b16 %v1664, %v1656
    %v2169 = vpack.c.b16 %v1665, %v1657
    %v2170 = vpack.c.b16 %v1666, %v1658
    %v2171 = vpack.c.b16 %v1667, %v1659
    %v2172 = vpack.c.b16 %v1668, %v1660
    %v2173 = vpack.c.b16 %v1669, %v1661
    %v2174 = vpack.c.b16 %v1670, %v1662
    %v2175 = vpack.c.b16 %v1679, %v1671
    %v2176 = vpack.c.b16 %v1680, %v1672
    %v2177 = vpack.c.b16 %v1681, %v1673
    %v2178 = vpack.c.b16 %v1682, %v1674
    %v2179 = vpack.c.b16 %v1683, %v1675
    %v2180 = vpack.c.b16 %v1684, %v1676
    %v2181 = vpack.c.b16 %v1685, %v1677
    %v2182 = vpack.c.b16 %v1686, %v1678
    %v2183 = vpack.c.b16 %v1695, %v1687
    %v2184 = vpack.c.b16 %v1696, %v1688
    %v2185 = vpack.c.b16 %v1697, %v1689
    %v2186 = vpack.c.b16 %v1698, %v1690
    %v2187 = vpack.c.b16 %v1699, %v1691
    %v2188 = vpack.c.b16 %v1700, %v1692
    %v2189 = vpack.c.b16 %v1701, %v1693
    %v2190 = vpack.c.b16 %v1702, %v1694
    %v2191 = vpack.c.b16 %v1711, %v1703
    %v2192 = vpack.c.b16 %v1712, %v1704
    %v2193 = vpack.c.b16 %v1713, %v1705
    %v2194 = vpack.c.b16 %v1714, %v1706
    %v2195 = vpack.c.b16 %v1715, %v1707
    %v2196 = vpack.c.b16 %v1716, %v1708
    %v2197 = vpack.c.b16 %v1717, %v1709
    %v2198 = vpack.c.b16 %v1718, %v1710
    %v2199 = vpack.c.b16 %v1727, %v1719
    %v2200 = vpack.c.b16 %v1728, %v1720
    %v2201 = vpack.c.b16 %v1729, %v1721
    %v2202 = vpack.c.b16 %v1730, %v1722
    %v2203 = vpack.c.b16 %v1731, %v1723
    %v2204 = vpack.c.b16 %v1732, %v1724
    %v2205 = vpack.c.b16 %v1733, %v1725
    %v2206 = vpack.c.b16 %v1734, %v1726
    %v2207 = vpack.c.b16 %v1743, %v1735
    %v2208 = vpack.c.b16 %v1744, %v1736
    %v2209 = vpack.c.b16 %v1745, %v1737
    %v2210 = vpack.c.b16 %v1746, %v1738
    %v2211 = vpack.c.b16 %v1747, %v1739
    %v2212 = vpack.c.b16 %v1748, %v1740
    %v2213 = vpack.c.b16 %v1749, %v1741
    %v2214 = vpack.c.b16 %v1750, %v1742
    %v2215 = vpack.c.b16 %v1759, %v1751
    %v2216 = vpack.c.b16 %v1760, %v1752
    %v2217 = vpack.c.b16 %v1761, %v1753
    %v2218 = vpack.c.b16 %v1762, %v1754
    %v2219 = vpack.c.b16 %v1763, %v1755
    %v2220 = vpack.c.b16 %v1764, %v1756
    %v2221 = vpack.c.b16 %v1765, %v1757
    %v2222 = vpack.c.b16 %v1766, %v1758
    %v2223 = vpack.c.b16 %v1775, %v1767
    %v2224 = vpack.c.b16 %v1776, %v1768
    %v2225 = vpack.c.b16 %v1777, %v1769
    %v2226 = vpack.c.b16 %v1778, %v1770
    %v2227 = vpack.c.b16 %v1779, %v1771
    %v2228 = vpack.c.b16 %v1780, %v1772
    %v2229 = vpack.c.b16 %v1781, %v1773
    %v2230 = vpack.c.b16 %v1782, %v1774
    %v2231 = vpack.c.b16 %v1791, %v1783
    %v2232 = vpack.c.b16 %v1792, %v1784
    %v2233 = vpack.c.b16 %v1793, %v1785
    %v2234 = vpack.c.b16 %v1794, %v1786
    %v2235 = vpack.c.b16 %v1795, %v1787
    %v2236 = vpack.c.b16 %v1796, %v1788
    %v2237 = vpack.c.b16 %v1797, %v1789
    %v2238 = vpack.c.b16 %v1798, %v1790
    %v2239 = vpack.c.b16 %v1807, %v1799
    %v2240 = vpack.c.b16 %v1808, %v1800
    %v2241 = vpack.c.b16 %v1809, %v1801
    %v2242 = vpack.c.b16 %v1810, %v1802
    %v2243 = vpack.c.b16 %v1811, %v1803
    %v2244 = vpack.c.b16 %v1812, %v1804
    %v2245 = vpack.c.b16 %v1813, %v1805
    %v2246 = vpack.c.b16 %v1814, %v1806
    %v2247 = vpack.c.b16 %v1823, %v1815
    %v2248 = vpack.c.b16 %v1824, %v1816
    %v2249 = vpack.c.b16 %v1825, %v1817
    %v2250 = vpack.c.b16 %v1826, %v1818
    %v2251 = vpack.c.b16 %v1827, %v1819
    %v2252 = vpack.c.b16 %v1828, %v1820
    %v2253 = vpack.c.b16 %v1829, %v1821
    %v2254 = vpack.c.b16 %v1830, %v1822
    %v2255 = vpack.c.b16 %v1839, %v1831
    %v2256 = vpack.c.b16 %v1840, %v1832
    %v2257 = vpack.c.b16 %v1841, %v1833
    %v2258 = vpack.c.b16 %v1842, %v1834
    %v2259 = vpack.c.b16 %v1843, %v1835
    %v2260 = vpack.c.b16 %v1844, %v1836
    %v2261 = vpack.c.b16 %v1845, %v1837
    %v2262 = vpack.c.b16 %v1846, %v1838
    %v2263 = vpack.c.b16 %v1855, %v1847
    %v2264 = vpack.c.b16 %v1856, %v1848
    %v2265 = vpack.c.b16 %v1857, %v1849
    %v2266 = vpack.c.b16 %v1858, %v1850
    %v2267 = vpack.c.b16 %v1859, %v1851
    %v2268 = vpack.c.b16 %v1860, %v1852
    %v2269 = vpack.c.b16 %v1861, %v1853
    %v2270 = vpack.c.b16 %v1862, %v1854
    %v2271 = vpack.c.b16 %v1871, %v1863
    %v2272 = vpack.c.b16 %v1872, %v1864
    %v2273 = vpack.c.b16 %v1873, %v1865
    %v2274 = vpack.c.b16 %v1874, %v1866
    %v2275 = vpack.c.b16 %v1875, %v1867
    %v2276 = vpack.c.b16 %v1876, %v1868
    %v2277 = vpack.c.b16 %v1877, %v1869
    %v2278 = vpack.c.b16 %v1878, %v1870
    %v2279 = vpack.c.b16 %v1887, %v1879
    %v2280 = vpack.c.b16 %v1888, %v1880
    %v2281 = vpack.c.b16 %v1889, %v1881
    %v2282 = vpack.c.b16 %v1890, %v1882
    %v2283 = vpack.c.b16 %v1891, %v1883
    %v2284 = vpack.c.b16 %v1892, %v1884
    %v2285 = vpack.c.b16 %v1893, %v1885
    %v2286 = vpack.c.b16 %v1894, %v1886
    %v2287 = vpack.c.b16 %v1903, %v1895
    %v2288 = vpack.c.b16 %v1904, %v1896
    %v2289 = vpack.c.b16 %v1905, %v1897
    %v2290 = vpack.c.b16 %v1906, %v1898
    %v2291 = vpack.c.b16 %v1907, %v1899
    %v2292 = vpack.c.b16 %v1908, %v1900
    %v2293 = vpack.c.b16 %v1909, %v1901
    %v2294 = vpack.c.b16 %v1910, %v1902
    %v2295 = vpack.c.b16 %v1919, %v1911
    %v2296 = vpack.c.b16 %v1920, %v1912
    %v2297 = vpack.c.b16 %v1921, %v1913
    %v2298 = vpack.c.b16 %v1922, %v1914
    %v2299 = vpack.c.b16 %v1923, %v1915
    %v2300 = vpack.c.b16 %v1924, %v1916
    %v2301 = vpack.c.b16 %v1925, %v1917
    %v2302 = vpack.c.b16 %v1926, %v1918
    %v2303 = vpack.c.b16 %v1935, %v1927
    %v2304 = vpack.c.b16 %v1936, %v1928
    %v2305 = vpack.c.b16 %v1937, %v1929
    %v2306 = vpack.c.b16 %v1938, %v1930
    %v2307 = vpack.c.b16 %v1939, %v1931
    %v2308 = vpack.c.b16 %v1940, %v1932
    %v2309 = vpack.c.b16 %v1941, %v1933
    %v2310 = vpack.c.b16 %v1942, %v1934
    %v2311 = vpack.c.b16 %v1951, %v1943
    %v2312 = vpack.c.b16 %v1952, %v1944
    %v2313 = vpack.c.b16 %v1953, %v1945
    %v2314 = vpack.c.b16 %v1954, %v1946
    %v2315 = vpack.c.b16 %v1955, %v1947
    %v2316 = vpack.c.b16 %v1956, %v1948
    %v2317 = vpack.c.b16 %v1957, %v1949
    %v2318 = vpack.c.b16 %v1958, %v1950
    %v2319 = vpack.c.b16 %v1967, %v1959
    %v2320 = vpack.c.b16 %v1968, %v1960
    %v2321 = vpack.c.b16 %v1969, %v1961
    %v2322 = vpack.c.b16 %v1970, %v1962
    %v2323 = vpack.c.b16 %v1971, %v1963
    %v2324 = vpack.c.b16 %v1972, %v1964
    %v2325 = vpack.c.b16 %v1973, %v1965
    %v2326 = vpack.c.b16 %v1974, %v1966
    %v2327 = vpack.c.b16 %v1983, %v1975
    %v2328 = vpack.c.b16 %v1984, %v1976
    %v2329 = vpack.c.b16 %v1985, %v1977
    %v2330 = vpack.c.b16 %v1986, %v1978
    %v2331 = vpack.c.b16 %v1987, %v1979
    %v2332 = vpack.c.b16 %v1988, %v1980
    %v2333 = vpack.c.b16 %v1989, %v1981
    %v2334 = vpack.c.b16 %v1990, %v1982
    %v2335 = vpack.c.b16 %v1999, %v1991
    %v2336 = vpack.c.b16 %v2000, %v1992
    %v2337 = vpack.c.b16 %v2001, %v1993
    %v2338 = vpack.c.b16 %v2002, %v1994
    %v2339 = vpack.c.b16 %v2003, %v1995
    %v2340 = vpack.c.b16 %v2004, %v1996
    %v2341 = vpack.c.b16 %v2005, %v1997
    %v2342 = vpack.c.b16 %v2006, %v1998
    %v2343 = vpack.c.b16 %v2015, %v2007
    %v2344 = vpack.c.b16 %v2016, %v2008
    %v2345 = vpack.c.b16 %v2017, %v2009
    %v2346 = vpack.c.b16 %v2018, %v2010
    %v2347 = vpack.c.b16 %v2019, %v2011
    %v2348 = vpack.c.b16 %v2020, %v2012
    %v2349 = vpack.c.b16 %v2021, %v2013
    %v2350 = vpack.c.b16 %v2022, %v2014
    %v2351 = vpack.c.b16 %v2031, %v2023
    %v2352 = vpack.c.b16 %v2032, %v2024
    %v2353 = vpack.c.b16 %v2033, %v2025
    %v2354 = vpack.c.b16 %v2034, %v2026
    %v2355 = vpack.c.b16 %v2035, %v2027
    %v2356 = vpack.c.b16 %v2036, %v2028
    %v2357 = vpack.c.b16 %v2037, %v2029
    %v2358 = vpack.c.b16 %v2038, %v2030
    %v2359 = vpack.c.b16 %v2047, %v2039
    %v2360 = vpack.c.b16 %v2048, %v2040
    %v2361 = vpack.c.b16 %v2049, %v2041
    %v2362 = vpack.c.b16 %v2050, %v2042
    %v2363 = vpack.c.b16 %v2051, %v2043
    %v2364 = vpack.c.b16 %v2052, %v2044
    %v2365 = vpack.c.b16 %v2053, %v2045
    %v2366 = vpack.c.b16 %v2054, %v2046
    %v2367 = vpack.c.b16 %v2063, %v2055
    %v2368 = vpack.c.b16 %v2064, %v2056
    %v2369 = vpack.c.b16 %v2065, %v2057
    %v2370 = vpack.c.b16 %v2066, %v2058
    %v2371 = vpack.c.b16 %v2067, %v2059
    %v2372 = vpack.c.b16 %v2068, %v2060
    %v2373 = vpack.c.b16 %v2069, %v2061
    %v2374 = vpack.c.b16 %v2070, %v2062
    %v2375 = vpack.c.b16 %v2079, %v2071
    %v2376 = vpack.c.b16 %v2080, %v2072
    %v2377 = vpack.c.b16 %v2081, %v2073
    %v2378 = vpack.c.b16 %v2082, %v2074
    %v2379 = vpack.c.b16 %v2083, %v2075
    %v2380 = vpack.c.b16 %v2084, %v2076
    %v2381 = vpack.c.b16 %v2085, %v2077
    %v2382 = vpack.c.b16 %v2086, %v2078
    %v2383 = vpack.c.b16 %v2095, %v2087
    %v2384 = vpack.c.b16 %v2096, %v2088
    %v2385 = vpack.c.b16 %v2097, %v2089
    %v2386 = vpack.c.b16 %v2098, %v2090
    %v2387 = vpack.c.b16 %v2099, %v2091
    %v2388 = vpack.c.b16 %v2100, %v2092
    %v2389 = vpack.c.b16 %v2101, %v2093
    %v2390 = vpack.c.b16 %v2102, %v2094
    %v2391 = vpack.c.b16 %v2111, %v2103
    %v2392 = vpack.c.b16 %v2112, %v2104
    %v2393 = vpack.c.b16 %v2113, %v2105
    %v2394 = vpack.c.b16 %v2114, %v2106
    %v2395 = vpack.c.b16 %v2115, %v2107
    %v2396 = vpack.c.b16 %v2116, %v2108
    %v2397 = vpack.c.b16 %v2117, %v2109
    %v2398 = vpack.c.b16 %v2118, %v2110
    %v2399 = vpack.c.b16 %v2127, %v2119
    %v2400 = vpack.c.b16 %v2128, %v2120
    %v2401 = vpack.c.b16 %v2129, %v2121
    %v2402 = vpack.c.b16 %v2130, %v2122
    %v2403 = vpack.c.b16 %v2131, %v2123
    %v2404 = vpack.c.b16 %v2132, %v2124
    %v2405 = vpack.c.b16 %v2133, %v2125
    %v2406 = vpack.c.b16 %v2134, %v2126
    %v2407 = vpack.c.b16 %v2143, %v2135
    %v2408 = vpack.c.b16 %v2144, %v2136
    %v2409 = vpack.c.b16 %v2145, %v2137
    %v2410 = vpack.c.b16 %v2146, %v2138
    %v2411 = vpack.c.b16 %v2147, %v2139
    %v2412 = vpack.c.b16 %v2148, %v2140
    %v2413 = vpack.c.b16 %v2149, %v2141
    %v2414 = vpack.c.b16 %v2150, %v2142
    %v2415 = vpack.c.b16 %v2159, %v2151
    %v2416 = vpack.c.b16 %v2160, %v2152
    %v2417 = vpack.c.b16 %v2161, %v2153
    %v2418 = vpack.c.b16 %v2162, %v2154
    %v2419 = vpack.c.b16 %v2163, %v2155
    %v2420 = vpack.c.b16 %v2164, %v2156
    %v2421 = vpack.c.b16 %v2165, %v2157
    %v2422 = vpack.c.b16 %v2166, %v2158
    %2679 = vmatpush.bf16.msra.mxu0 %v2223
    %2680 = vmatpush.bf16.msra.mxu0 %v2215
    %2681 = vmatpush.bf16.msra.mxu0 %v2207
    %2682 = vmatpush.bf16.msra.mxu0 %v2199
    %2683 = vmatpush.bf16.msra.mxu0 %v2191
    %2684 = vmatpush.bf16.msra.mxu0 %v2183
    %2685 = vmatpush.bf16.msra.mxu0 %v2175
    %2686 = vmatpush.bf16.msra.mxu0 %v2167
    %2687 = vmatmul.bf16.gmra.mxu0 %v1383
    %v2688 = vpop.f32.mrf.mxu0
    %v2689 = vadd.f32 %v1343, %v2688
    %v2690 = vpop.f32.mrf.mxu0
    %v2691 = vadd.f32 %v1343, %v2690
    %2692 = vmatmul.bf16.gmra.mxu0 %v1387
    %v2693 = vpop.f32.mrf.mxu0
    %v2694 = vadd.f32 %v1343, %v2693
    %v2695 = vpop.f32.mrf.mxu0
    %v2696 = vadd.f32 %v1343, %v2695
    %2697 = vdwg.mxu0
    %2698 = vmatpush.bf16.msra.mxu0 %v2287
    %2699 = vmatpush.bf16.msra.mxu0 %v2279
    %2700 = vmatpush.bf16.msra.mxu0 %v2271
    %2701 = vmatpush.bf16.msra.mxu0 %v2263
    %2702 = vmatpush.bf16.msra.mxu0 %v2255
    %2703 = vmatpush.bf16.msra.mxu0 %v2247
    %2704 = vmatpush.bf16.msra.mxu0 %v2239
    %2705 = vmatpush.bf16.msra.mxu0 %v2231
    %2706 = vmatmul.bf16.gmra.mxu0 %v1384
    %v2707 = vpop.f32.mrf.mxu0
    %v2708 = vadd.f32 %v2689, %v2707
    %v2709 = vpop.f32.mrf.mxu0
    %v2710 = vadd.f32 %v2691, %v2709
    %2711 = vmatmul.bf16.gmra.mxu0 %v1388
    %v2712 = vpop.f32.mrf.mxu0
    %v2713 = vadd.f32 %v2694, %v2712
    %v2714 = vpop.f32.mrf.mxu0
    %v2715 = vadd.f32 %v2696, %v2714
    %2716 = vdwg.mxu0
    %2717 = vmatpush.bf16.msra.mxu0 %v2351
    %2718 = vmatpush.bf16.msra.mxu0 %v2343
    %2719 = vmatpush.bf16.msra.mxu0 %v2335
    %2720 = vmatpush.bf16.msra.mxu0 %v2327
    %2721 = vmatpush.bf16.msra.mxu0 %v2319
    %2722 = vmatpush.bf16.msra.mxu0 %v2311
    %2723 = vmatpush.bf16.msra.mxu0 %v2303
    %2724 = vmatpush.bf16.msra.mxu0 %v2295
    %2725 = vmatmul.bf16.gmra.mxu0 %v1385
    %v2726 = vpop.f32.mrf.mxu0
    %v2727 = vadd.f32 %v2708, %v2726
    %v2728 = vpop.f32.mrf.mxu0
    %v2729 = vadd.f32 %v2710, %v2728
    %2730 = vmatmul.bf16.gmra.mxu0 %v1389
    %v2731 = vpop.f32.mrf.mxu0
    %v2732 = vadd.f32 %v2713, %v2731
    %v2733 = vpop.f32.mrf.mxu0
    %v2734 = vadd.f32 %v2715, %v2733
    %2735 = vdwg.mxu0
    %2736 = vmatpush.bf16.msra.mxu0 %v2415
    %2737 = vmatpush.bf16.msra.mxu0 %v2407
    %2738 = vmatpush.bf16.msra.mxu0 %v2399
    %2739 = vmatpush.bf16.msra.mxu0 %v2391
    %2740 = vmatpush.bf16.msra.mxu0 %v2383
    %2741 = vmatpush.bf16.msra.mxu0 %v2375
    %2742 = vmatpush.bf16.msra.mxu0 %v2367
    %2743 = vmatpush.bf16.msra.mxu0 %v2359
    %2744 = vmatmul.bf16.gmra.mxu0 %v1386
    %v2745 = vpop.f32.mrf.mxu0
    %v2746 = vadd.f32 %v2727, %v2745
    %v2747 = vpop.f32.mrf.mxu0
    %v2748 = vadd.f32 %v2729, %v2747
    %2749 = vmatmul.bf16.gmra.mxu0 %v1390
    %v2750 = vpop.f32.mrf.mxu0
    %v2751 = vadd.f32 %v2732, %v2750
    %v2752 = vpop.f32.mrf.mxu0
    %v2753 = vadd.f32 %v2734, %v2752
    %2754 = vdwg.mxu0
    %2755 = vmatpush.bf16.msra.mxu0 %v2224
    %2756 = vmatpush.bf16.msra.mxu0 %v2216
    %2757 = vmatpush.bf16.msra.mxu0 %v2208
    %2758 = vmatpush.bf16.msra.mxu0 %v2200
    %2759 = vmatpush.bf16.msra.mxu0 %v2192
    %2760 = vmatpush.bf16.msra.mxu0 %v2184
    %2761 = vmatpush.bf16.msra.mxu0 %v2176
    %2762 = vmatpush.bf16.msra.mxu0 %v2168
    %2763 = vmatmul.bf16.gmra.mxu0 %v1383
    %v2764 = vpop.f32.mrf.mxu0
    %v2765 = vadd.f32 %v1344, %v2764
    %v2766 = vpop.f32.mrf.mxu0
    %v2767 = vadd.f32 %v1344, %v2766
    %2768 = vmatmul.bf16.gmra.mxu0 %v1387
    %v2769 = vpop.f32.mrf.mxu0
    %v2770 = vadd.f32 %v1344, %v2769
    %v2771 = vpop.f32.mrf.mxu0
    %v2772 = vadd.f32 %v1344, %v2771
    %2773 = vdwg.mxu0
    %2774 = vmatpush.bf16.msra.mxu0 %v2288
    %2775 = vmatpush.bf16.msra.mxu0 %v2280
    %2776 = vmatpush.bf16.msra.mxu0 %v2272
    %2777 = vmatpush.bf16.msra.mxu0 %v2264
    %2778 = vmatpush.bf16.msra.mxu0 %v2256
    %2779 = vmatpush.bf16.msra.mxu0 %v2248
    %2780 = vmatpush.bf16.msra.mxu0 %v2240
    %2781 = vmatpush.bf16.msra.mxu0 %v2232
    %2782 = vmatmul.bf16.gmra.mxu0 %v1384
    %v2783 = vpop.f32.mrf.mxu0
    %v2784 = vadd.f32 %v2765, %v2783
    %v2785 = vpop.f32.mrf.mxu0
    %v2786 = vadd.f32 %v2767, %v2785
    %2787 = vmatmul.bf16.gmra.mxu0 %v1388
    %v2788 = vpop.f32.mrf.mxu0
    %v2789 = vadd.f32 %v2770, %v2788
    %v2790 = vpop.f32.mrf.mxu0
    %v2791 = vadd.f32 %v2772, %v2790
    %2792 = vdwg.mxu0
    %2793 = vmatpush.bf16.msra.mxu0 %v2352
    %2794 = vmatpush.bf16.msra.mxu0 %v2344
    %2795 = vmatpush.bf16.msra.mxu0 %v2336
    %2796 = vmatpush.bf16.msra.mxu0 %v2328
    %2797 = vmatpush.bf16.msra.mxu0 %v2320
    %2798 = vmatpush.bf16.msra.mxu0 %v2312
    %2799 = vmatpush.bf16.msra.mxu0 %v2304
    %2800 = vmatpush.bf16.msra.mxu0 %v2296
    %2801 = vmatmul.bf16.gmra.mxu0 %v1385
    %v2802 = vpop.f32.mrf.mxu0
    %v2803 = vadd.f32 %v2784, %v2802
    %v2804 = vpop.f32.mrf.mxu0
    %v2805 = vadd.f32 %v2786, %v2804
    %2806 = vmatmul.bf16.gmra.mxu0 %v1389
    %v2807 = vpop.f32.mrf.mxu0
    %v2808 = vadd.f32 %v2789, %v2807
    %v2809 = vpop.f32.mrf.mxu0
    %v2810 = vadd.f32 %v2791, %v2809
    %2811 = vdwg.mxu0
    %2812 = vmatpush.bf16.msra.mxu0 %v2416
    %2813 = vmatpush.bf16.msra.mxu0 %v2408
    %2814 = vmatpush.bf16.msra.mxu0 %v2400
    %2815 = vmatpush.bf16.msra.mxu0 %v2392
    %2816 = vmatpush.bf16.msra.mxu0 %v2384
    %2817 = vmatpush.bf16.msra.mxu0 %v2376
    %2818 = vmatpush.bf16.msra.mxu0 %v2368
    %2819 = vmatpush.bf16.msra.mxu0 %v2360
    %2820 = vmatmul.bf16.gmra.mxu0 %v1386
    %v2821 = vpop.f32.mrf.mxu0
    %v2822 = vadd.f32 %v2803, %v2821
    %v2823 = vpop.f32.mrf.mxu0
    %v2824 = vadd.f32 %v2805, %v2823
    %2825 = vmatmul.bf16.gmra.mxu0 %v1390
    %v2826 = vpop.f32.mrf.mxu0
    %v2827 = vadd.f32 %v2808, %v2826
    %v2828 = vpop.f32.mrf.mxu0
    %v2829 = vadd.f32 %v2810, %v2828
    %2830 = vdwg.mxu0
    %2831 = vmatpush.bf16.msra.mxu0 %v2225
    %2832 = vmatpush.bf16.msra.mxu0 %v2217
    %2833 = vmatpush.bf16.msra.mxu0 %v2209
    %2834 = vmatpush.bf16.msra.mxu0 %v2201
    %2835 = vmatpush.bf16.msra.mxu0 %v2193
    %2836 = vmatpush.bf16.msra.mxu0 %v2185
    %2837 = vmatpush.bf16.msra.mxu0 %v2177
    %2838 = vmatpush.bf16.msra.mxu0 %v2169
    %2839 = vmatmul.bf16.gmra.mxu0 %v1383
    %v2840 = vpop.f32.mrf.mxu0
    %v2841 = vadd.f32 %v1345, %v2840
    %v2842 = vpop.f32.mrf.mxu0
    %v2843 = vadd.f32 %v1345, %v2842
    %2844 = vmatmul.bf16.gmra.mxu0 %v1387
    %v2845 = vpop.f32.mrf.mxu0
    %v2846 = vadd.f32 %v1345, %v2845
    %v2847 = vpop.f32.mrf.mxu0
    %v2848 = vadd.f32 %v1345, %v2847
    %2849 = vdwg.mxu0
    %2850 = vmatpush.bf16.msra.mxu0 %v2289
    %2851 = vmatpush.bf16.msra.mxu0 %v2281
    %2852 = vmatpush.bf16.msra.mxu0 %v2273
    %2853 = vmatpush.bf16.msra.mxu0 %v2265
    %2854 = vmatpush.bf16.msra.mxu0 %v2257
    %2855 = vmatpush.bf16.msra.mxu0 %v2249
    %2856 = vmatpush.bf16.msra.mxu0 %v2241
    %2857 = vmatpush.bf16.msra.mxu0 %v2233
    %2858 = vmatmul.bf16.gmra.mxu0 %v1384
    %v2859 = vpop.f32.mrf.mxu0
    %v2860 = vadd.f32 %v2841, %v2859
    %v2861 = vpop.f32.mrf.mxu0
    %v2862 = vadd.f32 %v2843, %v2861
    %2863 = vmatmul.bf16.gmra.mxu0 %v1388
    %v2864 = vpop.f32.mrf.mxu0
    %v2865 = vadd.f32 %v2846, %v2864
    %v2866 = vpop.f32.mrf.mxu0
    %v2867 = vadd.f32 %v2848, %v2866
    %2868 = vdwg.mxu0
    %2869 = vmatpush.bf16.msra.mxu0 %v2353
    %2870 = vmatpush.bf16.msra.mxu0 %v2345
    %2871 = vmatpush.bf16.msra.mxu0 %v2337
    %2872 = vmatpush.bf16.msra.mxu0 %v2329
    %2873 = vmatpush.bf16.msra.mxu0 %v2321
    %2874 = vmatpush.bf16.msra.mxu0 %v2313
    %2875 = vmatpush.bf16.msra.mxu0 %v2305
    %2876 = vmatpush.bf16.msra.mxu0 %v2297
    %2877 = vmatmul.bf16.gmra.mxu0 %v1385
    %v2878 = vpop.f32.mrf.mxu0
    %v2879 = vadd.f32 %v2860, %v2878
    %v2880 = vpop.f32.mrf.mxu0
    %v2881 = vadd.f32 %v2862, %v2880
    %2882 = vmatmul.bf16.gmra.mxu0 %v1389
    %v2883 = vpop.f32.mrf.mxu0
    %v2884 = vadd.f32 %v2865, %v2883
    %v2885 = vpop.f32.mrf.mxu0
    %v2886 = vadd.f32 %v2867, %v2885
    %2887 = vdwg.mxu0
    %2888 = vmatpush.bf16.msra.mxu0 %v2417
    %2889 = vmatpush.bf16.msra.mxu0 %v2409
    %2890 = vmatpush.bf16.msra.mxu0 %v2401
    %2891 = vmatpush.bf16.msra.mxu0 %v2393
    %2892 = vmatpush.bf16.msra.mxu0 %v2385
    %2893 = vmatpush.bf16.msra.mxu0 %v2377
    %2894 = vmatpush.bf16.msra.mxu0 %v2369
    %2895 = vmatpush.bf16.msra.mxu0 %v2361
    %2896 = vmatmul.bf16.gmra.mxu0 %v1386
    %v2897 = vpop.f32.mrf.mxu0
    %v2898 = vadd.f32 %v2879, %v2897
    %v2899 = vpop.f32.mrf.mxu0
    %v2900 = vadd.f32 %v2881, %v2899
    %2901 = vmatmul.bf16.gmra.mxu0 %v1390
    %v2902 = vpop.f32.mrf.mxu0
    %v2903 = vadd.f32 %v2884, %v2902
    %v2904 = vpop.f32.mrf.mxu0
    %v2905 = vadd.f32 %v2886, %v2904
    %2906 = vdwg.mxu0
    %2907 = vmatpush.bf16.msra.mxu0 %v2226
    %2908 = vmatpush.bf16.msra.mxu0 %v2218
    %2909 = vmatpush.bf16.msra.mxu0 %v2210
    %2910 = vmatpush.bf16.msra.mxu0 %v2202
    %2911 = vmatpush.bf16.msra.mxu0 %v2194
    %2912 = vmatpush.bf16.msra.mxu0 %v2186
    %2913 = vmatpush.bf16.msra.mxu0 %v2178
    %2914 = vmatpush.bf16.msra.mxu0 %v2170
    %2915 = vmatmul.bf16.gmra.mxu0 %v1383
    %v2916 = vpop.f32.mrf.mxu0
    %v2917 = vadd.f32 %v1346, %v2916
    %v2918 = vpop.f32.mrf.mxu0
    %v2919 = vadd.f32 %v1346, %v2918
    %2920 = vmatmul.bf16.gmra.mxu0 %v1387
    %v2921 = vpop.f32.mrf.mxu0
    %v2922 = vadd.f32 %v1346, %v2921
    %v2923 = vpop.f32.mrf.mxu0
    %v2924 = vadd.f32 %v1346, %v2923
    %2925 = vdwg.mxu0
    %2926 = vmatpush.bf16.msra.mxu0 %v2290
    %2927 = vmatpush.bf16.msra.mxu0 %v2282
    %2928 = vmatpush.bf16.msra.mxu0 %v2274
    %2929 = vmatpush.bf16.msra.mxu0 %v2266
    %2930 = vmatpush.bf16.msra.mxu0 %v2258
    %2931 = vmatpush.bf16.msra.mxu0 %v2250
    %2932 = vmatpush.bf16.msra.mxu0 %v2242
    %2933 = vmatpush.bf16.msra.mxu0 %v2234
    %2934 = vmatmul.bf16.gmra.mxu0 %v1384
    %v2935 = vpop.f32.mrf.mxu0
    %v2936 = vadd.f32 %v2917, %v2935
    %v2937 = vpop.f32.mrf.mxu0
    %v2938 = vadd.f32 %v2919, %v2937
    %2939 = vmatmul.bf16.gmra.mxu0 %v1388
    %v2940 = vpop.f32.mrf.mxu0
    %v2941 = vadd.f32 %v2922, %v2940
    %v2942 = vpop.f32.mrf.mxu0
    %v2943 = vadd.f32 %v2924, %v2942
    %2944 = vdwg.mxu0
    %2945 = vmatpush.bf16.msra.mxu0 %v2354
    %2946 = vmatpush.bf16.msra.mxu0 %v2346
    %2947 = vmatpush.bf16.msra.mxu0 %v2338
    %2948 = vmatpush.bf16.msra.mxu0 %v2330
    %2949 = vmatpush.bf16.msra.mxu0 %v2322
    %2950 = vmatpush.bf16.msra.mxu0 %v2314
    %2951 = vmatpush.bf16.msra.mxu0 %v2306
    %2952 = vmatpush.bf16.msra.mxu0 %v2298
    %2953 = vmatmul.bf16.gmra.mxu0 %v1385
    %v2954 = vpop.f32.mrf.mxu0
    %v2955 = vadd.f32 %v2936, %v2954
    %v2956 = vpop.f32.mrf.mxu0
    %v2957 = vadd.f32 %v2938, %v2956
    %2958 = vmatmul.bf16.gmra.mxu0 %v1389
    %v2959 = vpop.f32.mrf.mxu0
    %v2960 = vadd.f32 %v2941, %v2959
    %v2961 = vpop.f32.mrf.mxu0
    %v2962 = vadd.f32 %v2943, %v2961
    %2963 = vdwg.mxu0
    %2964 = vmatpush.bf16.msra.mxu0 %v2418
    %2965 = vmatpush.bf16.msra.mxu0 %v2410
    %2966 = vmatpush.bf16.msra.mxu0 %v2402
    %2967 = vmatpush.bf16.msra.mxu0 %v2394
    %2968 = vmatpush.bf16.msra.mxu0 %v2386
    %2969 = vmatpush.bf16.msra.mxu0 %v2378
    %2970 = vmatpush.bf16.msra.mxu0 %v2370
    %2971 = vmatpush.bf16.msra.mxu0 %v2362
    %2972 = vmatmul.bf16.gmra.mxu0 %v1386
    %v2973 = vpop.f32.mrf.mxu0
    %v2974 = vadd.f32 %v2955, %v2973
    %v2975 = vpop.f32.mrf.mxu0
    %v2976 = vadd.f32 %v2957, %v2975
    %2977 = vmatmul.bf16.gmra.mxu0 %v1390
    %v2978 = vpop.f32.mrf.mxu0
    %v2979 = vadd.f32 %v2960, %v2978
    %v2980 = vpop.f32.mrf.mxu0
    %v2981 = vadd.f32 %v2962, %v2980
    %2982 = vdwg.mxu0
    %2983 = vmatpush.bf16.msra.mxu0 %v2227
    %2984 = vmatpush.bf16.msra.mxu0 %v2219
    %2985 = vmatpush.bf16.msra.mxu0 %v2211
    %2986 = vmatpush.bf16.msra.mxu0 %v2203
    %2987 = vmatpush.bf16.msra.mxu0 %v2195
    %2988 = vmatpush.bf16.msra.mxu0 %v2187
    %2989 = vmatpush.bf16.msra.mxu0 %v2179
    %2990 = vmatpush.bf16.msra.mxu0 %v2171
    %2991 = vmatmul.bf16.gmra.mxu0 %v1383
    %v2992 = vpop.f32.mrf.mxu0
    %v2993 = vadd.f32 %v1347, %v2992
    %v2994 = vpop.f32.mrf.mxu0
    %v2995 = vadd.f32 %v1347, %v2994
    %2996 = vmatmul.bf16.gmra.mxu0 %v1387
    %v2997 = vpop.f32.mrf.mxu0
    %v2998 = vadd.f32 %v1347, %v2997
    %v2999 = vpop.f32.mrf.mxu0
    %v3000 = vadd.f32 %v1347, %v2999
    %3001 = vdwg.mxu0
    %3002 = vmatpush.bf16.msra.mxu0 %v2291
    %3003 = vmatpush.bf16.msra.mxu0 %v2283
    %3004 = vmatpush.bf16.msra.mxu0 %v2275
    %3005 = vmatpush.bf16.msra.mxu0 %v2267
    %3006 = vmatpush.bf16.msra.mxu0 %v2259
    %3007 = vmatpush.bf16.msra.mxu0 %v2251
    %3008 = vmatpush.bf16.msra.mxu0 %v2243
    %3009 = vmatpush.bf16.msra.mxu0 %v2235
    %3010 = vmatmul.bf16.gmra.mxu0 %v1384
    %v3011 = vpop.f32.mrf.mxu0
    %v3012 = vadd.f32 %v2993, %v3011
    %v3013 = vpop.f32.mrf.mxu0
    %v3014 = vadd.f32 %v2995, %v3013
    %3015 = vmatmul.bf16.gmra.mxu0 %v1388
    %v3016 = vpop.f32.mrf.mxu0
    %v3017 = vadd.f32 %v2998, %v3016
    %v3018 = vpop.f32.mrf.mxu0
    %v3019 = vadd.f32 %v3000, %v3018
    %3020 = vdwg.mxu0
    %3021 = vmatpush.bf16.msra.mxu0 %v2355
    %3022 = vmatpush.bf16.msra.mxu0 %v2347
    %3023 = vmatpush.bf16.msra.mxu0 %v2339
    %3024 = vmatpush.bf16.msra.mxu0 %v2331
    %3025 = vmatpush.bf16.msra.mxu0 %v2323
    %3026 = vmatpush.bf16.msra.mxu0 %v2315
    %3027 = vmatpush.bf16.msra.mxu0 %v2307
    %3028 = vmatpush.bf16.msra.mxu0 %v2299
    %3029 = vmatmul.bf16.gmra.mxu0 %v1385
    %v3030 = vpop.f32.mrf.mxu0
    %v3031 = vadd.f32 %v3012, %v3030
    %v3032 = vpop.f32.mrf.mxu0
    %v3033 = vadd.f32 %v3014, %v3032
    %3034 = vmatmul.bf16.gmra.mxu0 %v1389
    %v3035 = vpop.f32.mrf.mxu0
    %v3036 = vadd.f32 %v3017, %v3035
    %v3037 = vpop.f32.mrf.mxu0
    %v3038 = vadd.f32 %v3019, %v3037
    %3039 = vdwg.mxu0
    %3040 = vmatpush.bf16.msra.mxu0 %v2419
    %3041 = vmatpush.bf16.msra.mxu0 %v2411
    %3042 = vmatpush.bf16.msra.mxu0 %v2403
    %3043 = vmatpush.bf16.msra.mxu0 %v2395
    %3044 = vmatpush.bf16.msra.mxu0 %v2387
    %3045 = vmatpush.bf16.msra.mxu0 %v2379
    %3046 = vmatpush.bf16.msra.mxu0 %v2371
    %3047 = vmatpush.bf16.msra.mxu0 %v2363
    %3048 = vmatmul.bf16.gmra.mxu0 %v1386
    %v3049 = vpop.f32.mrf.mxu0
    %v3050 = vadd.f32 %v3031, %v3049
    %v3051 = vpop.f32.mrf.mxu0
    %v3052 = vadd.f32 %v3033, %v3051
    %3053 = vmatmul.bf16.gmra.mxu0 %v1390
    %v3054 = vpop.f32.mrf.mxu0
    %v3055 = vadd.f32 %v3036, %v3054
    %v3056 = vpop.f32.mrf.mxu0
    %v3057 = vadd.f32 %v3038, %v3056
    %3058 = vdwg.mxu0
    %3059 = vmatpush.bf16.msra.mxu0 %v2228
    %3060 = vmatpush.bf16.msra.mxu0 %v2220
    %3061 = vmatpush.bf16.msra.mxu0 %v2212
    %3062 = vmatpush.bf16.msra.mxu0 %v2204
    %3063 = vmatpush.bf16.msra.mxu0 %v2196
    %3064 = vmatpush.bf16.msra.mxu0 %v2188
    %3065 = vmatpush.bf16.msra.mxu0 %v2180
    %3066 = vmatpush.bf16.msra.mxu0 %v2172
    %3067 = vmatmul.bf16.gmra.mxu0 %v1383
    %v3068 = vpop.f32.mrf.mxu0
    %v3069 = vadd.f32 %v1348, %v3068
    %v3070 = vpop.f32.mrf.mxu0
    %v3071 = vadd.f32 %v1348, %v3070
    %3072 = vmatmul.bf16.gmra.mxu0 %v1387
    %v3073 = vpop.f32.mrf.mxu0
    %v3074 = vadd.f32 %v1348, %v3073
    %v3075 = vpop.f32.mrf.mxu0
    %v3076 = vadd.f32 %v1348, %v3075
    %3077 = vdwg.mxu0
    %3078 = vmatpush.bf16.msra.mxu0 %v2292
    %3079 = vmatpush.bf16.msra.mxu0 %v2284
    %3080 = vmatpush.bf16.msra.mxu0 %v2276
    %3081 = vmatpush.bf16.msra.mxu0 %v2268
    %3082 = vmatpush.bf16.msra.mxu0 %v2260
    %3083 = vmatpush.bf16.msra.mxu0 %v2252
    %3084 = vmatpush.bf16.msra.mxu0 %v2244
    %3085 = vmatpush.bf16.msra.mxu0 %v2236
    %3086 = vmatmul.bf16.gmra.mxu0 %v1384
    %v3087 = vpop.f32.mrf.mxu0
    %v3088 = vadd.f32 %v3069, %v3087
    %v3089 = vpop.f32.mrf.mxu0
    %v3090 = vadd.f32 %v3071, %v3089
    %3091 = vmatmul.bf16.gmra.mxu0 %v1388
    %v3092 = vpop.f32.mrf.mxu0
    %v3093 = vadd.f32 %v3074, %v3092
    %v3094 = vpop.f32.mrf.mxu0
    %v3095 = vadd.f32 %v3076, %v3094
    %3096 = vdwg.mxu0
    %3097 = vmatpush.bf16.msra.mxu0 %v2356
    %3098 = vmatpush.bf16.msra.mxu0 %v2348
    %3099 = vmatpush.bf16.msra.mxu0 %v2340
    %3100 = vmatpush.bf16.msra.mxu0 %v2332
    %3101 = vmatpush.bf16.msra.mxu0 %v2324
    %3102 = vmatpush.bf16.msra.mxu0 %v2316
    %3103 = vmatpush.bf16.msra.mxu0 %v2308
    %3104 = vmatpush.bf16.msra.mxu0 %v2300
    %3105 = vmatmul.bf16.gmra.mxu0 %v1385
    %v3106 = vpop.f32.mrf.mxu0
    %v3107 = vadd.f32 %v3088, %v3106
    %v3108 = vpop.f32.mrf.mxu0
    %v3109 = vadd.f32 %v3090, %v3108
    %3110 = vmatmul.bf16.gmra.mxu0 %v1389
    %v3111 = vpop.f32.mrf.mxu0
    %v3112 = vadd.f32 %v3093, %v3111
    %v3113 = vpop.f32.mrf.mxu0
    %v3114 = vadd.f32 %v3095, %v3113
    %3115 = vdwg.mxu0
    %3116 = vmatpush.bf16.msra.mxu0 %v2420
    %3117 = vmatpush.bf16.msra.mxu0 %v2412
    %3118 = vmatpush.bf16.msra.mxu0 %v2404
    %3119 = vmatpush.bf16.msra.mxu0 %v2396
    %3120 = vmatpush.bf16.msra.mxu0 %v2388
    %3121 = vmatpush.bf16.msra.mxu0 %v2380
    %3122 = vmatpush.bf16.msra.mxu0 %v2372
    %3123 = vmatpush.bf16.msra.mxu0 %v2364
    %3124 = vmatmul.bf16.gmra.mxu0 %v1386
    %v3125 = vpop.f32.mrf.mxu0
    %v3126 = vadd.f32 %v3107, %v3125
    %v3127 = vpop.f32.mrf.mxu0
    %v3128 = vadd.f32 %v3109, %v3127
    %3129 = vmatmul.bf16.gmra.mxu0 %v1390
    %v3130 = vpop.f32.mrf.mxu0
    %v3131 = vadd.f32 %v3112, %v3130
    %v3132 = vpop.f32.mrf.mxu0
    %v3133 = vadd.f32 %v3114, %v3132
    %3134 = vdwg.mxu0
    %3135 = vmatpush.bf16.msra.mxu0 %v2229
    %3136 = vmatpush.bf16.msra.mxu0 %v2221
    %3137 = vmatpush.bf16.msra.mxu0 %v2213
    %3138 = vmatpush.bf16.msra.mxu0 %v2205
    %3139 = vmatpush.bf16.msra.mxu0 %v2197
    %3140 = vmatpush.bf16.msra.mxu0 %v2189
    %3141 = vmatpush.bf16.msra.mxu0 %v2181
    %3142 = vmatpush.bf16.msra.mxu0 %v2173
    %3143 = vmatmul.bf16.gmra.mxu0 %v1383
    %v3144 = vpop.f32.mrf.mxu0
    %v3145 = vadd.f32 %v1349, %v3144
    %v3146 = vpop.f32.mrf.mxu0
    %v3147 = vadd.f32 %v1349, %v3146
    %3148 = vmatmul.bf16.gmra.mxu0 %v1387
    %v3149 = vpop.f32.mrf.mxu0
    %v3150 = vadd.f32 %v1349, %v3149
    %v3151 = vpop.f32.mrf.mxu0
    %v3152 = vadd.f32 %v1349, %v3151
    %3153 = vdwg.mxu0
    %3154 = vmatpush.bf16.msra.mxu0 %v2293
    %3155 = vmatpush.bf16.msra.mxu0 %v2285
    %3156 = vmatpush.bf16.msra.mxu0 %v2277
    %3157 = vmatpush.bf16.msra.mxu0 %v2269
    %3158 = vmatpush.bf16.msra.mxu0 %v2261
    %3159 = vmatpush.bf16.msra.mxu0 %v2253
    %3160 = vmatpush.bf16.msra.mxu0 %v2245
    %3161 = vmatpush.bf16.msra.mxu0 %v2237
    %3162 = vmatmul.bf16.gmra.mxu0 %v1384
    %v3163 = vpop.f32.mrf.mxu0
    %v3164 = vadd.f32 %v3145, %v3163
    %v3165 = vpop.f32.mrf.mxu0
    %v3166 = vadd.f32 %v3147, %v3165
    %3167 = vmatmul.bf16.gmra.mxu0 %v1388
    %v3168 = vpop.f32.mrf.mxu0
    %v3169 = vadd.f32 %v3150, %v3168
    %v3170 = vpop.f32.mrf.mxu0
    %v3171 = vadd.f32 %v3152, %v3170
    %3172 = vdwg.mxu0
    %3173 = vmatpush.bf16.msra.mxu0 %v2357
    %3174 = vmatpush.bf16.msra.mxu0 %v2349
    %3175 = vmatpush.bf16.msra.mxu0 %v2341
    %3176 = vmatpush.bf16.msra.mxu0 %v2333
    %3177 = vmatpush.bf16.msra.mxu0 %v2325
    %3178 = vmatpush.bf16.msra.mxu0 %v2317
    %3179 = vmatpush.bf16.msra.mxu0 %v2309
    %3180 = vmatpush.bf16.msra.mxu0 %v2301
    %3181 = vmatmul.bf16.gmra.mxu0 %v1385
    %v3182 = vpop.f32.mrf.mxu0
    %v3183 = vadd.f32 %v3164, %v3182
    %v3184 = vpop.f32.mrf.mxu0
    %v3185 = vadd.f32 %v3166, %v3184
    %3186 = vmatmul.bf16.gmra.mxu0 %v1389
    %v3187 = vpop.f32.mrf.mxu0
    %v3188 = vadd.f32 %v3169, %v3187
    %v3189 = vpop.f32.mrf.mxu0
    %v3190 = vadd.f32 %v3171, %v3189
    %3191 = vdwg.mxu0
    %3192 = vmatpush.bf16.msra.mxu0 %v2421
    %3193 = vmatpush.bf16.msra.mxu0 %v2413
    %3194 = vmatpush.bf16.msra.mxu0 %v2405
    %3195 = vmatpush.bf16.msra.mxu0 %v2397
    %3196 = vmatpush.bf16.msra.mxu0 %v2389
    %3197 = vmatpush.bf16.msra.mxu0 %v2381
    %3198 = vmatpush.bf16.msra.mxu0 %v2373
    %3199 = vmatpush.bf16.msra.mxu0 %v2365
    %3200 = vmatmul.bf16.gmra.mxu0 %v1386
    %v3201 = vpop.f32.mrf.mxu0
    %v3202 = vadd.f32 %v3183, %v3201
    %v3203 = vpop.f32.mrf.mxu0
    %v3204 = vadd.f32 %v3185, %v3203
    %3205 = vmatmul.bf16.gmra.mxu0 %v1390
    %v3206 = vpop.f32.mrf.mxu0
    %v3207 = vadd.f32 %v3188, %v3206
    %v3208 = vpop.f32.mrf.mxu0
    %v3209 = vadd.f32 %v3190, %v3208
    %3210 = vdwg.mxu0
    %3211 = vmatpush.bf16.msra.mxu0 %v2230
    %3212 = vmatpush.bf16.msra.mxu0 %v2222
    %3213 = vmatpush.bf16.msra.mxu0 %v2214
    %3214 = vmatpush.bf16.msra.mxu0 %v2206
    %3215 = vmatpush.bf16.msra.mxu0 %v2198
    %3216 = vmatpush.bf16.msra.mxu0 %v2190
    %3217 = vmatpush.bf16.msra.mxu0 %v2182
    %3218 = vmatpush.bf16.msra.mxu0 %v2174
    %3219 = vmatmul.bf16.gmra.mxu0 %v1383
    %v3220 = vpop.f32.mrf.mxu0
    %v3221 = vadd.f32 %v1350, %v3220
    %v3222 = vpop.f32.mrf.mxu0
    %v3223 = vadd.f32 %v1350, %v3222
    %3224 = vmatmul.bf16.gmra.mxu0 %v1387
    %v3225 = vpop.f32.mrf.mxu0
    %v3226 = vadd.f32 %v1350, %v3225
    %v3227 = vpop.f32.mrf.mxu0
    %v3228 = vadd.f32 %v1350, %v3227
    %3229 = vdwg.mxu0
    %3230 = vmatpush.bf16.msra.mxu0 %v2294
    %3231 = vmatpush.bf16.msra.mxu0 %v2286
    %3232 = vmatpush.bf16.msra.mxu0 %v2278
    %3233 = vmatpush.bf16.msra.mxu0 %v2270
    %3234 = vmatpush.bf16.msra.mxu0 %v2262
    %3235 = vmatpush.bf16.msra.mxu0 %v2254
    %3236 = vmatpush.bf16.msra.mxu0 %v2246
    %3237 = vmatpush.bf16.msra.mxu0 %v2238
    %3238 = vmatmul.bf16.gmra.mxu0 %v1384
    %v3239 = vpop.f32.mrf.mxu0
    %v3240 = vadd.f32 %v3221, %v3239
    %v3241 = vpop.f32.mrf.mxu0
    %v3242 = vadd.f32 %v3223, %v3241
    %3243 = vmatmul.bf16.gmra.mxu0 %v1388
    %v3244 = vpop.f32.mrf.mxu0
    %v3245 = vadd.f32 %v3226, %v3244
    %v3246 = vpop.f32.mrf.mxu0
    %v3247 = vadd.f32 %v3228, %v3246
    %3248 = vdwg.mxu0
    %3249 = vmatpush.bf16.msra.mxu0 %v2358
    %3250 = vmatpush.bf16.msra.mxu0 %v2350
    %3251 = vmatpush.bf16.msra.mxu0 %v2342
    %3252 = vmatpush.bf16.msra.mxu0 %v2334
    %3253 = vmatpush.bf16.msra.mxu0 %v2326
    %3254 = vmatpush.bf16.msra.mxu0 %v2318
    %3255 = vmatpush.bf16.msra.mxu0 %v2310
    %3256 = vmatpush.bf16.msra.mxu0 %v2302
    %3257 = vmatmul.bf16.gmra.mxu0 %v1385
    %v3258 = vpop.f32.mrf.mxu0
    %v3259 = vadd.f32 %v3240, %v3258
    %v3260 = vpop.f32.mrf.mxu0
    %v3261 = vadd.f32 %v3242, %v3260
    %3262 = vmatmul.bf16.gmra.mxu0 %v1389
    %v3263 = vpop.f32.mrf.mxu0
    %v3264 = vadd.f32 %v3245, %v3263
    %v3265 = vpop.f32.mrf.mxu0
    %v3266 = vadd.f32 %v3247, %v3265
    %3267 = vdwg.mxu0
    %3268 = vmatpush.bf16.msra.mxu0 %v2422
    %3269 = vmatpush.bf16.msra.mxu0 %v2414
    %3270 = vmatpush.bf16.msra.mxu0 %v2406
    %3271 = vmatpush.bf16.msra.mxu0 %v2398
    %3272 = vmatpush.bf16.msra.mxu0 %v2390
    %3273 = vmatpush.bf16.msra.mxu0 %v2382
    %3274 = vmatpush.bf16.msra.mxu0 %v2374
    %3275 = vmatpush.bf16.msra.mxu0 %v2366
    %3276 = vmatmul.bf16.gmra.mxu0 %v1386
    %v3277 = vpop.f32.mrf.mxu0
    %v3278 = vadd.f32 %v3259, %v3277
    %v3279 = vpop.f32.mrf.mxu0
    %v3280 = vadd.f32 %v3261, %v3279
    %3281 = vmatmul.bf16.gmra.mxu0 %v1390
    %v3282 = vpop.f32.mrf.mxu0
    %v3283 = vadd.f32 %v3264, %v3282
    %v3284 = vpop.f32.mrf.mxu0
    %v3285 = vadd.f32 %v3266, %v3284
    %3286 = vdwg.mxu0
    %v3288 = vrot.slane %v918, 1
    %v3289 = vperm.slane %v918, 0
    %v3290 = vperm.slane %v3288, 0
    %v3293 = vmul.f32 %v2746, %v3289
    %v3294 = vmul.f32 %v2748, %v3289
    %v3295 = vmul.f32 %v2751, %v3290
    %v3296 = vmul.f32 %v2753, %v3290
    %3297 = vadd.xlane.f32.xlu0 %v3293
    %v3298 = vpop.xlane.xlu0 %3297
    %3299 = vadd.xlane.f32.xlu0 %v3294
    %v3300 = vpop.xlane.xlu0 %3299
    %3301 = vadd.xlane.f32.xlu0 %v3295
    %v3302 = vpop.xlane.xlu0 %3301
    %3303 = vadd.xlane.f32.xlu0 %v3296
    %v3304 = vpop.xlane.xlu0 %3303
    %v3309 = vlaneseq
    %v3310 = vand.u32 %v3309, 127
    %v3311 = vperm.slane %v3298, %v3310
    %v3312 = vadd.s32 %v3310, 4294967288
    %v3313 = vperm.slane %v3300, %v3312
    %vm3314 = vcmask 130112
    %v3315 = vsel %vm3314, %v3313, %v3311
    %v3316 = vperm.slane %v3302, %v3310
    %v3317 = vperm.slane %v3304, %v3312
    %v3318 = vsel %vm3314, %v3317, %v3316
    %vm3319 = vcmask 1041409
    %v3320 = vsel %vm3319, %v3318, %v3315
    %vm3322 = vcmask 123904
    %v3323 = vsel %vm3322, %v3320, -inf
    %3324 = vmax.xlane.f32.xlu0 %v3323
    %v3325 = vpop.xlane.xlu0 %3324
    %v3327 = vperm.slane %v3325, 0
    %v3328 = vperm.slane %v3325, 1
    %v3331 = vsub.f32 %v3298, %v3327
    %v3332 = vsub.f32 %v3300, %v3327
    %v3333 = vsub.f32 %v3302, %v3328
    %v3334 = vsub.f32 %v3304, %v3328
    %v3335 = vmul.f32 %v3331, 1.442695
    %v3336 = vpow.pop %v3335
    %v3337 = vmul.f32 %v3332, 1.442695
    %v3338 = vpow.pop %v3337
    %v3339 = vmul.f32 %v3333, 1.442695
    %v3340 = vpow.pop %v3339
    %v3341 = vmul.f32 %v3334, 1.442695
    %v3342 = vpow.pop %v3341
    %3347 = vset.pattern.permute.xlu0 0
    %3348 = vperm.xlu0 %3347, %v3336
    %v3349 = vpop.permute.xlu0 %3348
    %3350 = vset.pattern.permute.xlu0 0
    %3351 = vperm.xlu0 %3350, %v3338
    %v3352 = vpop.permute.xlu0 %3351
    %3353 = vset.pattern.permute.xlu0 0
    %3354 = vperm.xlu0 %3353, %v3340
    %v3355 = vpop.permute.xlu0 %3354
    %3356 = vset.pattern.permute.xlu0 0
    %3357 = vperm.xlu0 %3356, %v3342
    %v3358 = vpop.permute.xlu0 %3357
    %v3359 = vperm.slane %v3349, %v3310
    %v3360 = vperm.slane %v3352, %v3312
    %v3361 = vsel %vm3314, %v3360, %v3359
    %v3362 = vperm.slane %v3355, %v3310
    %v3363 = vperm.slane %v3358, %v3312
    %v3364 = vsel %vm3314, %v3363, %v3362
    %v3365 = vsel %vm3319, %v3364, %v3361
    %v3367 = vsel %vm3322, %v3365, 0.0
    %3368 = vadd.xlane.f32.xlu0 %v3367
    %v3369 = vpop.xlane.xlu0 %3368
    %v3370 = vrcp.pop %v3369
    %v3372 = vperm.slane %v3370, 0
    %v3373 = vperm.slane %v3370, 1
    %v3376 = vmul.f32 %v3336, %v3372
    %v3377 = vmul.f32 %v3338, %v3372
    %v3378 = vmul.f32 %v3340, %v3373
    %v3379 = vmul.f32 %v3342, %v3373
    %v3381 = vrot.slane %v970, 1
    %v3382 = vperm.slane %v970, 0
    %v3383 = vperm.slane %v3381, 0
    %v3386 = vmul.f32 %v2822, %v3382
    %v3387 = vmul.f32 %v2824, %v3382
    %v3388 = vmul.f32 %v2827, %v3383
    %v3389 = vmul.f32 %v2829, %v3383
    %3390 = vadd.xlane.f32.xlu0 %v3386
    %v3391 = vpop.xlane.xlu0 %3390
    %3392 = vadd.xlane.f32.xlu0 %v3387
    %v3393 = vpop.xlane.xlu0 %3392
    %3394 = vadd.xlane.f32.xlu0 %v3388
    %v3395 = vpop.xlane.xlu0 %3394
    %3396 = vadd.xlane.f32.xlu0 %v3389
    %v3397 = vpop.xlane.xlu0 %3396
    %v3402 = vperm.slane %v3391, %v3310
    %v3403 = vperm.slane %v3393, %v3312
    %v3404 = vsel %vm3314, %v3403, %v3402
    %v3405 = vperm.slane %v3395, %v3310
    %v3406 = vperm.slane %v3397, %v3312
    %v3407 = vsel %vm3314, %v3406, %v3405
    %v3408 = vsel %vm3319, %v3407, %v3404
    %v3410 = vsel %vm3322, %v3408, -inf
    %3411 = vmax.xlane.f32.xlu0 %v3410
    %v3412 = vpop.xlane.xlu0 %3411
    %v3414 = vperm.slane %v3412, 0
    %v3415 = vperm.slane %v3412, 1
    %v3418 = vsub.f32 %v3391, %v3414
    %v3419 = vsub.f32 %v3393, %v3414
    %v3420 = vsub.f32 %v3395, %v3415
    %v3421 = vsub.f32 %v3397, %v3415
    %v3422 = vmul.f32 %v3418, 1.442695
    %v3423 = vpow.pop %v3422
    %v3424 = vmul.f32 %v3419, 1.442695
    %v3425 = vpow.pop %v3424
    %v3426 = vmul.f32 %v3420, 1.442695
    %v3427 = vpow.pop %v3426
    %v3428 = vmul.f32 %v3421, 1.442695
    %v3429 = vpow.pop %v3428
    %3434 = vset.pattern.permute.xlu0 0
    %3435 = vperm.xlu0 %3434, %v3423
    %v3436 = vpop.permute.xlu0 %3435
    %3437 = vset.pattern.permute.xlu0 0
    %3438 = vperm.xlu0 %3437, %v3425
    %v3439 = vpop.permute.xlu0 %3438
    %3440 = vset.pattern.permute.xlu0 0
    %3441 = vperm.xlu0 %3440, %v3427
    %v3442 = vpop.permute.xlu0 %3441
    %3443 = vset.pattern.permute.xlu0 0
    %3444 = vperm.xlu0 %3443, %v3429
    %v3445 = vpop.permute.xlu0 %3444
    %v3446 = vperm.slane %v3436, %v3310
    %v3447 = vperm.slane %v3439, %v3312
    %v3448 = vsel %vm3314, %v3447, %v3446
    %v3449 = vperm.slane %v3442, %v3310
    %v3450 = vperm.slane %v3445, %v3312
    %v3451 = vsel %vm3314, %v3450, %v3449
    %v3452 = vsel %vm3319, %v3451, %v3448
    %v3454 = vsel %vm3322, %v3452, 0.0
    %3455 = vadd.xlane.f32.xlu0 %v3454
    %v3456 = vpop.xlane.xlu0 %3455
    %v3457 = vrcp.pop %v3456
    %v3459 = vperm.slane %v3457, 0
    %v3460 = vperm.slane %v3457, 1
    %v3463 = vmul.f32 %v3423, %v3459
    %v3464 = vmul.f32 %v3425, %v3459
    %v3465 = vmul.f32 %v3427, %v3460
    %v3466 = vmul.f32 %v3429, %v3460
    %v3468 = vrot.slane %v1022, 1
    %v3469 = vperm.slane %v1022, 0
    %v3470 = vperm.slane %v3468, 0
    %v3473 = vmul.f32 %v2898, %v3469
    %v3474 = vmul.f32 %v2900, %v3469
    %v3475 = vmul.f32 %v2903, %v3470
    %v3476 = vmul.f32 %v2905, %v3470
    %3477 = vadd.xlane.f32.xlu0 %v3473
    %v3478 = vpop.xlane.xlu0 %3477
    %3479 = vadd.xlane.f32.xlu0 %v3474
    %v3480 = vpop.xlane.xlu0 %3479
    %3481 = vadd.xlane.f32.xlu0 %v3475
    %v3482 = vpop.xlane.xlu0 %3481
    %3483 = vadd.xlane.f32.xlu0 %v3476
    %v3484 = vpop.xlane.xlu0 %3483
    %v3489 = vperm.slane %v3478, %v3310
    %v3490 = vperm.slane %v3480, %v3312
    %v3491 = vsel %vm3314, %v3490, %v3489
    %v3492 = vperm.slane %v3482, %v3310
    %v3493 = vperm.slane %v3484, %v3312
    %v3494 = vsel %vm3314, %v3493, %v3492
    %v3495 = vsel %vm3319, %v3494, %v3491
    %v3497 = vsel %vm3322, %v3495, -inf
    %3498 = vmax.xlane.f32.xlu0 %v3497
    %v3499 = vpop.xlane.xlu0 %3498
    %v3501 = vperm.slane %v3499, 0
    %v3502 = vperm.slane %v3499, 1
    %v3505 = vsub.f32 %v3478, %v3501
    %v3506 = vsub.f32 %v3480, %v3501
    %v3507 = vsub.f32 %v3482, %v3502
    %v3508 = vsub.f32 %v3484, %v3502
    %v3509 = vmul.f32 %v3505, 1.442695
    %v3510 = vpow.pop %v3509
    %v3511 = vmul.f32 %v3506, 1.442695
    %v3512 = vpow.pop %v3511
    %v3513 = vmul.f32 %v3507, 1.442695
    %v3514 = vpow.pop %v3513
    %v3515 = vmul.f32 %v3508, 1.442695
    %v3516 = vpow.pop %v3515
    %3521 = vset.pattern.permute.xlu0 0
    %3522 = vperm.xlu0 %3521, %v3510
    %v3523 = vpop.permute.xlu0 %3522
    %3524 = vset.pattern.permute.xlu0 0
    %3525 = vperm.xlu0 %3524, %v3512
    %v3526 = vpop.permute.xlu0 %3525
    %3527 = vset.pattern.permute.xlu0 0
    %3528 = vperm.xlu0 %3527, %v3514
    %v3529 = vpop.permute.xlu0 %3528
    %3530 = vset.pattern.permute.xlu0 0
    %3531 = vperm.xlu0 %3530, %v3516
    %v3532 = vpop.permute.xlu0 %3531
    %v3533 = vperm.slane %v3523, %v3310
    %v3534 = vperm.slane %v3526, %v3312
    %v3535 = vsel %vm3314, %v3534, %v3533
    %v3536 = vperm.slane %v3529, %v3310
    %v3537 = vperm.slane %v3532, %v3312
    %v3538 = vsel %vm3314, %v3537, %v3536
    %v3539 = vsel %vm3319, %v3538, %v3535
    %v3541 = vsel %vm3322, %v3539, 0.0
    %3542 = vadd.xlane.f32.xlu0 %v3541
    %v3543 = vpop.xlane.xlu0 %3542
    %v3544 = vrcp.pop %v3543
    %v3546 = vperm.slane %v3544, 0
    %v3547 = vperm.slane %v3544, 1
    %v3550 = vmul.f32 %v3510, %v3546
    %v3551 = vmul.f32 %v3512, %v3546
    %v3552 = vmul.f32 %v3514, %v3547
    %v3553 = vmul.f32 %v3516, %v3547
    %v3555 = vrot.slane %v1074, 1
    %v3556 = vperm.slane %v1074, 0
    %v3557 = vperm.slane %v3555, 0
    %v3560 = vmul.f32 %v2974, %v3556
    %v3561 = vmul.f32 %v2976, %v3556
    %v3562 = vmul.f32 %v2979, %v3557
    %v3563 = vmul.f32 %v2981, %v3557
    %3564 = vadd.xlane.f32.xlu0 %v3560
    %v3565 = vpop.xlane.xlu0 %3564
    %3566 = vadd.xlane.f32.xlu0 %v3561
    %v3567 = vpop.xlane.xlu0 %3566
    %3568 = vadd.xlane.f32.xlu0 %v3562
    %v3569 = vpop.xlane.xlu0 %3568
    %3570 = vadd.xlane.f32.xlu0 %v3563
    %v3571 = vpop.xlane.xlu0 %3570
    %v3576 = vperm.slane %v3565, %v3310
    %v3577 = vperm.slane %v3567, %v3312
    %v3578 = vsel %vm3314, %v3577, %v3576
    %v3579 = vperm.slane %v3569, %v3310
    %v3580 = vperm.slane %v3571, %v3312
    %v3581 = vsel %vm3314, %v3580, %v3579
    %v3582 = vsel %vm3319, %v3581, %v3578
    %v3584 = vsel %vm3322, %v3582, -inf
    %3585 = vmax.xlane.f32.xlu0 %v3584
    %v3586 = vpop.xlane.xlu0 %3585
    %v3588 = vperm.slane %v3586, 0
    %v3589 = vperm.slane %v3586, 1
    %v3592 = vsub.f32 %v3565, %v3588
    %v3593 = vsub.f32 %v3567, %v3588
    %v3594 = vsub.f32 %v3569, %v3589
    %v3595 = vsub.f32 %v3571, %v3589
    %v3596 = vmul.f32 %v3592, 1.442695
    %v3597 = vpow.pop %v3596
    %v3598 = vmul.f32 %v3593, 1.442695
    %v3599 = vpow.pop %v3598
    %v3600 = vmul.f32 %v3594, 1.442695
    %v3601 = vpow.pop %v3600
    %v3602 = vmul.f32 %v3595, 1.442695
    %v3603 = vpow.pop %v3602
    %3608 = vset.pattern.permute.xlu0 0
    %3609 = vperm.xlu0 %3608, %v3597
    %v3610 = vpop.permute.xlu0 %3609
    %3611 = vset.pattern.permute.xlu0 0
    %3612 = vperm.xlu0 %3611, %v3599
    %v3613 = vpop.permute.xlu0 %3612
    %3614 = vset.pattern.permute.xlu0 0
    %3615 = vperm.xlu0 %3614, %v3601
    %v3616 = vpop.permute.xlu0 %3615
    %3617 = vset.pattern.permute.xlu0 0
    %3618 = vperm.xlu0 %3617, %v3603
    %v3619 = vpop.permute.xlu0 %3618
    %v3620 = vperm.slane %v3610, %v3310
    %v3621 = vperm.slane %v3613, %v3312
    %v3622 = vsel %vm3314, %v3621, %v3620
    %v3623 = vperm.slane %v3616, %v3310
    %v3624 = vperm.slane %v3619, %v3312
    %v3625 = vsel %vm3314, %v3624, %v3623
    %v3626 = vsel %vm3319, %v3625, %v3622
    %v3628 = vsel %vm3322, %v3626, 0.0
    %3629 = vadd.xlane.f32.xlu0 %v3628
    %v3630 = vpop.xlane.xlu0 %3629
    %v3631 = vrcp.pop %v3630
    %v3633 = vperm.slane %v3631, 0
    %v3634 = vperm.slane %v3631, 1
    %v3637 = vmul.f32 %v3597, %v3633
    %v3638 = vmul.f32 %v3599, %v3633
    %v3639 = vmul.f32 %v3601, %v3634
    %v3640 = vmul.f32 %v3603, %v3634
    %v3641 = vadd.f32 %v3376, %v3463
    %v3642 = vadd.f32 %v3377, %v3464
    %v3643 = vadd.f32 %v3378, %v3465
    %v3644 = vadd.f32 %v3379, %v3466
    %v3645 = vadd.f32 %v3641, %v3550
    %v3646 = vadd.f32 %v3642, %v3551
    %v3647 = vadd.f32 %v3643, %v3552
    %v3648 = vadd.f32 %v3644, %v3553
    %v3649 = vadd.f32 %v3645, %v3637
    %v3650 = vadd.f32 %v3646, %v3638
    %v3651 = vadd.f32 %v3647, %v3639
    %v3652 = vadd.f32 %v3648, %v3640
    %v3653 = vmul.f32 %v3649, 0.25
    %v3654 = vmul.f32 %v3650, 0.25
    %v3655 = vmul.f32 %v3651, 0.25
    %v3656 = vmul.f32 %v3652, 0.25
    %3661 = vset.pattern.permute.xlu0 0
    %3662 = vperm.xlu0 %3661, %v3653
    %v3663 = vpop.permute.xlu0 %3662
    %3664 = vset.pattern.permute.xlu0 0
    %3665 = vperm.xlu0 %3664, %v3654
    %v3666 = vpop.permute.xlu0 %3665
    %3667 = vset.pattern.permute.xlu0 0
    %3668 = vperm.xlu0 %3667, %v3655
    %v3669 = vpop.permute.xlu0 %3668
    %3670 = vset.pattern.permute.xlu0 0
    %3671 = vperm.xlu0 %3670, %v3656
    %v3672 = vpop.permute.xlu0 %3671
    %v3673 = vperm.slane %v3663, %v3310
    %v3674 = vperm.slane %v3666, %v3312
    %v3675 = vsel %vm3314, %v3674, %v3673
    %v3676 = vperm.slane %v3669, %v3310
    %v3677 = vperm.slane %v3672, %v3312
    %v3678 = vsel %vm3314, %v3677, %v3676
    %v3679 = vsel %vm3319, %v3678, %v3675
    %3681 = vst.msk [vmem:[#allocation11] sm:$0x3] %vm3322, %v3679
    %3683 = vset.pattern.permute.xlu0 0
    %3684 = vperm.xlu0 %3683, %v3376
    %v3685 = vpop.permute.xlu0 %3684
    %3688 = vset.pattern.permute.xlu0 0
    %3689 = vperm.xlu0 %3688, %v3377
    %v3690 = vpop.permute.xlu0 %3689
    %3693 = vset.pattern.permute.xlu0 0
    %3694 = vperm.xlu0 %3693, %v3378
    %v3695 = vpop.permute.xlu0 %3694
    %3698 = vset.pattern.permute.xlu0 0
    %3699 = vperm.xlu0 %3698, %v3379
    %v3700 = vpop.permute.xlu0 %3699
    %v3702 = vmul.f32 %v3050, %v3685
    %v3703 = vmul.f32 %v3052, %v3690
    %v3704 = vmul.f32 %v3055, %v3695
    %v3705 = vmul.f32 %v3057, %v3700
    %v3706 = vadd.f32 %v3702, %v3703
    %v3707 = vrot.slane %v3706, 4
    %v3708 = vadd.f32 %v3706, %v3707
    %v3709 = vrot.slane %v3708, 2
    %v3710 = vadd.f32 %v3708, %v3709
    %v3711 = vrot.slane %v3710, 1
    %v3712 = vadd.f32 %v3710, %v3711
    %v3713 = vadd.f32 %v3704, %v3705
    %v3714 = vrot.slane %v3713, 4
    %v3715 = vadd.f32 %v3713, %v3714
    %v3716 = vrot.slane %v3715, 2
    %v3717 = vadd.f32 %v3715, %v3716
    %v3718 = vrot.slane %v3717, 1
    %v3719 = vadd.f32 %v3717, %v3718
    %3721 = vset.pattern.permute.xlu0 0
    %3722 = vperm.xlu0 %3721, %v3463
    %v3723 = vpop.permute.xlu0 %3722
    %3726 = vset.pattern.permute.xlu0 0
    %3727 = vperm.xlu0 %3726, %v3464
    %v3728 = vpop.permute.xlu0 %3727
    %3731 = vset.pattern.permute.xlu0 0
    %3732 = vperm.xlu0 %3731, %v3465
    %v3733 = vpop.permute.xlu0 %3732
    %3736 = vset.pattern.permute.xlu0 0
    %3737 = vperm.xlu0 %3736, %v3466
    %v3738 = vpop.permute.xlu0 %3737
    %v3740 = vmul.f32 %v3126, %v3723
    %v3741 = vmul.f32 %v3128, %v3728
    %v3742 = vmul.f32 %v3131, %v3733
    %v3743 = vmul.f32 %v3133, %v3738
    %v3744 = vadd.f32 %v3740, %v3741
    %v3745 = vrot.slane %v3744, 4
    %v3746 = vadd.f32 %v3744, %v3745
    %v3747 = vrot.slane %v3746, 2
    %v3748 = vadd.f32 %v3746, %v3747
    %v3749 = vrot.slane %v3748, 1
    %v3750 = vadd.f32 %v3748, %v3749
    %v3751 = vadd.f32 %v3742, %v3743
    %v3752 = vrot.slane %v3751, 4
    %v3753 = vadd.f32 %v3751, %v3752
    %v3754 = vrot.slane %v3753, 2
    %v3755 = vadd.f32 %v3753, %v3754
    %v3756 = vrot.slane %v3755, 1
    %v3757 = vadd.f32 %v3755, %v3756
    %3759 = vset.pattern.permute.xlu0 0
    %3760 = vperm.xlu0 %3759, %v3550
    %v3761 = vpop.permute.xlu0 %3760
    %3764 = vset.pattern.permute.xlu0 0
    %3765 = vperm.xlu0 %3764, %v3551
    %v3766 = vpop.permute.xlu0 %3765
    %3769 = vset.pattern.permute.xlu0 0
    %3770 = vperm.xlu0 %3769, %v3552
    %v3771 = vpop.permute.xlu0 %3770
    %3774 = vset.pattern.permute.xlu0 0
    %3775 = vperm.xlu0 %3774, %v3553
    %v3776 = vpop.permute.xlu0 %3775
    %v3778 = vmul.f32 %v3202, %v3761
    %v3779 = vmul.f32 %v3204, %v3766
    %v3780 = vmul.f32 %v3207, %v3771
    %v3781 = vmul.f32 %v3209, %v3776
    %v3782 = vadd.f32 %v3778, %v3779
    %v3783 = vrot.slane %v3782, 4
    %v3784 = vadd.f32 %v3782, %v3783
    %v3785 = vrot.slane %v3784, 2
    %v3786 = vadd.f32 %v3784, %v3785
    %v3787 = vrot.slane %v3786, 1
    %v3788 = vadd.f32 %v3786, %v3787
    %v3789 = vadd.f32 %v3780, %v3781
    %v3790 = vrot.slane %v3789, 4
    %v3791 = vadd.f32 %v3789, %v3790
    %v3792 = vrot.slane %v3791, 2
    %v3793 = vadd.f32 %v3791, %v3792
    %v3794 = vrot.slane %v3793, 1
    %v3795 = vadd.f32 %v3793, %v3794
    %3797 = vset.pattern.permute.xlu0 0
    %3798 = vperm.xlu0 %3797, %v3637
    %v3799 = vpop.permute.xlu0 %3798
    %3802 = vset.pattern.permute.xlu0 0
    %3803 = vperm.xlu0 %3802, %v3638
    %v3804 = vpop.permute.xlu0 %3803
    %3807 = vset.pattern.permute.xlu0 0
    %3808 = vperm.xlu0 %3807, %v3639
    %v3809 = vpop.permute.xlu0 %3808
    %3812 = vset.pattern.permute.xlu0 0
    %3813 = vperm.xlu0 %3812, %v3640
    %v3814 = vpop.permute.xlu0 %3813
    %v3816 = vmul.f32 %v3278, %v3799
    %v3817 = vmul.f32 %v3280, %v3804
    %v3818 = vmul.f32 %v3283, %v3809
    %v3819 = vmul.f32 %v3285, %v3814
    %v3820 = vadd.f32 %v3816, %v3817
    %v3821 = vrot.slane %v3820, 4
    %v3822 = vadd.f32 %v3820, %v3821
    %v3823 = vrot.slane %v3822, 2
    %v3824 = vadd.f32 %v3822, %v3823
    %v3825 = vrot.slane %v3824, 1
    %v3826 = vadd.f32 %v3824, %v3825
    %v3827 = vadd.f32 %v3818, %v3819
    %v3828 = vrot.slane %v3827, 4
    %v3829 = vadd.f32 %v3827, %v3828
    %v3830 = vrot.slane %v3829, 2
    %v3831 = vadd.f32 %v3829, %v3830
    %v3832 = vrot.slane %v3831, 1
    %v3833 = vadd.f32 %v3831, %v3832
    %v3836 = vsel %vm3319, %v3719, %v3712
    %v3840 = vsel %vm3319, %v3757, %v3750
    %v3844 = vsel %vm3319, %v3795, %v3788
    %v3848 = vsel %vm3319, %v3833, %v3826
    %v3850 = vpack.c.bf16 %v3836, %v3836
    %v3851 = vpack.c.bf16 %v3840, %v3840
    %v3852 = vpack.c.bf16 %v3844, %v3844
    %v3853 = vpack.c.bf16 %v3848, %v3848
    %v3854 = vld [vmem:[#allocation7 + $0x30] sm:$0xff]
    %v3855 = vld [vmem:[#allocation7 + $0x38] sm:$0xff]
    %v3856 = vld [vmem:[#allocation7 + $0x90] sm:$0xff]
    %v3857 = vld [vmem:[#allocation7 + $0x98] sm:$0xff]
    %v3858 = vld [vmem:[#allocation7 + $0xf0] sm:$0xff]
    %v3859 = vld [vmem:[#allocation7 + $0xf8] sm:$0xff]
    %v3860 = vld [vmem:[#allocation7 + $0x150] sm:$0xff]
    %v3861 = vld [vmem:[#allocation7 + $0x158] sm:$0xff]
    %v3862 = vld [vmem:[#allocation7 + $0x1b0] sm:$0xff]
    %v3863 = vld [vmem:[#allocation7 + $0x1b8] sm:$0xff]
    %v3864 = vld [vmem:[#allocation7 + $0x210] sm:$0xff]
    %v3865 = vld [vmem:[#allocation7 + $0x218] sm:$0xff]
    %v3866 = vld [vmem:[#allocation7 + $0x270] sm:$0xff]
    %v3867 = vld [vmem:[#allocation7 + $0x278] sm:$0xff]
    %v3868 = vld [vmem:[#allocation7 + $0x2d0] sm:$0xff]
    %v3869 = vld [vmem:[#allocation7 + $0x2d8] sm:$0xff]
    %v3870 = vld [vmem:[#allocation7 + $0x330] sm:$0xff]
    %v3871 = vld [vmem:[#allocation7 + $0x338] sm:$0xff]
    %v3872 = vld [vmem:[#allocation7 + $0x390] sm:$0xff]
    %v3873 = vld [vmem:[#allocation7 + $0x398] sm:$0xff]
    %v3874 = vld [vmem:[#allocation7 + $0x3f0] sm:$0xff]
    %v3875 = vld [vmem:[#allocation7 + $0x3f8] sm:$0xff]
    %v3876 = vld [vmem:[#allocation7 + $0x450] sm:$0xff]
    %v3877 = vld [vmem:[#allocation7 + $0x458] sm:$0xff]
    %v3878 = vld [vmem:[#allocation7 + $0x4b0] sm:$0xff]
    %v3879 = vld [vmem:[#allocation7 + $0x4b8] sm:$0xff]
    %v3880 = vld [vmem:[#allocation7 + $0x510] sm:$0xff]
    %v3881 = vld [vmem:[#allocation7 + $0x518] sm:$0xff]
    %v3882 = vld [vmem:[#allocation7 + $0x570] sm:$0xff]
    %v3883 = vld [vmem:[#allocation7 + $0x578] sm:$0xff]
    %v3884 = vld [vmem:[#allocation7 + $0x5d0] sm:$0xff]
    %v3885 = vld [vmem:[#allocation7 + $0x5d8] sm:$0xff]
    %v3886 = vld [vmem:[#allocation7 + $0x630] sm:$0xff]
    %v3887 = vld [vmem:[#allocation7 + $0x638] sm:$0xff]
    %v3888 = vld [vmem:[#allocation7 + $0x690] sm:$0xff]
    %v3889 = vld [vmem:[#allocation7 + $0x698] sm:$0xff]
    %v3890 = vld [vmem:[#allocation7 + $0x6f0] sm:$0xff]
    %v3891 = vld [vmem:[#allocation7 + $0x6f8] sm:$0xff]
    %v3892 = vld [vmem:[#allocation7 + $0x750] sm:$0xff]
    %v3893 = vld [vmem:[#allocation7 + $0x758] sm:$0xff]
    %v3894 = vld [vmem:[#allocation7 + $0x7b0] sm:$0xff]
    %v3895 = vld [vmem:[#allocation7 + $0x7b8] sm:$0xff]
    %v3896 = vld [vmem:[#allocation7 + $0x810] sm:$0xff]
    %v3897 = vld [vmem:[#allocation7 + $0x818] sm:$0xff]
    %v3898 = vld [vmem:[#allocation7 + $0x870] sm:$0xff]
    %v3899 = vld [vmem:[#allocation7 + $0x878] sm:$0xff]
    %v3900 = vld [vmem:[#allocation7 + $0x8d0] sm:$0xff]
    %v3901 = vld [vmem:[#allocation7 + $0x8d8] sm:$0xff]
    %v3902 = vld [vmem:[#allocation7 + $0x930] sm:$0xff]
    %v3903 = vld [vmem:[#allocation7 + $0x938] sm:$0xff]
    %v3904 = vld [vmem:[#allocation7 + $0x990] sm:$0xff]
    %v3905 = vld [vmem:[#allocation7 + $0x998] sm:$0xff]
    %v3906 = vld [vmem:[#allocation7 + $0x9f0] sm:$0xff]
    %v3907 = vld [vmem:[#allocation7 + $0x9f8] sm:$0xff]
    %v3908 = vld [vmem:[#allocation7 + $0xa50] sm:$0xff]
    %v3909 = vld [vmem:[#allocation7 + $0xa58] sm:$0xff]
    %v3910 = vld [vmem:[#allocation7 + $0xab0] sm:$0xff]
    %v3911 = vld [vmem:[#allocation7 + $0xab8] sm:$0xff]
    %v3912 = vld [vmem:[#allocation7 + $0xb10] sm:$0xff]
    %v3913 = vld [vmem:[#allocation7 + $0xb18] sm:$0xff]
    %v3914 = vld [vmem:[#allocation7 + $0xb70] sm:$0xff]
    %v3915 = vld [vmem:[#allocation7 + $0xb78] sm:$0xff]
    %v3916 = vld [vmem:[#allocation7 + $0xbd0] sm:$0xff]
    %v3917 = vld [vmem:[#allocation7 + $0xbd8] sm:$0xff]
    %v3918 = vld [vmem:[#allocation7 + $0xc30] sm:$0xff]
    %v3919 = vld [vmem:[#allocation7 + $0xc38] sm:$0xff]
    %v3920 = vld [vmem:[#allocation7 + $0xc90] sm:$0xff]
    %v3921 = vld [vmem:[#allocation7 + $0xc98] sm:$0xff]
    %v3922 = vld [vmem:[#allocation7 + $0xcf0] sm:$0xff]
    %v3923 = vld [vmem:[#allocation7 + $0xcf8] sm:$0xff]
    %v3924 = vld [vmem:[#allocation7 + $0xd50] sm:$0xff]
    %v3925 = vld [vmem:[#allocation7 + $0xd58] sm:$0xff]
    %v3926 = vld [vmem:[#allocation7 + $0xdb0] sm:$0xff]
    %v3927 = vld [vmem:[#allocation7 + $0xdb8] sm:$0xff]
    %v3928 = vld [vmem:[#allocation7 + $0xe10] sm:$0xff]
    %v3929 = vld [vmem:[#allocation7 + $0xe18] sm:$0xff]
    %v3930 = vld [vmem:[#allocation7 + $0xe70] sm:$0xff]
    %v3931 = vld [vmem:[#allocation7 + $0xe78] sm:$0xff]
    %v3932 = vld [vmem:[#allocation7 + $0xed0] sm:$0xff]
    %v3933 = vld [vmem:[#allocation7 + $0xed8] sm:$0xff]
    %v3934 = vld [vmem:[#allocation7 + $0xf30] sm:$0xff]
    %v3935 = vld [vmem:[#allocation7 + $0xf38] sm:$0xff]
    %v3936 = vld [vmem:[#allocation7 + $0xf90] sm:$0xff]
    %v3937 = vld [vmem:[#allocation7 + $0xf98] sm:$0xff]
    %v3938 = vld [vmem:[#allocation7 + $0xff0] sm:$0xff]
    %v3939 = vld [vmem:[#allocation7 + $0xff8] sm:$0xff]
    %v3940 = vld [vmem:[#allocation7 + $0x1050] sm:$0xff]
    %v3941 = vld [vmem:[#allocation7 + $0x1058] sm:$0xff]
    %v3942 = vld [vmem:[#allocation7 + $0x10b0] sm:$0xff]
    %v3943 = vld [vmem:[#allocation7 + $0x10b8] sm:$0xff]
    %v3944 = vld [vmem:[#allocation7 + $0x1110] sm:$0xff]
    %v3945 = vld [vmem:[#allocation7 + $0x1118] sm:$0xff]
    %v3946 = vld [vmem:[#allocation7 + $0x1170] sm:$0xff]
    %v3947 = vld [vmem:[#allocation7 + $0x1178] sm:$0xff]
    %v3948 = vld [vmem:[#allocation7 + $0x11d0] sm:$0xff]
    %v3949 = vld [vmem:[#allocation7 + $0x11d8] sm:$0xff]
    %v3950 = vld [vmem:[#allocation7 + $0x1230] sm:$0xff]
    %v3951 = vld [vmem:[#allocation7 + $0x1238] sm:$0xff]
    %v3952 = vld [vmem:[#allocation7 + $0x1290] sm:$0xff]
    %v3953 = vld [vmem:[#allocation7 + $0x1298] sm:$0xff]
    %v3954 = vld [vmem:[#allocation7 + $0x12f0] sm:$0xff]
    %v3955 = vld [vmem:[#allocation7 + $0x12f8] sm:$0xff]
    %v3956 = vld [vmem:[#allocation7 + $0x1350] sm:$0xff]
    %v3957 = vld [vmem:[#allocation7 + $0x1358] sm:$0xff]
    %v3958 = vld [vmem:[#allocation7 + $0x13b0] sm:$0xff]
    %v3959 = vld [vmem:[#allocation7 + $0x13b8] sm:$0xff]
    %v3960 = vld [vmem:[#allocation7 + $0x1410] sm:$0xff]
    %v3961 = vld [vmem:[#allocation7 + $0x1418] sm:$0xff]
    %v3962 = vld [vmem:[#allocation7 + $0x1470] sm:$0xff]
    %v3963 = vld [vmem:[#allocation7 + $0x1478] sm:$0xff]
    %v3964 = vld [vmem:[#allocation7 + $0x14d0] sm:$0xff]
    %v3965 = vld [vmem:[#allocation7 + $0x14d8] sm:$0xff]
    %v3966 = vld [vmem:[#allocation7 + $0x1530] sm:$0xff]
    %v3967 = vld [vmem:[#allocation7 + $0x1538] sm:$0xff]
    %v3968 = vld [vmem:[#allocation7 + $0x1590] sm:$0xff]
    %v3969 = vld [vmem:[#allocation7 + $0x1598] sm:$0xff]
    %v3970 = vld [vmem:[#allocation7 + $0x15f0] sm:$0xff]
    %v3971 = vld [vmem:[#allocation7 + $0x15f8] sm:$0xff]
    %v3972 = vld [vmem:[#allocation7 + $0x1650] sm:$0xff]
    %v3973 = vld [vmem:[#allocation7 + $0x1658] sm:$0xff]
    %v3974 = vld [vmem:[#allocation7 + $0x16b0] sm:$0xff]
    %v3975 = vld [vmem:[#allocation7 + $0x16b8] sm:$0xff]
    %v3976 = vld [vmem:[#allocation7 + $0x1710] sm:$0xff]
    %v3977 = vld [vmem:[#allocation7 + $0x1718] sm:$0xff]
    %v3978 = vld [vmem:[#allocation7 + $0x1770] sm:$0xff]
    %v3979 = vld [vmem:[#allocation7 + $0x1778] sm:$0xff]
    %v3980 = vld [vmem:[#allocation7 + $0x17d0] sm:$0xff]
    %v3981 = vld [vmem:[#allocation7 + $0x17d8] sm:$0xff]
    %v3982 = vld [vmem:[#allocation8 + $0xc] sm:$0xf]
    %v3984 = vperm.slane %v3982, 0
    %v3985 = vperm.slane %v3982, 1
    %v3986 = vperm.slane %v3982, 2
    %v3987 = vperm.slane %v3982, 3
    %v4120 = vunpack.c.l.b16 %v3854
    %v4121 = vunpack.c.h.b16 %v3854
    %v4122 = vunpack.c.l.b16 %v3855
    %v4123 = vunpack.c.h.b16 %v3855
    %v4124 = vunpack.c.l.b16 %v3856
    %v4125 = vunpack.c.h.b16 %v3856
    %v4126 = vunpack.c.l.b16 %v3857
    %v4127 = vunpack.c.h.b16 %v3857
    %v4128 = vunpack.c.l.b16 %v3858
    %v4129 = vunpack.c.h.b16 %v3858
    %v4130 = vunpack.c.l.b16 %v3859
    %v4131 = vunpack.c.h.b16 %v3859
    %v4132 = vunpack.c.l.b16 %v3860
    %v4133 = vunpack.c.h.b16 %v3860
    %v4134 = vunpack.c.l.b16 %v3861
    %v4135 = vunpack.c.h.b16 %v3861
    %v4136 = vunpack.c.l.b16 %v3862
    %v4137 = vunpack.c.h.b16 %v3862
    %v4138 = vunpack.c.l.b16 %v3863
    %v4139 = vunpack.c.h.b16 %v3863
    %v4140 = vunpack.c.l.b16 %v3864
    %v4141 = vunpack.c.h.b16 %v3864
    %v4142 = vunpack.c.l.b16 %v3865
    %v4143 = vunpack.c.h.b16 %v3865
    %v4144 = vunpack.c.l.b16 %v3866
    %v4145 = vunpack.c.h.b16 %v3866
    %v4146 = vunpack.c.l.b16 %v3867
    %v4147 = vunpack.c.h.b16 %v3867
    %v4148 = vunpack.c.l.b16 %v3868
    %v4149 = vunpack.c.h.b16 %v3868
    %v4150 = vunpack.c.l.b16 %v3869
    %v4151 = vunpack.c.h.b16 %v3869
    %v4152 = vunpack.c.l.b16 %v3870
    %v4153 = vunpack.c.h.b16 %v3870
    %v4154 = vunpack.c.l.b16 %v3871
    %v4155 = vunpack.c.h.b16 %v3871
    %v4156 = vunpack.c.l.b16 %v3872
    %v4157 = vunpack.c.h.b16 %v3872
    %v4158 = vunpack.c.l.b16 %v3873
    %v4159 = vunpack.c.h.b16 %v3873
    %v4160 = vunpack.c.l.b16 %v3874
    %v4161 = vunpack.c.h.b16 %v3874
    %v4162 = vunpack.c.l.b16 %v3875
    %v4163 = vunpack.c.h.b16 %v3875
    %v4164 = vunpack.c.l.b16 %v3876
    %v4165 = vunpack.c.h.b16 %v3876
    %v4166 = vunpack.c.l.b16 %v3877
    %v4167 = vunpack.c.h.b16 %v3877
    %v4168 = vunpack.c.l.b16 %v3878
    %v4169 = vunpack.c.h.b16 %v3878
    %v4170 = vunpack.c.l.b16 %v3879
    %v4171 = vunpack.c.h.b16 %v3879
    %v4172 = vunpack.c.l.b16 %v3880
    %v4173 = vunpack.c.h.b16 %v3880
    %v4174 = vunpack.c.l.b16 %v3881
    %v4175 = vunpack.c.h.b16 %v3881
    %v4176 = vunpack.c.l.b16 %v3882
    %v4177 = vunpack.c.h.b16 %v3882
    %v4178 = vunpack.c.l.b16 %v3883
    %v4179 = vunpack.c.h.b16 %v3883
    %v4180 = vunpack.c.l.b16 %v3884
    %v4181 = vunpack.c.h.b16 %v3884
    %v4182 = vunpack.c.l.b16 %v3885
    %v4183 = vunpack.c.h.b16 %v3885
    %v4184 = vunpack.c.l.b16 %v3886
    %v4185 = vunpack.c.h.b16 %v3886
    %v4186 = vunpack.c.l.b16 %v3887
    %v4187 = vunpack.c.h.b16 %v3887
    %v4188 = vunpack.c.l.b16 %v3888
    %v4189 = vunpack.c.h.b16 %v3888
    %v4190 = vunpack.c.l.b16 %v3889
    %v4191 = vunpack.c.h.b16 %v3889
    %v4192 = vunpack.c.l.b16 %v3890
    %v4193 = vunpack.c.h.b16 %v3890
    %v4194 = vunpack.c.l.b16 %v3891
    %v4195 = vunpack.c.h.b16 %v3891
    %v4196 = vunpack.c.l.b16 %v3892
    %v4197 = vunpack.c.h.b16 %v3892
    %v4198 = vunpack.c.l.b16 %v3893
    %v4199 = vunpack.c.h.b16 %v3893
    %v4200 = vunpack.c.l.b16 %v3894
    %v4201 = vunpack.c.h.b16 %v3894
    %v4202 = vunpack.c.l.b16 %v3895
    %v4203 = vunpack.c.h.b16 %v3895
    %v4204 = vunpack.c.l.b16 %v3896
    %v4205 = vunpack.c.h.b16 %v3896
    %v4206 = vunpack.c.l.b16 %v3897
    %v4207 = vunpack.c.h.b16 %v3897
    %v4208 = vunpack.c.l.b16 %v3898
    %v4209 = vunpack.c.h.b16 %v3898
    %v4210 = vunpack.c.l.b16 %v3899
    %v4211 = vunpack.c.h.b16 %v3899
    %v4212 = vunpack.c.l.b16 %v3900
    %v4213 = vunpack.c.h.b16 %v3900
    %v4214 = vunpack.c.l.b16 %v3901
    %v4215 = vunpack.c.h.b16 %v3901
    %v4216 = vunpack.c.l.b16 %v3902
    %v4217 = vunpack.c.h.b16 %v3902
    %v4218 = vunpack.c.l.b16 %v3903
    %v4219 = vunpack.c.h.b16 %v3903
    %v4220 = vunpack.c.l.b16 %v3904
    %v4221 = vunpack.c.h.b16 %v3904
    %v4222 = vunpack.c.l.b16 %v3905
    %v4223 = vunpack.c.h.b16 %v3905
    %v4224 = vunpack.c.l.b16 %v3906
    %v4225 = vunpack.c.h.b16 %v3906
    %v4226 = vunpack.c.l.b16 %v3907
    %v4227 = vunpack.c.h.b16 %v3907
    %v4228 = vunpack.c.l.b16 %v3908
    %v4229 = vunpack.c.h.b16 %v3908
    %v4230 = vunpack.c.l.b16 %v3909
    %v4231 = vunpack.c.h.b16 %v3909
    %v4232 = vunpack.c.l.b16 %v3910
    %v4233 = vunpack.c.h.b16 %v3910
    %v4234 = vunpack.c.l.b16 %v3911
    %v4235 = vunpack.c.h.b16 %v3911
    %v4236 = vunpack.c.l.b16 %v3912
    %v4237 = vunpack.c.h.b16 %v3912
    %v4238 = vunpack.c.l.b16 %v3913
    %v4239 = vunpack.c.h.b16 %v3913
    %v4240 = vunpack.c.l.b16 %v3914
    %v4241 = vunpack.c.h.b16 %v3914
    %v4242 = vunpack.c.l.b16 %v3915
    %v4243 = vunpack.c.h.b16 %v3915
    %v4244 = vunpack.c.l.b16 %v3916
    %v4245 = vunpack.c.h.b16 %v3916
    %v4246 = vunpack.c.l.b16 %v3917
    %v4247 = vunpack.c.h.b16 %v3917
    %v4248 = vunpack.c.l.b16 %v3918
    %v4249 = vunpack.c.h.b16 %v3918
    %v4250 = vunpack.c.l.b16 %v3919
    %v4251 = vunpack.c.h.b16 %v3919
    %v4252 = vunpack.c.l.b16 %v3920
    %v4253 = vunpack.c.h.b16 %v3920
    %v4254 = vunpack.c.l.b16 %v3921
    %v4255 = vunpack.c.h.b16 %v3921
    %v4256 = vunpack.c.l.b16 %v3922
    %v4257 = vunpack.c.h.b16 %v3922
    %v4258 = vunpack.c.l.b16 %v3923
    %v4259 = vunpack.c.h.b16 %v3923
    %v4260 = vunpack.c.l.b16 %v3924
    %v4261 = vunpack.c.h.b16 %v3924
    %v4262 = vunpack.c.l.b16 %v3925
    %v4263 = vunpack.c.h.b16 %v3925
    %v4264 = vunpack.c.l.b16 %v3926
    %v4265 = vunpack.c.h.b16 %v3926
    %v4266 = vunpack.c.l.b16 %v3927
    %v4267 = vunpack.c.h.b16 %v3927
    %v4268 = vunpack.c.l.b16 %v3928
    %v4269 = vunpack.c.h.b16 %v3928
    %v4270 = vunpack.c.l.b16 %v3929
    %v4271 = vunpack.c.h.b16 %v3929
    %v4272 = vunpack.c.l.b16 %v3930
    %v4273 = vunpack.c.h.b16 %v3930
    %v4274 = vunpack.c.l.b16 %v3931
    %v4275 = vunpack.c.h.b16 %v3931
    %v4276 = vunpack.c.l.b16 %v3932
    %v4277 = vunpack.c.h.b16 %v3932
    %v4278 = vunpack.c.l.b16 %v3933
    %v4279 = vunpack.c.h.b16 %v3933
    %v4280 = vunpack.c.l.b16 %v3934
    %v4281 = vunpack.c.h.b16 %v3934
    %v4282 = vunpack.c.l.b16 %v3935
    %v4283 = vunpack.c.h.b16 %v3935
    %v4284 = vunpack.c.l.b16 %v3936
    %v4285 = vunpack.c.h.b16 %v3936
    %v4286 = vunpack.c.l.b16 %v3937
    %v4287 = vunpack.c.h.b16 %v3937
    %v4288 = vunpack.c.l.b16 %v3938
    %v4289 = vunpack.c.h.b16 %v3938
    %v4290 = vunpack.c.l.b16 %v3939
    %v4291 = vunpack.c.h.b16 %v3939
    %v4292 = vunpack.c.l.b16 %v3940
    %v4293 = vunpack.c.h.b16 %v3940
    %v4294 = vunpack.c.l.b16 %v3941
    %v4295 = vunpack.c.h.b16 %v3941
    %v4296 = vunpack.c.l.b16 %v3942
    %v4297 = vunpack.c.h.b16 %v3942
    %v4298 = vunpack.c.l.b16 %v3943
    %v4299 = vunpack.c.h.b16 %v3943
    %v4300 = vunpack.c.l.b16 %v3944
    %v4301 = vunpack.c.h.b16 %v3944
    %v4302 = vunpack.c.l.b16 %v3945
    %v4303 = vunpack.c.h.b16 %v3945
    %v4304 = vunpack.c.l.b16 %v3946
    %v4305 = vunpack.c.h.b16 %v3946
    %v4306 = vunpack.c.l.b16 %v3947
    %v4307 = vunpack.c.h.b16 %v3947
    %v4308 = vunpack.c.l.b16 %v3948
    %v4309 = vunpack.c.h.b16 %v3948
    %v4310 = vunpack.c.l.b16 %v3949
    %v4311 = vunpack.c.h.b16 %v3949
    %v4312 = vunpack.c.l.b16 %v3950
    %v4313 = vunpack.c.h.b16 %v3950
    %v4314 = vunpack.c.l.b16 %v3951
    %v4315 = vunpack.c.h.b16 %v3951
    %v4316 = vunpack.c.l.b16 %v3952
    %v4317 = vunpack.c.h.b16 %v3952
    %v4318 = vunpack.c.l.b16 %v3953
    %v4319 = vunpack.c.h.b16 %v3953
    %v4320 = vunpack.c.l.b16 %v3954
    %v4321 = vunpack.c.h.b16 %v3954
    %v4322 = vunpack.c.l.b16 %v3955
    %v4323 = vunpack.c.h.b16 %v3955
    %v4324 = vunpack.c.l.b16 %v3956
    %v4325 = vunpack.c.h.b16 %v3956
    %v4326 = vunpack.c.l.b16 %v3957
    %v4327 = vunpack.c.h.b16 %v3957
    %v4328 = vunpack.c.l.b16 %v3958
    %v4329 = vunpack.c.h.b16 %v3958
    %v4330 = vunpack.c.l.b16 %v3959
    %v4331 = vunpack.c.h.b16 %v3959
    %v4332 = vunpack.c.l.b16 %v3960
    %v4333 = vunpack.c.h.b16 %v3960
    %v4334 = vunpack.c.l.b16 %v3961
    %v4335 = vunpack.c.h.b16 %v3961
    %v4336 = vunpack.c.l.b16 %v3962
    %v4337 = vunpack.c.h.b16 %v3962
    %v4338 = vunpack.c.l.b16 %v3963
    %v4339 = vunpack.c.h.b16 %v3963
    %v4340 = vunpack.c.l.b16 %v3964
    %v4341 = vunpack.c.h.b16 %v3964
    %v4342 = vunpack.c.l.b16 %v3965
    %v4343 = vunpack.c.h.b16 %v3965
    %v4344 = vunpack.c.l.b16 %v3966
    %v4345 = vunpack.c.h.b16 %v3966
    %v4346 = vunpack.c.l.b16 %v3967
    %v4347 = vunpack.c.h.b16 %v3967
    %v4348 = vunpack.c.l.b16 %v3968
    %v4349 = vunpack.c.h.b16 %v3968
    %v4350 = vunpack.c.l.b16 %v3969
    %v4351 = vunpack.c.h.b16 %v3969
    %v4352 = vunpack.c.l.b16 %v3970
    %v4353 = vunpack.c.h.b16 %v3970
    %v4354 = vunpack.c.l.b16 %v3971
    %v4355 = vunpack.c.h.b16 %v3971
    %v4356 = vunpack.c.l.b16 %v3972
    %v4357 = vunpack.c.h.b16 %v3972
    %v4358 = vunpack.c.l.b16 %v3973
    %v4359 = vunpack.c.h.b16 %v3973
    %v4360 = vunpack.c.l.b16 %v3974
    %v4361 = vunpack.c.h.b16 %v3974
    %v4362 = vunpack.c.l.b16 %v3975
    %v4363 = vunpack.c.h.b16 %v3975
    %v4364 = vunpack.c.l.b16 %v3976
    %v4365 = vunpack.c.h.b16 %v3976
    %v4366 = vunpack.c.l.b16 %v3977
    %v4367 = vunpack.c.h.b16 %v3977
    %v4368 = vunpack.c.l.b16 %v3978
    %v4369 = vunpack.c.h.b16 %v3978
    %v4370 = vunpack.c.l.b16 %v3979
    %v4371 = vunpack.c.h.b16 %v3979
    %v4372 = vunpack.c.l.b16 %v3980
    %v4373 = vunpack.c.h.b16 %v3980
    %v4374 = vunpack.c.l.b16 %v3981
    %v4375 = vunpack.c.h.b16 %v3981
    %v4376 = vpack.c.b16 %v4124, %v4120
    %v4377 = vpack.c.b16 %v4125, %v4121
    %v4378 = vpack.c.b16 %v4126, %v4122
    %v4379 = vpack.c.b16 %v4127, %v4123
    %v4380 = vpack.c.b16 %v4132, %v4128
    %v4381 = vpack.c.b16 %v4133, %v4129
    %v4382 = vpack.c.b16 %v4134, %v4130
    %v4383 = vpack.c.b16 %v4135, %v4131
    %v4384 = vpack.c.b16 %v4140, %v4136
    %v4385 = vpack.c.b16 %v4141, %v4137
    %v4386 = vpack.c.b16 %v4142, %v4138
    %v4387 = vpack.c.b16 %v4143, %v4139
    %v4388 = vpack.c.b16 %v4148, %v4144
    %v4389 = vpack.c.b16 %v4149, %v4145
    %v4390 = vpack.c.b16 %v4150, %v4146
    %v4391 = vpack.c.b16 %v4151, %v4147
    %v4392 = vpack.c.b16 %v4156, %v4152
    %v4393 = vpack.c.b16 %v4157, %v4153
    %v4394 = vpack.c.b16 %v4158, %v4154
    %v4395 = vpack.c.b16 %v4159, %v4155
    %v4396 = vpack.c.b16 %v4164, %v4160
    %v4397 = vpack.c.b16 %v4165, %v4161
    %v4398 = vpack.c.b16 %v4166, %v4162
    %v4399 = vpack.c.b16 %v4167, %v4163
    %v4400 = vpack.c.b16 %v4172, %v4168
    %v4401 = vpack.c.b16 %v4173, %v4169
    %v4402 = vpack.c.b16 %v4174, %v4170
    %v4403 = vpack.c.b16 %v4175, %v4171
    %v4404 = vpack.c.b16 %v4180, %v4176
    %v4405 = vpack.c.b16 %v4181, %v4177
    %v4406 = vpack.c.b16 %v4182, %v4178
    %v4407 = vpack.c.b16 %v4183, %v4179
    %v4408 = vpack.c.b16 %v4188, %v4184
    %v4409 = vpack.c.b16 %v4189, %v4185
    %v4410 = vpack.c.b16 %v4190, %v4186
    %v4411 = vpack.c.b16 %v4191, %v4187
    %v4412 = vpack.c.b16 %v4196, %v4192
    %v4413 = vpack.c.b16 %v4197, %v4193
    %v4414 = vpack.c.b16 %v4198, %v4194
    %v4415 = vpack.c.b16 %v4199, %v4195
    %v4416 = vpack.c.b16 %v4204, %v4200
    %v4417 = vpack.c.b16 %v4205, %v4201
    %v4418 = vpack.c.b16 %v4206, %v4202
    %v4419 = vpack.c.b16 %v4207, %v4203
    %v4420 = vpack.c.b16 %v4212, %v4208
    %v4421 = vpack.c.b16 %v4213, %v4209
    %v4422 = vpack.c.b16 %v4214, %v4210
    %v4423 = vpack.c.b16 %v4215, %v4211
    %v4424 = vpack.c.b16 %v4220, %v4216
    %v4425 = vpack.c.b16 %v4221, %v4217
    %v4426 = vpack.c.b16 %v4222, %v4218
    %v4427 = vpack.c.b16 %v4223, %v4219
    %v4428 = vpack.c.b16 %v4228, %v4224
    %v4429 = vpack.c.b16 %v4229, %v4225
    %v4430 = vpack.c.b16 %v4230, %v4226
    %v4431 = vpack.c.b16 %v4231, %v4227
    %v4432 = vpack.c.b16 %v4236, %v4232
    %v4433 = vpack.c.b16 %v4237, %v4233
    %v4434 = vpack.c.b16 %v4238, %v4234
    %v4435 = vpack.c.b16 %v4239, %v4235
    %v4436 = vpack.c.b16 %v4244, %v4240
    %v4437 = vpack.c.b16 %v4245, %v4241
    %v4438 = vpack.c.b16 %v4246, %v4242
    %v4439 = vpack.c.b16 %v4247, %v4243
    %v4440 = vpack.c.b16 %v4252, %v4248
    %v4441 = vpack.c.b16 %v4253, %v4249
    %v4442 = vpack.c.b16 %v4254, %v4250
    %v4443 = vpack.c.b16 %v4255, %v4251
    %v4444 = vpack.c.b16 %v4260, %v4256
    %v4445 = vpack.c.b16 %v4261, %v4257
    %v4446 = vpack.c.b16 %v4262, %v4258
    %v4447 = vpack.c.b16 %v4263, %v4259
    %v4448 = vpack.c.b16 %v4268, %v4264
    %v4449 = vpack.c.b16 %v4269, %v4265
    %v4450 = vpack.c.b16 %v4270, %v4266
    %v4451 = vpack.c.b16 %v4271, %v4267
    %v4452 = vpack.c.b16 %v4276, %v4272
    %v4453 = vpack.c.b16 %v4277, %v4273
    %v4454 = vpack.c.b16 %v4278, %v4274
    %v4455 = vpack.c.b16 %v4279, %v4275
    %v4456 = vpack.c.b16 %v4284, %v4280
    %v4457 = vpack.c.b16 %v4285, %v4281
    %v4458 = vpack.c.b16 %v4286, %v4282
    %v4459 = vpack.c.b16 %v4287, %v4283
    %v4460 = vpack.c.b16 %v4292, %v4288
    %v4461 = vpack.c.b16 %v4293, %v4289
    %v4462 = vpack.c.b16 %v4294, %v4290
    %v4463 = vpack.c.b16 %v4295, %v4291
    %v4464 = vpack.c.b16 %v4300, %v4296
    %v4465 = vpack.c.b16 %v4301, %v4297
    %v4466 = vpack.c.b16 %v4302, %v4298
    %v4467 = vpack.c.b16 %v4303, %v4299
    %v4468 = vpack.c.b16 %v4308, %v4304
    %v4469 = vpack.c.b16 %v4309, %v4305
    %v4470 = vpack.c.b16 %v4310, %v4306
    %v4471 = vpack.c.b16 %v4311, %v4307
    %v4472 = vpack.c.b16 %v4316, %v4312
    %v4473 = vpack.c.b16 %v4317, %v4313
    %v4474 = vpack.c.b16 %v4318, %v4314
    %v4475 = vpack.c.b16 %v4319, %v4315
    %v4476 = vpack.c.b16 %v4324, %v4320
    %v4477 = vpack.c.b16 %v4325, %v4321
    %v4478 = vpack.c.b16 %v4326, %v4322
    %v4479 = vpack.c.b16 %v4327, %v4323
    %v4480 = vpack.c.b16 %v4332, %v4328
    %v4481 = vpack.c.b16 %v4333, %v4329
    %v4482 = vpack.c.b16 %v4334, %v4330
    %v4483 = vpack.c.b16 %v4335, %v4331
    %v4484 = vpack.c.b16 %v4340, %v4336
    %v4485 = vpack.c.b16 %v4341, %v4337
    %v4486 = vpack.c.b16 %v4342, %v4338
    %v4487 = vpack.c.b16 %v4343, %v4339
    %v4488 = vpack.c.b16 %v4348, %v4344
    %v4489 = vpack.c.b16 %v4349, %v4345
    %v4490 = vpack.c.b16 %v4350, %v4346
    %v4491 = vpack.c.b16 %v4351, %v4347
    %v4492 = vpack.c.b16 %v4356, %v4352
    %v4493 = vpack.c.b16 %v4357, %v4353
    %v4494 = vpack.c.b16 %v4358, %v4354
    %v4495 = vpack.c.b16 %v4359, %v4355
    %v4496 = vpack.c.b16 %v4364, %v4360
    %v4497 = vpack.c.b16 %v4365, %v4361
    %v4498 = vpack.c.b16 %v4366, %v4362
    %v4499 = vpack.c.b16 %v4367, %v4363
    %v4500 = vpack.c.b16 %v4372, %v4368
    %v4501 = vpack.c.b16 %v4373, %v4369
    %v4502 = vpack.c.b16 %v4374, %v4370
    %v4503 = vpack.c.b16 %v4375, %v4371
    %4632 = vmatpush.bf16.msra.mxu0 %v4404
    %4633 = vmatpush.bf16.msra.mxu0 %v4400
    %4634 = vmatpush.bf16.msra.mxu0 %v4396
    %4635 = vmatpush.bf16.msra.mxu0 %v4392
    %4636 = vmatpush.bf16.msra.mxu0 %v4388
    %4637 = vmatpush.bf16.msra.mxu0 %v4384
    %4638 = vmatpush.bf16.msra.mxu0 %v4380
    %4639 = vmatpush.bf16.msra.mxu0 %v4376
    %4640 = vmatmul.bf16.gmra.mxu0 %v3850
    %v4641 = vpop.f32.mrf.mxu0
    %v4642 = vadd.f32 %v3984, %v4641
    %v4643 = vpop.f32.mrf.mxu0
    %4644 = vdwg.mxu0
    %4645 = vmatpush.bf16.msra.mxu0 %v4436
    %4646 = vmatpush.bf16.msra.mxu0 %v4432
    %4647 = vmatpush.bf16.msra.mxu0 %v4428
    %4648 = vmatpush.bf16.msra.mxu0 %v4424
    %4649 = vmatpush.bf16.msra.mxu0 %v4420
    %4650 = vmatpush.bf16.msra.mxu0 %v4416
    %4651 = vmatpush.bf16.msra.mxu0 %v4412
    %4652 = vmatpush.bf16.msra.mxu0 %v4408
    %4653 = vmatmul.bf16.gmra.mxu0 %v3851
    %v4654 = vpop.f32.mrf.mxu0
    %v4655 = vadd.f32 %v4642, %v4654
    %v4656 = vpop.f32.mrf.mxu0
    %4657 = vdwg.mxu0
    %4658 = vmatpush.bf16.msra.mxu0 %v4468
    %4659 = vmatpush.bf16.msra.mxu0 %v4464
    %4660 = vmatpush.bf16.msra.mxu0 %v4460
    %4661 = vmatpush.bf16.msra.mxu0 %v4456
    %4662 = vmatpush.bf16.msra.mxu0 %v4452
    %4663 = vmatpush.bf16.msra.mxu0 %v4448
    %4664 = vmatpush.bf16.msra.mxu0 %v4444
    %4665 = vmatpush.bf16.msra.mxu0 %v4440
    %4666 = vmatmul.bf16.gmra.mxu0 %v3852
    %v4667 = vpop.f32.mrf.mxu0
    %v4668 = vadd.f32 %v4655, %v4667
    %v4669 = vpop.f32.mrf.mxu0
    %4670 = vdwg.mxu0
    %4671 = vmatpush.bf16.msra.mxu0 %v4500
    %4672 = vmatpush.bf16.msra.mxu0 %v4496
    %4673 = vmatpush.bf16.msra.mxu0 %v4492
    %4674 = vmatpush.bf16.msra.mxu0 %v4488
    %4675 = vmatpush.bf16.msra.mxu0 %v4484
    %4676 = vmatpush.bf16.msra.mxu0 %v4480
    %4677 = vmatpush.bf16.msra.mxu0 %v4476
    %4678 = vmatpush.bf16.msra.mxu0 %v4472
    %4679 = vmatmul.bf16.gmra.mxu0 %v3853
    %v4680 = vpop.f32.mrf.mxu0
    %v4681 = vadd.f32 %v4668, %v4680
    %v4682 = vpop.f32.mrf.mxu0
    %4683 = vdwg.mxu0
    %4684 = vmatpush.bf16.msra.mxu0 %v4405
    %4685 = vmatpush.bf16.msra.mxu0 %v4401
    %4686 = vmatpush.bf16.msra.mxu0 %v4397
    %4687 = vmatpush.bf16.msra.mxu0 %v4393
    %4688 = vmatpush.bf16.msra.mxu0 %v4389
    %4689 = vmatpush.bf16.msra.mxu0 %v4385
    %4690 = vmatpush.bf16.msra.mxu0 %v4381
    %4691 = vmatpush.bf16.msra.mxu0 %v4377
    %4692 = vmatmul.bf16.gmra.mxu0 %v3850
    %v4693 = vpop.f32.mrf.mxu0
    %v4694 = vadd.f32 %v3985, %v4693
    %v4695 = vpop.f32.mrf.mxu0
    %4696 = vdwg.mxu0
    %4697 = vmatpush.bf16.msra.mxu0 %v4437
    %4698 = vmatpush.bf16.msra.mxu0 %v4433
    %4699 = vmatpush.bf16.msra.mxu0 %v4429
    %4700 = vmatpush.bf16.msra.mxu0 %v4425
    %4701 = vmatpush.bf16.msra.mxu0 %v4421
    %4702 = vmatpush.bf16.msra.mxu0 %v4417
    %4703 = vmatpush.bf16.msra.mxu0 %v4413
    %4704 = vmatpush.bf16.msra.mxu0 %v4409
    %4705 = vmatmul.bf16.gmra.mxu0 %v3851
    %v4706 = vpop.f32.mrf.mxu0
    %v4707 = vadd.f32 %v4694, %v4706
    %v4708 = vpop.f32.mrf.mxu0
    %4709 = vdwg.mxu0
    %4710 = vmatpush.bf16.msra.mxu0 %v4469
    %4711 = vmatpush.bf16.msra.mxu0 %v4465
    %4712 = vmatpush.bf16.msra.mxu0 %v4461
    %4713 = vmatpush.bf16.msra.mxu0 %v4457
    %4714 = vmatpush.bf16.msra.mxu0 %v4453
    %4715 = vmatpush.bf16.msra.mxu0 %v4449
    %4716 = vmatpush.bf16.msra.mxu0 %v4445
    %4717 = vmatpush.bf16.msra.mxu0 %v4441
    %4718 = vmatmul.bf16.gmra.mxu0 %v3852
    %v4719 = vpop.f32.mrf.mxu0
    %v4720 = vadd.f32 %v4707, %v4719
    %v4721 = vpop.f32.mrf.mxu0
    %4722 = vdwg.mxu0
    %4723 = vmatpush.bf16.msra.mxu0 %v4501
    %4724 = vmatpush.bf16.msra.mxu0 %v4497
    %4725 = vmatpush.bf16.msra.mxu0 %v4493
    %4726 = vmatpush.bf16.msra.mxu0 %v4489
    %4727 = vmatpush.bf16.msra.mxu0 %v4485
    %4728 = vmatpush.bf16.msra.mxu0 %v4481
    %4729 = vmatpush.bf16.msra.mxu0 %v4477
    %4730 = vmatpush.bf16.msra.mxu0 %v4473
    %4731 = vmatmul.bf16.gmra.mxu0 %v3853
    %v4732 = vpop.f32.mrf.mxu0
    %v4733 = vadd.f32 %v4720, %v4732
    %v4734 = vpop.f32.mrf.mxu0
    %4735 = vdwg.mxu0
    %4736 = vmatpush.bf16.msra.mxu0 %v4406
    %4737 = vmatpush.bf16.msra.mxu0 %v4402
    %4738 = vmatpush.bf16.msra.mxu0 %v4398
    %4739 = vmatpush.bf16.msra.mxu0 %v4394
    %4740 = vmatpush.bf16.msra.mxu0 %v4390
    %4741 = vmatpush.bf16.msra.mxu0 %v4386
    %4742 = vmatpush.bf16.msra.mxu0 %v4382
    %4743 = vmatpush.bf16.msra.mxu0 %v4378
    %4744 = vmatmul.bf16.gmra.mxu0 %v3850
    %v4745 = vpop.f32.mrf.mxu0
    %v4746 = vadd.f32 %v3986, %v4745
    %v4747 = vpop.f32.mrf.mxu0
    %4748 = vdwg.mxu0
    %4749 = vmatpush.bf16.msra.mxu0 %v4438
    %4750 = vmatpush.bf16.msra.mxu0 %v4434
    %4751 = vmatpush.bf16.msra.mxu0 %v4430
    %4752 = vmatpush.bf16.msra.mxu0 %v4426
    %4753 = vmatpush.bf16.msra.mxu0 %v4422
    %4754 = vmatpush.bf16.msra.mxu0 %v4418
    %4755 = vmatpush.bf16.msra.mxu0 %v4414
    %4756 = vmatpush.bf16.msra.mxu0 %v4410
    %4757 = vmatmul.bf16.gmra.mxu0 %v3851
    %v4758 = vpop.f32.mrf.mxu0
    %v4759 = vadd.f32 %v4746, %v4758
    %v4760 = vpop.f32.mrf.mxu0
    %4761 = vdwg.mxu0
    %4762 = vmatpush.bf16.msra.mxu0 %v4470
    %4763 = vmatpush.bf16.msra.mxu0 %v4466
    %4764 = vmatpush.bf16.msra.mxu0 %v4462
    %4765 = vmatpush.bf16.msra.mxu0 %v4458
    %4766 = vmatpush.bf16.msra.mxu0 %v4454
    %4767 = vmatpush.bf16.msra.mxu0 %v4450
    %4768 = vmatpush.bf16.msra.mxu0 %v4446
    %4769 = vmatpush.bf16.msra.mxu0 %v4442
    %4770 = vmatmul.bf16.gmra.mxu0 %v3852
    %v4771 = vpop.f32.mrf.mxu0
    %v4772 = vadd.f32 %v4759, %v4771
    %v4773 = vpop.f32.mrf.mxu0
    %4774 = vdwg.mxu0
    %4775 = vmatpush.bf16.msra.mxu0 %v4502
    %4776 = vmatpush.bf16.msra.mxu0 %v4498
    %4777 = vmatpush.bf16.msra.mxu0 %v4494
    %4778 = vmatpush.bf16.msra.mxu0 %v4490
    %4779 = vmatpush.bf16.msra.mxu0 %v4486
    %4780 = vmatpush.bf16.msra.mxu0 %v4482
    %4781 = vmatpush.bf16.msra.mxu0 %v4478
    %4782 = vmatpush.bf16.msra.mxu0 %v4474
    %4783 = vmatmul.bf16.gmra.mxu0 %v3853
    %v4784 = vpop.f32.mrf.mxu0
    %v4785 = vadd.f32 %v4772, %v4784
    %v4786 = vpop.f32.mrf.mxu0
    %4787 = vdwg.mxu0
    %4788 = vmatpush.bf16.msra.mxu0 %v4407
    %4789 = vmatpush.bf16.msra.mxu0 %v4403
    %4790 = vmatpush.bf16.msra.mxu0 %v4399
    %4791 = vmatpush.bf16.msra.mxu0 %v4395
    %4792 = vmatpush.bf16.msra.mxu0 %v4391
    %4793 = vmatpush.bf16.msra.mxu0 %v4387
    %4794 = vmatpush.bf16.msra.mxu0 %v4383
    %4795 = vmatpush.bf16.msra.mxu0 %v4379
    %4796 = vmatmul.bf16.gmra.mxu0 %v3850
    %v4797 = vpop.f32.mrf.mxu0
    %v4798 = vadd.f32 %v3987, %v4797
    %v4799 = vpop.f32.mrf.mxu0
    %4800 = vdwg.mxu0
    %4801 = vmatpush.bf16.msra.mxu0 %v4439
    %4802 = vmatpush.bf16.msra.mxu0 %v4435
    %4803 = vmatpush.bf16.msra.mxu0 %v4431
    %4804 = vmatpush.bf16.msra.mxu0 %v4427
    %4805 = vmatpush.bf16.msra.mxu0 %v4423
    %4806 = vmatpush.bf16.msra.mxu0 %v4419
    %4807 = vmatpush.bf16.msra.mxu0 %v4415
    %4808 = vmatpush.bf16.msra.mxu0 %v4411
    %4809 = vmatmul.bf16.gmra.mxu0 %v3851
    %v4810 = vpop.f32.mrf.mxu0
    %v4811 = vadd.f32 %v4798, %v4810
    %v4812 = vpop.f32.mrf.mxu0
    %4813 = vdwg.mxu0
    %4814 = vmatpush.bf16.msra.mxu0 %v4471
    %4815 = vmatpush.bf16.msra.mxu0 %v4467
    %4816 = vmatpush.bf16.msra.mxu0 %v4463
    %4817 = vmatpush.bf16.msra.mxu0 %v4459
    %4818 = vmatpush.bf16.msra.mxu0 %v4455
    %4819 = vmatpush.bf16.msra.mxu0 %v4451
    %4820 = vmatpush.bf16.msra.mxu0 %v4447
    %4821 = vmatpush.bf16.msra.mxu0 %v4443
    %4822 = vmatmul.bf16.gmra.mxu0 %v3852
    %v4823 = vpop.f32.mrf.mxu0
    %v4824 = vadd.f32 %v4811, %v4823
    %v4825 = vpop.f32.mrf.mxu0
    %4826 = vdwg.mxu0
    %4827 = vmatpush.bf16.msra.mxu0 %v4503
    %4828 = vmatpush.bf16.msra.mxu0 %v4499
    %4829 = vmatpush.bf16.msra.mxu0 %v4495
    %4830 = vmatpush.bf16.msra.mxu0 %v4491
    %4831 = vmatpush.bf16.msra.mxu0 %v4487
    %4832 = vmatpush.bf16.msra.mxu0 %v4483
    %4833 = vmatpush.bf16.msra.mxu0 %v4479
    %4834 = vmatpush.bf16.msra.mxu0 %v4475
    %4835 = vmatmul.bf16.gmra.mxu0 %v3853
    %v4836 = vpop.f32.mrf.mxu0
    %v4837 = vadd.f32 %v4824, %v4836
    %v4838 = vpop.f32.mrf.mxu0
    %4839 = vdwg.mxu0
    %v4840 = vpack.c.bf16 %v4681, %v4681
    %v4841 = vpack.c.bf16 %v4733, %v4733
    %v4842 = vpack.c.bf16 %v4785, %v4785
    %v4843 = vpack.c.bf16 %v4837, %v4837
    %v4844 = vld [vmem:[#allocation7 + $0x40] sm:$0xff]
    %v4845 = vld [vmem:[#allocation7 + $0x48] sm:$0xff]
    %v4846 = vld [vmem:[#allocation7 + $0xa0] sm:$0xff]
    %v4847 = vld [vmem:[#allocation7 + $0xa8] sm:$0xff]
    %v4848 = vld [vmem:[#allocation7 + $0x100] sm:$0xff]
    %v4849 = vld [vmem:[#allocation7 + $0x108] sm:$0xff]
    %v4850 = vld [vmem:[#allocation7 + $0x160] sm:$0xff]
    %v4851 = vld [vmem:[#allocation7 + $0x168] sm:$0xff]
    %v4852 = vld [vmem:[#allocation7 + $0x1c0] sm:$0xff]
    %v4853 = vld [vmem:[#allocation7 + $0x1c8] sm:$0xff]
    %v4854 = vld [vmem:[#allocation7 + $0x220] sm:$0xff]
    %v4855 = vld [vmem:[#allocation7 + $0x228] sm:$0xff]
    %v4856 = vld [vmem:[#allocation7 + $0x280] sm:$0xff]
    %v4857 = vld [vmem:[#allocation7 + $0x288] sm:$0xff]
    %v4858 = vld [vmem:[#allocation7 + $0x2e0] sm:$0xff]
    %v4859 = vld [vmem:[#allocation7 + $0x2e8] sm:$0xff]
    %v4860 = vld [vmem:[#allocation7 + $0x340] sm:$0xff]
    %v4861 = vld [vmem:[#allocation7 + $0x348] sm:$0xff]
    %v4862 = vld [vmem:[#allocation7 + $0x3a0] sm:$0xff]
    %v4863 = vld [vmem:[#allocation7 + $0x3a8] sm:$0xff]
    %v4864 = vld [vmem:[#allocation7 + $0x400] sm:$0xff]
    %v4865 = vld [vmem:[#allocation7 + $0x408] sm:$0xff]
    %v4866 = vld [vmem:[#allocation7 + $0x460] sm:$0xff]
    %v4867 = vld [vmem:[#allocation7 + $0x468] sm:$0xff]
    %v4868 = vld [vmem:[#allocation7 + $0x4c0] sm:$0xff]
    %v4869 = vld [vmem:[#allocation7 + $0x4c8] sm:$0xff]
    %v4870 = vld [vmem:[#allocation7 + $0x520] sm:$0xff]
    %v4871 = vld [vmem:[#allocation7 + $0x528] sm:$0xff]
    %v4872 = vld [vmem:[#allocation7 + $0x580] sm:$0xff]
    %v4873 = vld [vmem:[#allocation7 + $0x588] sm:$0xff]
    %v4874 = vld [vmem:[#allocation7 + $0x5e0] sm:$0xff]
    %v4875 = vld [vmem:[#allocation7 + $0x5e8] sm:$0xff]
    %v4876 = vld [vmem:[#allocation7 + $0x640] sm:$0xff]
    %v4877 = vld [vmem:[#allocation7 + $0x648] sm:$0xff]
    %v4878 = vld [vmem:[#allocation7 + $0x6a0] sm:$0xff]
    %v4879 = vld [vmem:[#allocation7 + $0x6a8] sm:$0xff]
    %v4880 = vld [vmem:[#allocation7 + $0x700] sm:$0xff]
    %v4881 = vld [vmem:[#allocation7 + $0x708] sm:$0xff]
    %v4882 = vld [vmem:[#allocation7 + $0x760] sm:$0xff]
    %v4883 = vld [vmem:[#allocation7 + $0x768] sm:$0xff]
    %v4884 = vld [vmem:[#allocation7 + $0x7c0] sm:$0xff]
    %v4885 = vld [vmem:[#allocation7 + $0x7c8] sm:$0xff]
    %v4886 = vld [vmem:[#allocation7 + $0x820] sm:$0xff]
    %v4887 = vld [vmem:[#allocation7 + $0x828] sm:$0xff]
    %v4888 = vld [vmem:[#allocation7 + $0x880] sm:$0xff]
    %v4889 = vld [vmem:[#allocation7 + $0x888] sm:$0xff]
    %v4890 = vld [vmem:[#allocation7 + $0x8e0] sm:$0xff]
    %v4891 = vld [vmem:[#allocation7 + $0x8e8] sm:$0xff]
    %v4892 = vld [vmem:[#allocation7 + $0x940] sm:$0xff]
    %v4893 = vld [vmem:[#allocation7 + $0x948] sm:$0xff]
    %v4894 = vld [vmem:[#allocation7 + $0x9a0] sm:$0xff]
    %v4895 = vld [vmem:[#allocation7 + $0x9a8] sm:$0xff]
    %v4896 = vld [vmem:[#allocation7 + $0xa00] sm:$0xff]
    %v4897 = vld [vmem:[#allocation7 + $0xa08] sm:$0xff]
    %v4898 = vld [vmem:[#allocation7 + $0xa60] sm:$0xff]
    %v4899 = vld [vmem:[#allocation7 + $0xa68] sm:$0xff]
    %v4900 = vld [vmem:[#allocation7 + $0xac0] sm:$0xff]
    %v4901 = vld [vmem:[#allocation7 + $0xac8] sm:$0xff]
    %v4902 = vld [vmem:[#allocation7 + $0xb20] sm:$0xff]
    %v4903 = vld [vmem:[#allocation7 + $0xb28] sm:$0xff]
    %v4904 = vld [vmem:[#allocation7 + $0xb80] sm:$0xff]
    %v4905 = vld [vmem:[#allocation7 + $0xb88] sm:$0xff]
    %v4906 = vld [vmem:[#allocation7 + $0xbe0] sm:$0xff]
    %v4907 = vld [vmem:[#allocation7 + $0xbe8] sm:$0xff]
    %v4908 = vld [vmem:[#allocation7 + $0xc40] sm:$0xff]
    %v4909 = vld [vmem:[#allocation7 + $0xc48] sm:$0xff]
    %v4910 = vld [vmem:[#allocation7 + $0xca0] sm:$0xff]
    %v4911 = vld [vmem:[#allocation7 + $0xca8] sm:$0xff]
    %v4912 = vld [vmem:[#allocation7 + $0xd00] sm:$0xff]
    %v4913 = vld [vmem:[#allocation7 + $0xd08] sm:$0xff]
    %v4914 = vld [vmem:[#allocation7 + $0xd60] sm:$0xff]
    %v4915 = vld [vmem:[#allocation7 + $0xd68] sm:$0xff]
    %v4916 = vld [vmem:[#allocation7 + $0xdc0] sm:$0xff]
    %v4917 = vld [vmem:[#allocation7 + $0xdc8] sm:$0xff]
    %v4918 = vld [vmem:[#allocation7 + $0xe20] sm:$0xff]
    %v4919 = vld [vmem:[#allocation7 + $0xe28] sm:$0xff]
    %v4920 = vld [vmem:[#allocation7 + $0xe80] sm:$0xff]
    %v4921 = vld [vmem:[#allocation7 + $0xe88] sm:$0xff]
    %v4922 = vld [vmem:[#allocation7 + $0xee0] sm:$0xff]
    %v4923 = vld [vmem:[#allocation7 + $0xee8] sm:$0xff]
    %v4924 = vld [vmem:[#allocation7 + $0xf40] sm:$0xff]
    %v4925 = vld [vmem:[#allocation7 + $0xf48] sm:$0xff]
    %v4926 = vld [vmem:[#allocation7 + $0xfa0] sm:$0xff]
    %v4927 = vld [vmem:[#allocation7 + $0xfa8] sm:$0xff]
    %v4928 = vld [vmem:[#allocation7 + $0x1000] sm:$0xff]
    %v4929 = vld [vmem:[#allocation7 + $0x1008] sm:$0xff]
    %v4930 = vld [vmem:[#allocation7 + $0x1060] sm:$0xff]
    %v4931 = vld [vmem:[#allocation7 + $0x1068] sm:$0xff]
    %v4932 = vld [vmem:[#allocation7 + $0x10c0] sm:$0xff]
    %v4933 = vld [vmem:[#allocation7 + $0x10c8] sm:$0xff]
    %v4934 = vld [vmem:[#allocation7 + $0x1120] sm:$0xff]
    %v4935 = vld [vmem:[#allocation7 + $0x1128] sm:$0xff]
    %v4936 = vld [vmem:[#allocation7 + $0x1180] sm:$0xff]
    %v4937 = vld [vmem:[#allocation7 + $0x1188] sm:$0xff]
    %v4938 = vld [vmem:[#allocation7 + $0x11e0] sm:$0xff]
    %v4939 = vld [vmem:[#allocation7 + $0x11e8] sm:$0xff]
    %v4940 = vld [vmem:[#allocation7 + $0x1240] sm:$0xff]
    %v4941 = vld [vmem:[#allocation7 + $0x1248] sm:$0xff]
    %v4942 = vld [vmem:[#allocation7 + $0x12a0] sm:$0xff]
    %v4943 = vld [vmem:[#allocation7 + $0x12a8] sm:$0xff]
    %v4944 = vld [vmem:[#allocation7 + $0x1300] sm:$0xff]
    %v4945 = vld [vmem:[#allocation7 + $0x1308] sm:$0xff]
    %v4946 = vld [vmem:[#allocation7 + $0x1360] sm:$0xff]
    %v4947 = vld [vmem:[#allocation7 + $0x1368] sm:$0xff]
    %v4948 = vld [vmem:[#allocation7 + $0x13c0] sm:$0xff]
    %v4949 = vld [vmem:[#allocation7 + $0x13c8] sm:$0xff]
    %v4950 = vld [vmem:[#allocation7 + $0x1420] sm:$0xff]
    %v4951 = vld [vmem:[#allocation7 + $0x1428] sm:$0xff]
    %v4952 = vld [vmem:[#allocation7 + $0x1480] sm:$0xff]
    %v4953 = vld [vmem:[#allocation7 + $0x1488] sm:$0xff]
    %v4954 = vld [vmem:[#allocation7 + $0x14e0] sm:$0xff]
    %v4955 = vld [vmem:[#allocation7 + $0x14e8] sm:$0xff]
    %v4956 = vld [vmem:[#allocation7 + $0x1540] sm:$0xff]
    %v4957 = vld [vmem:[#allocation7 + $0x1548] sm:$0xff]
    %v4958 = vld [vmem:[#allocation7 + $0x15a0] sm:$0xff]
    %v4959 = vld [vmem:[#allocation7 + $0x15a8] sm:$0xff]
    %v4960 = vld [vmem:[#allocation7 + $0x1600] sm:$0xff]
    %v4961 = vld [vmem:[#allocation7 + $0x1608] sm:$0xff]
    %v4962 = vld [vmem:[#allocation7 + $0x1660] sm:$0xff]
    %v4963 = vld [vmem:[#allocation7 + $0x1668] sm:$0xff]
    %v4964 = vld [vmem:[#allocation7 + $0x16c0] sm:$0xff]
    %v4965 = vld [vmem:[#allocation7 + $0x16c8] sm:$0xff]
    %v4966 = vld [vmem:[#allocation7 + $0x1720] sm:$0xff]
    %v4967 = vld [vmem:[#allocation7 + $0x1728] sm:$0xff]
    %v4968 = vld [vmem:[#allocation7 + $0x1780] sm:$0xff]
    %v4969 = vld [vmem:[#allocation7 + $0x1788] sm:$0xff]
    %v4970 = vld [vmem:[#allocation7 + $0x17e0] sm:$0xff]
    %v4971 = vld [vmem:[#allocation7 + $0x17e8] sm:$0xff]
    %v4972 = vld [vmem:[#allocation8 + $0x10] sm:$0xf]
    %v4974 = vperm.slane %v4972, 0
    %v4975 = vperm.slane %v4972, 1
    %v4976 = vperm.slane %v4972, 2
    %v4977 = vperm.slane %v4972, 3
    %v5110 = vunpack.c.l.b16 %v4844
    %v5111 = vunpack.c.h.b16 %v4844
    %v5112 = vunpack.c.l.b16 %v4845
    %v5113 = vunpack.c.h.b16 %v4845
    %v5114 = vunpack.c.l.b16 %v4846
    %v5115 = vunpack.c.h.b16 %v4846
    %v5116 = vunpack.c.l.b16 %v4847
    %v5117 = vunpack.c.h.b16 %v4847
    %v5118 = vunpack.c.l.b16 %v4848
    %v5119 = vunpack.c.h.b16 %v4848
    %v5120 = vunpack.c.l.b16 %v4849
    %v5121 = vunpack.c.h.b16 %v4849
    %v5122 = vunpack.c.l.b16 %v4850
    %v5123 = vunpack.c.h.b16 %v4850
    %v5124 = vunpack.c.l.b16 %v4851
    %v5125 = vunpack.c.h.b16 %v4851
    %v5126 = vunpack.c.l.b16 %v4852
    %v5127 = vunpack.c.h.b16 %v4852
    %v5128 = vunpack.c.l.b16 %v4853
    %v5129 = vunpack.c.h.b16 %v4853
    %v5130 = vunpack.c.l.b16 %v4854
    %v5131 = vunpack.c.h.b16 %v4854
    %v5132 = vunpack.c.l.b16 %v4855
    %v5133 = vunpack.c.h.b16 %v4855
    %v5134 = vunpack.c.l.b16 %v4856
    %v5135 = vunpack.c.h.b16 %v4856
    %v5136 = vunpack.c.l.b16 %v4857
    %v5137 = vunpack.c.h.b16 %v4857
    %v5138 = vunpack.c.l.b16 %v4858
    %v5139 = vunpack.c.h.b16 %v4858
    %v5140 = vunpack.c.l.b16 %v4859
    %v5141 = vunpack.c.h.b16 %v4859
    %v5142 = vunpack.c.l.b16 %v4860
    %v5143 = vunpack.c.h.b16 %v4860
    %v5144 = vunpack.c.l.b16 %v4861
    %v5145 = vunpack.c.h.b16 %v4861
    %v5146 = vunpack.c.l.b16 %v4862
    %v5147 = vunpack.c.h.b16 %v4862
    %v5148 = vunpack.c.l.b16 %v4863
    %v5149 = vunpack.c.h.b16 %v4863
    %v5150 = vunpack.c.l.b16 %v4864
    %v5151 = vunpack.c.h.b16 %v4864
    %v5152 = vunpack.c.l.b16 %v4865
    %v5153 = vunpack.c.h.b16 %v4865
    %v5154 = vunpack.c.l.b16 %v4866
    %v5155 = vunpack.c.h.b16 %v4866
    %v5156 = vunpack.c.l.b16 %v4867
    %v5157 = vunpack.c.h.b16 %v4867
    %v5158 = vunpack.c.l.b16 %v4868
    %v5159 = vunpack.c.h.b16 %v4868
    %v5160 = vunpack.c.l.b16 %v4869
    %v5161 = vunpack.c.h.b16 %v4869
    %v5162 = vunpack.c.l.b16 %v4870
    %v5163 = vunpack.c.h.b16 %v4870
    %v5164 = vunpack.c.l.b16 %v4871
    %v5165 = vunpack.c.h.b16 %v4871
    %v5166 = vunpack.c.l.b16 %v4872
    %v5167 = vunpack.c.h.b16 %v4872
    %v5168 = vunpack.c.l.b16 %v4873
    %v5169 = vunpack.c.h.b16 %v4873
    %v5170 = vunpack.c.l.b16 %v4874
    %v5171 = vunpack.c.h.b16 %v4874
    %v5172 = vunpack.c.l.b16 %v4875
    %v5173 = vunpack.c.h.b16 %v4875
    %v5174 = vunpack.c.l.b16 %v4876
    %v5175 = vunpack.c.h.b16 %v4876
    %v5176 = vunpack.c.l.b16 %v4877
    %v5177 = vunpack.c.h.b16 %v4877
    %v5178 = vunpack.c.l.b16 %v4878
    %v5179 = vunpack.c.h.b16 %v4878
    %v5180 = vunpack.c.l.b16 %v4879
    %v5181 = vunpack.c.h.b16 %v4879
    %v5182 = vunpack.c.l.b16 %v4880
    %v5183 = vunpack.c.h.b16 %v4880
    %v5184 = vunpack.c.l.b16 %v4881
    %v5185 = vunpack.c.h.b16 %v4881
    %v5186 = vunpack.c.l.b16 %v4882
    %v5187 = vunpack.c.h.b16 %v4882
    %v5188 = vunpack.c.l.b16 %v4883
    %v5189 = vunpack.c.h.b16 %v4883
    %v5190 = vunpack.c.l.b16 %v4884
    %v5191 = vunpack.c.h.b16 %v4884
    %v5192 = vunpack.c.l.b16 %v4885
    %v5193 = vunpack.c.h.b16 %v4885
    %v5194 = vunpack.c.l.b16 %v4886
    %v5195 = vunpack.c.h.b16 %v4886
    %v5196 = vunpack.c.l.b16 %v4887
    %v5197 = vunpack.c.h.b16 %v4887
    %v5198 = vunpack.c.l.b16 %v4888
    %v5199 = vunpack.c.h.b16 %v4888
    %v5200 = vunpack.c.l.b16 %v4889
    %v5201 = vunpack.c.h.b16 %v4889
    %v5202 = vunpack.c.l.b16 %v4890
    %v5203 = vunpack.c.h.b16 %v4890
    %v5204 = vunpack.c.l.b16 %v4891
    %v5205 = vunpack.c.h.b16 %v4891
    %v5206 = vunpack.c.l.b16 %v4892
    %v5207 = vunpack.c.h.b16 %v4892
    %v5208 = vunpack.c.l.b16 %v4893
    %v5209 = vunpack.c.h.b16 %v4893
    %v5210 = vunpack.c.l.b16 %v4894
    %v5211 = vunpack.c.h.b16 %v4894
    %v5212 = vunpack.c.l.b16 %v4895
    %v5213 = vunpack.c.h.b16 %v4895
    %v5214 = vunpack.c.l.b16 %v4896
    %v5215 = vunpack.c.h.b16 %v4896
    %v5216 = vunpack.c.l.b16 %v4897
    %v5217 = vunpack.c.h.b16 %v4897
    %v5218 = vunpack.c.l.b16 %v4898
    %v5219 = vunpack.c.h.b16 %v4898
    %v5220 = vunpack.c.l.b16 %v4899
    %v5221 = vunpack.c.h.b16 %v4899
    %v5222 = vunpack.c.l.b16 %v4900
    %v5223 = vunpack.c.h.b16 %v4900
    %v5224 = vunpack.c.l.b16 %v4901
    %v5225 = vunpack.c.h.b16 %v4901
    %v5226 = vunpack.c.l.b16 %v4902
    %v5227 = vunpack.c.h.b16 %v4902
    %v5228 = vunpack.c.l.b16 %v4903
    %v5229 = vunpack.c.h.b16 %v4903
    %v5230 = vunpack.c.l.b16 %v4904
    %v5231 = vunpack.c.h.b16 %v4904
    %v5232 = vunpack.c.l.b16 %v4905
    %v5233 = vunpack.c.h.b16 %v4905
    %v5234 = vunpack.c.l.b16 %v4906
    %v5235 = vunpack.c.h.b16 %v4906
    %v5236 = vunpack.c.l.b16 %v4907
    %v5237 = vunpack.c.h.b16 %v4907
    %v5238 = vunpack.c.l.b16 %v4908
    %v5239 = vunpack.c.h.b16 %v4908
    %v5240 = vunpack.c.l.b16 %v4909
    %v5241 = vunpack.c.h.b16 %v4909
    %v5242 = vunpack.c.l.b16 %v4910
    %v5243 = vunpack.c.h.b16 %v4910
    %v5244 = vunpack.c.l.b16 %v4911
    %v5245 = vunpack.c.h.b16 %v4911
    %v5246 = vunpack.c.l.b16 %v4912
    %v5247 = vunpack.c.h.b16 %v4912
    %v5248 = vunpack.c.l.b16 %v4913
    %v5249 = vunpack.c.h.b16 %v4913
    %v5250 = vunpack.c.l.b16 %v4914
    %v5251 = vunpack.c.h.b16 %v4914
    %v5252 = vunpack.c.l.b16 %v4915
    %v5253 = vunpack.c.h.b16 %v4915
    %v5254 = vunpack.c.l.b16 %v4916
    %v5255 = vunpack.c.h.b16 %v4916
    %v5256 = vunpack.c.l.b16 %v4917
    %v5257 = vunpack.c.h.b16 %v4917
    %v5258 = vunpack.c.l.b16 %v4918
    %v5259 = vunpack.c.h.b16 %v4918
    %v5260 = vunpack.c.l.b16 %v4919
    %v5261 = vunpack.c.h.b16 %v4919
    %v5262 = vunpack.c.l.b16 %v4920
    %v5263 = vunpack.c.h.b16 %v4920
    %v5264 = vunpack.c.l.b16 %v4921
    %v5265 = vunpack.c.h.b16 %v4921
    %v5266 = vunpack.c.l.b16 %v4922
    %v5267 = vunpack.c.h.b16 %v4922
    %v5268 = vunpack.c.l.b16 %v4923
    %v5269 = vunpack.c.h.b16 %v4923
    %v5270 = vunpack.c.l.b16 %v4924
    %v5271 = vunpack.c.h.b16 %v4924
    %v5272 = vunpack.c.l.b16 %v4925
    %v5273 = vunpack.c.h.b16 %v4925
    %v5274 = vunpack.c.l.b16 %v4926
    %v5275 = vunpack.c.h.b16 %v4926
    %v5276 = vunpack.c.l.b16 %v4927
    %v5277 = vunpack.c.h.b16 %v4927
    %v5278 = vunpack.c.l.b16 %v4928
    %v5279 = vunpack.c.h.b16 %v4928
    %v5280 = vunpack.c.l.b16 %v4929
    %v5281 = vunpack.c.h.b16 %v4929
    %v5282 = vunpack.c.l.b16 %v4930
    %v5283 = vunpack.c.h.b16 %v4930
    %v5284 = vunpack.c.l.b16 %v4931
    %v5285 = vunpack.c.h.b16 %v4931
    %v5286 = vunpack.c.l.b16 %v4932
    %v5287 = vunpack.c.h.b16 %v4932
    %v5288 = vunpack.c.l.b16 %v4933
    %v5289 = vunpack.c.h.b16 %v4933
    %v5290 = vunpack.c.l.b16 %v4934
    %v5291 = vunpack.c.h.b16 %v4934
    %v5292 = vunpack.c.l.b16 %v4935
    %v5293 = vunpack.c.h.b16 %v4935
    %v5294 = vunpack.c.l.b16 %v4936
    %v5295 = vunpack.c.h.b16 %v4936
    %v5296 = vunpack.c.l.b16 %v4937
    %v5297 = vunpack.c.h.b16 %v4937
    %v5298 = vunpack.c.l.b16 %v4938
    %v5299 = vunpack.c.h.b16 %v4938
    %v5300 = vunpack.c.l.b16 %v4939
    %v5301 = vunpack.c.h.b16 %v4939
    %v5302 = vunpack.c.l.b16 %v4940
    %v5303 = vunpack.c.h.b16 %v4940
    %v5304 = vunpack.c.l.b16 %v4941
    %v5305 = vunpack.c.h.b16 %v4941
    %v5306 = vunpack.c.l.b16 %v4942
    %v5307 = vunpack.c.h.b16 %v4942
    %v5308 = vunpack.c.l.b16 %v4943
    %v5309 = vunpack.c.h.b16 %v4943
    %v5310 = vunpack.c.l.b16 %v4944
    %v5311 = vunpack.c.h.b16 %v4944
    %v5312 = vunpack.c.l.b16 %v4945
    %v5313 = vunpack.c.h.b16 %v4945
    %v5314 = vunpack.c.l.b16 %v4946
    %v5315 = vunpack.c.h.b16 %v4946
    %v5316 = vunpack.c.l.b16 %v4947
    %v5317 = vunpack.c.h.b16 %v4947
    %v5318 = vunpack.c.l.b16 %v4948
    %v5319 = vunpack.c.h.b16 %v4948
    %v5320 = vunpack.c.l.b16 %v4949
    %v5321 = vunpack.c.h.b16 %v4949
    %v5322 = vunpack.c.l.b16 %v4950
    %v5323 = vunpack.c.h.b16 %v4950
    %v5324 = vunpack.c.l.b16 %v4951
    %v5325 = vunpack.c.h.b16 %v4951
    %v5326 = vunpack.c.l.b16 %v4952
    %v5327 = vunpack.c.h.b16 %v4952
    %v5328 = vunpack.c.l.b16 %v4953
    %v5329 = vunpack.c.h.b16 %v4953
    %v5330 = vunpack.c.l.b16 %v4954
    %v5331 = vunpack.c.h.b16 %v4954
    %v5332 = vunpack.c.l.b16 %v4955
    %v5333 = vunpack.c.h.b16 %v4955
    %v5334 = vunpack.c.l.b16 %v4956
    %v5335 = vunpack.c.h.b16 %v4956
    %v5336 = vunpack.c.l.b16 %v4957
    %v5337 = vunpack.c.h.b16 %v4957
    %v5338 = vunpack.c.l.b16 %v4958
    %v5339 = vunpack.c.h.b16 %v4958
    %v5340 = vunpack.c.l.b16 %v4959
    %v5341 = vunpack.c.h.b16 %v4959
    %v5342 = vunpack.c.l.b16 %v4960
    %v5343 = vunpack.c.h.b16 %v4960
    %v5344 = vunpack.c.l.b16 %v4961
    %v5345 = vunpack.c.h.b16 %v4961
    %v5346 = vunpack.c.l.b16 %v4962
    %v5347 = vunpack.c.h.b16 %v4962
    %v5348 = vunpack.c.l.b16 %v4963
    %v5349 = vunpack.c.h.b16 %v4963
    %v5350 = vunpack.c.l.b16 %v4964
    %v5351 = vunpack.c.h.b16 %v4964
    %v5352 = vunpack.c.l.b16 %v4965
    %v5353 = vunpack.c.h.b16 %v4965
    %v5354 = vunpack.c.l.b16 %v4966
    %v5355 = vunpack.c.h.b16 %v4966
    %v5356 = vunpack.c.l.b16 %v4967
    %v5357 = vunpack.c.h.b16 %v4967
    %v5358 = vunpack.c.l.b16 %v4968
    %v5359 = vunpack.c.h.b16 %v4968
    %v5360 = vunpack.c.l.b16 %v4969
    %v5361 = vunpack.c.h.b16 %v4969
    %v5362 = vunpack.c.l.b16 %v4970
    %v5363 = vunpack.c.h.b16 %v4970
    %v5364 = vunpack.c.l.b16 %v4971
    %v5365 = vunpack.c.h.b16 %v4971
    %v5366 = vpack.c.b16 %v5114, %v5110
    %v5367 = vpack.c.b16 %v5115, %v5111
    %v5368 = vpack.c.b16 %v5116, %v5112
    %v5369 = vpack.c.b16 %v5117, %v5113
    %v5370 = vpack.c.b16 %v5122, %v5118
    %v5371 = vpack.c.b16 %v5123, %v5119
    %v5372 = vpack.c.b16 %v5124, %v5120
    %v5373 = vpack.c.b16 %v5125, %v5121
    %v5374 = vpack.c.b16 %v5130, %v5126
    %v5375 = vpack.c.b16 %v5131, %v5127
    %v5376 = vpack.c.b16 %v5132, %v5128
    %v5377 = vpack.c.b16 %v5133, %v5129
    %v5378 = vpack.c.b16 %v5138, %v5134
    %v5379 = vpack.c.b16 %v5139, %v5135
    %v5380 = vpack.c.b16 %v5140, %v5136
    %v5381 = vpack.c.b16 %v5141, %v5137
    %v5382 = vpack.c.b16 %v5146, %v5142
    %v5383 = vpack.c.b16 %v5147, %v5143
    %v5384 = vpack.c.b16 %v5148, %v5144
    %v5385 = vpack.c.b16 %v5149, %v5145
    %v5386 = vpack.c.b16 %v5154, %v5150
    %v5387 = vpack.c.b16 %v5155, %v5151
    %v5388 = vpack.c.b16 %v5156, %v5152
    %v5389 = vpack.c.b16 %v5157, %v5153
    %v5390 = vpack.c.b16 %v5162, %v5158
    %v5391 = vpack.c.b16 %v5163, %v5159
    %v5392 = vpack.c.b16 %v5164, %v5160
    %v5393 = vpack.c.b16 %v5165, %v5161
    %v5394 = vpack.c.b16 %v5170, %v5166
    %v5395 = vpack.c.b16 %v5171, %v5167
    %v5396 = vpack.c.b16 %v5172, %v5168
    %v5397 = vpack.c.b16 %v5173, %v5169
    %v5398 = vpack.c.b16 %v5178, %v5174
    %v5399 = vpack.c.b16 %v5179, %v5175
    %v5400 = vpack.c.b16 %v5180, %v5176
    %v5401 = vpack.c.b16 %v5181, %v5177
    %v5402 = vpack.c.b16 %v5186, %v5182
    %v5403 = vpack.c.b16 %v5187, %v5183
    %v5404 = vpack.c.b16 %v5188, %v5184
    %v5405 = vpack.c.b16 %v5189, %v5185
    %v5406 = vpack.c.b16 %v5194, %v5190
    %v5407 = vpack.c.b16 %v5195, %v5191
    %v5408 = vpack.c.b16 %v5196, %v5192
    %v5409 = vpack.c.b16 %v5197, %v5193
    %v5410 = vpack.c.b16 %v5202, %v5198
    %v5411 = vpack.c.b16 %v5203, %v5199
    %v5412 = vpack.c.b16 %v5204, %v5200
    %v5413 = vpack.c.b16 %v5205, %v5201
    %v5414 = vpack.c.b16 %v5210, %v5206
    %v5415 = vpack.c.b16 %v5211, %v5207
    %v5416 = vpack.c.b16 %v5212, %v5208
    %v5417 = vpack.c.b16 %v5213, %v5209
    %v5418 = vpack.c.b16 %v5218, %v5214
    %v5419 = vpack.c.b16 %v5219, %v5215
    %v5420 = vpack.c.b16 %v5220, %v5216
    %v5421 = vpack.c.b16 %v5221, %v5217
    %v5422 = vpack.c.b16 %v5226, %v5222
    %v5423 = vpack.c.b16 %v5227, %v5223
    %v5424 = vpack.c.b16 %v5228, %v5224
    %v5425 = vpack.c.b16 %v5229, %v5225
    %v5426 = vpack.c.b16 %v5234, %v5230
    %v5427 = vpack.c.b16 %v5235, %v5231
    %v5428 = vpack.c.b16 %v5236, %v5232
    %v5429 = vpack.c.b16 %v5237, %v5233
    %v5430 = vpack.c.b16 %v5242, %v5238
    %v5431 = vpack.c.b16 %v5243, %v5239
    %v5432 = vpack.c.b16 %v5244, %v5240
    %v5433 = vpack.c.b16 %v5245, %v5241
    %v5434 = vpack.c.b16 %v5250, %v5246
    %v5435 = vpack.c.b16 %v5251, %v5247
    %v5436 = vpack.c.b16 %v5252, %v5248
    %v5437 = vpack.c.b16 %v5253, %v5249
    %v5438 = vpack.c.b16 %v5258, %v5254
    %v5439 = vpack.c.b16 %v5259, %v5255
    %v5440 = vpack.c.b16 %v5260, %v5256
    %v5441 = vpack.c.b16 %v5261, %v5257
    %v5442 = vpack.c.b16 %v5266, %v5262
    %v5443 = vpack.c.b16 %v5267, %v5263
    %v5444 = vpack.c.b16 %v5268, %v5264
    %v5445 = vpack.c.b16 %v5269, %v5265
    %v5446 = vpack.c.b16 %v5274, %v5270
    %v5447 = vpack.c.b16 %v5275, %v5271
    %v5448 = vpack.c.b16 %v5276, %v5272
    %v5449 = vpack.c.b16 %v5277, %v5273
    %v5450 = vpack.c.b16 %v5282, %v5278
    %v5451 = vpack.c.b16 %v5283, %v5279
    %v5452 = vpack.c.b16 %v5284, %v5280
    %v5453 = vpack.c.b16 %v5285, %v5281
    %v5454 = vpack.c.b16 %v5290, %v5286
    %v5455 = vpack.c.b16 %v5291, %v5287
    %v5456 = vpack.c.b16 %v5292, %v5288
    %v5457 = vpack.c.b16 %v5293, %v5289
    %v5458 = vpack.c.b16 %v5298, %v5294
    %v5459 = vpack.c.b16 %v5299, %v5295
    %v5460 = vpack.c.b16 %v5300, %v5296
    %v5461 = vpack.c.b16 %v5301, %v5297
    %v5462 = vpack.c.b16 %v5306, %v5302
    %v5463 = vpack.c.b16 %v5307, %v5303
    %v5464 = vpack.c.b16 %v5308, %v5304
    %v5465 = vpack.c.b16 %v5309, %v5305
    %v5466 = vpack.c.b16 %v5314, %v5310
    %v5467 = vpack.c.b16 %v5315, %v5311
    %v5468 = vpack.c.b16 %v5316, %v5312
    %v5469 = vpack.c.b16 %v5317, %v5313
    %v5470 = vpack.c.b16 %v5322, %v5318
    %v5471 = vpack.c.b16 %v5323, %v5319
    %v5472 = vpack.c.b16 %v5324, %v5320
    %v5473 = vpack.c.b16 %v5325, %v5321
    %v5474 = vpack.c.b16 %v5330, %v5326
    %v5475 = vpack.c.b16 %v5331, %v5327
    %v5476 = vpack.c.b16 %v5332, %v5328
    %v5477 = vpack.c.b16 %v5333, %v5329
    %v5478 = vpack.c.b16 %v5338, %v5334
    %v5479 = vpack.c.b16 %v5339, %v5335
    %v5480 = vpack.c.b16 %v5340, %v5336
    %v5481 = vpack.c.b16 %v5341, %v5337
    %v5482 = vpack.c.b16 %v5346, %v5342
    %v5483 = vpack.c.b16 %v5347, %v5343
    %v5484 = vpack.c.b16 %v5348, %v5344
    %v5485 = vpack.c.b16 %v5349, %v5345
    %v5486 = vpack.c.b16 %v5354, %v5350
    %v5487 = vpack.c.b16 %v5355, %v5351
    %v5488 = vpack.c.b16 %v5356, %v5352
    %v5489 = vpack.c.b16 %v5357, %v5353
    %v5490 = vpack.c.b16 %v5362, %v5358
    %v5491 = vpack.c.b16 %v5363, %v5359
    %v5492 = vpack.c.b16 %v5364, %v5360
    %v5493 = vpack.c.b16 %v5365, %v5361
    %5622 = vmatpush.bf16.msra.mxu0 %v5394
    %5623 = vmatpush.bf16.msra.mxu0 %v5390
    %5624 = vmatpush.bf16.msra.mxu0 %v5386
    %5625 = vmatpush.bf16.msra.mxu0 %v5382
    %5626 = vmatpush.bf16.msra.mxu0 %v5378
    %5627 = vmatpush.bf16.msra.mxu0 %v5374
    %5628 = vmatpush.bf16.msra.mxu0 %v5370
    %5629 = vmatpush.bf16.msra.mxu0 %v5366
    %5630 = vmatmul.bf16.gmra.mxu0 %v4840
    %v5631 = vpop.f32.mrf.mxu0
    %v5632 = vadd.f32 %v4974, %v5631
    %v5633 = vpop.f32.mrf.mxu0
    %5634 = vdwg.mxu0
    %5635 = vmatpush.bf16.msra.mxu0 %v5426
    %5636 = vmatpush.bf16.msra.mxu0 %v5422
    %5637 = vmatpush.bf16.msra.mxu0 %v5418
    %5638 = vmatpush.bf16.msra.mxu0 %v5414
    %5639 = vmatpush.bf16.msra.mxu0 %v5410
    %5640 = vmatpush.bf16.msra.mxu0 %v5406
    %5641 = vmatpush.bf16.msra.mxu0 %v5402
    %5642 = vmatpush.bf16.msra.mxu0 %v5398
    %5643 = vmatmul.bf16.gmra.mxu0 %v4841
    %v5644 = vpop.f32.mrf.mxu0
    %v5645 = vadd.f32 %v5632, %v5644
    %v5646 = vpop.f32.mrf.mxu0
    %5647 = vdwg.mxu0
    %5648 = vmatpush.bf16.msra.mxu0 %v5458
    %5649 = vmatpush.bf16.msra.mxu0 %v5454
    %5650 = vmatpush.bf16.msra.mxu0 %v5450
    %5651 = vmatpush.bf16.msra.mxu0 %v5446
    %5652 = vmatpush.bf16.msra.mxu0 %v5442
    %5653 = vmatpush.bf16.msra.mxu0 %v5438
    %5654 = vmatpush.bf16.msra.mxu0 %v5434
    %5655 = vmatpush.bf16.msra.mxu0 %v5430
    %5656 = vmatmul.bf16.gmra.mxu0 %v4842
    %v5657 = vpop.f32.mrf.mxu0
    %v5658 = vadd.f32 %v5645, %v5657
    %v5659 = vpop.f32.mrf.mxu0
    %5660 = vdwg.mxu0
    %5661 = vmatpush.bf16.msra.mxu0 %v5490
    %5662 = vmatpush.bf16.msra.mxu0 %v5486
    %5663 = vmatpush.bf16.msra.mxu0 %v5482
    %5664 = vmatpush.bf16.msra.mxu0 %v5478
    %5665 = vmatpush.bf16.msra.mxu0 %v5474
    %5666 = vmatpush.bf16.msra.mxu0 %v5470
    %5667 = vmatpush.bf16.msra.mxu0 %v5466
    %5668 = vmatpush.bf16.msra.mxu0 %v5462
    %5669 = vmatmul.bf16.gmra.mxu0 %v4843
    %v5670 = vpop.f32.mrf.mxu0
    %v5671 = vadd.f32 %v5658, %v5670
    %v5672 = vpop.f32.mrf.mxu0
    %5673 = vdwg.mxu0
    %5674 = vmatpush.bf16.msra.mxu0 %v5395
    %5675 = vmatpush.bf16.msra.mxu0 %v5391
    %5676 = vmatpush.bf16.msra.mxu0 %v5387
    %5677 = vmatpush.bf16.msra.mxu0 %v5383
    %5678 = vmatpush.bf16.msra.mxu0 %v5379
    %5679 = vmatpush.bf16.msra.mxu0 %v5375
    %5680 = vmatpush.bf16.msra.mxu0 %v5371
    %5681 = vmatpush.bf16.msra.mxu0 %v5367
    %5682 = vmatmul.bf16.gmra.mxu0 %v4840
    %v5683 = vpop.f32.mrf.mxu0
    %v5684 = vadd.f32 %v4975, %v5683
    %v5685 = vpop.f32.mrf.mxu0
    %5686 = vdwg.mxu0
    %5687 = vmatpush.bf16.msra.mxu0 %v5427
    %5688 = vmatpush.bf16.msra.mxu0 %v5423
    %5689 = vmatpush.bf16.msra.mxu0 %v5419
    %5690 = vmatpush.bf16.msra.mxu0 %v5415
    %5691 = vmatpush.bf16.msra.mxu0 %v5411
    %5692 = vmatpush.bf16.msra.mxu0 %v5407
    %5693 = vmatpush.bf16.msra.mxu0 %v5403
    %5694 = vmatpush.bf16.msra.mxu0 %v5399
    %5695 = vmatmul.bf16.gmra.mxu0 %v4841
    %v5696 = vpop.f32.mrf.mxu0
    %v5697 = vadd.f32 %v5684, %v5696
    %v5698 = vpop.f32.mrf.mxu0
    %5699 = vdwg.mxu0
    %5700 = vmatpush.bf16.msra.mxu0 %v5459
    %5701 = vmatpush.bf16.msra.mxu0 %v5455
    %5702 = vmatpush.bf16.msra.mxu0 %v5451
    %5703 = vmatpush.bf16.msra.mxu0 %v5447
    %5704 = vmatpush.bf16.msra.mxu0 %v5443
    %5705 = vmatpush.bf16.msra.mxu0 %v5439
    %5706 = vmatpush.bf16.msra.mxu0 %v5435
    %5707 = vmatpush.bf16.msra.mxu0 %v5431
    %5708 = vmatmul.bf16.gmra.mxu0 %v4842
    %v5709 = vpop.f32.mrf.mxu0
    %v5710 = vadd.f32 %v5697, %v5709
    %v5711 = vpop.f32.mrf.mxu0
    %5712 = vdwg.mxu0
    %5713 = vmatpush.bf16.msra.mxu0 %v5491
    %5714 = vmatpush.bf16.msra.mxu0 %v5487
    %5715 = vmatpush.bf16.msra.mxu0 %v5483
    %5716 = vmatpush.bf16.msra.mxu0 %v5479
    %5717 = vmatpush.bf16.msra.mxu0 %v5475
    %5718 = vmatpush.bf16.msra.mxu0 %v5471
    %5719 = vmatpush.bf16.msra.mxu0 %v5467
    %5720 = vmatpush.bf16.msra.mxu0 %v5463
    %5721 = vmatmul.bf16.gmra.mxu0 %v4843
    %v5722 = vpop.f32.mrf.mxu0
    %v5723 = vadd.f32 %v5710, %v5722
    %v5724 = vpop.f32.mrf.mxu0
    %5725 = vdwg.mxu0
    %5726 = vmatpush.bf16.msra.mxu0 %v5396
    %5727 = vmatpush.bf16.msra.mxu0 %v5392
    %5728 = vmatpush.bf16.msra.mxu0 %v5388
    %5729 = vmatpush.bf16.msra.mxu0 %v5384
    %5730 = vmatpush.bf16.msra.mxu0 %v5380
    %5731 = vmatpush.bf16.msra.mxu0 %v5376
    %5732 = vmatpush.bf16.msra.mxu0 %v5372
    %5733 = vmatpush.bf16.msra.mxu0 %v5368
    %5734 = vmatmul.bf16.gmra.mxu0 %v4840
    %v5735 = vpop.f32.mrf.mxu0
    %v5736 = vadd.f32 %v4976, %v5735
    %v5737 = vpop.f32.mrf.mxu0
    %5738 = vdwg.mxu0
    %5739 = vmatpush.bf16.msra.mxu0 %v5428
    %5740 = vmatpush.bf16.msra.mxu0 %v5424
    %5741 = vmatpush.bf16.msra.mxu0 %v5420
    %5742 = vmatpush.bf16.msra.mxu0 %v5416
    %5743 = vmatpush.bf16.msra.mxu0 %v5412
    %5744 = vmatpush.bf16.msra.mxu0 %v5408
    %5745 = vmatpush.bf16.msra.mxu0 %v5404
    %5746 = vmatpush.bf16.msra.mxu0 %v5400
    %5747 = vmatmul.bf16.gmra.mxu0 %v4841
    %v5748 = vpop.f32.mrf.mxu0
    %v5749 = vadd.f32 %v5736, %v5748
    %v5750 = vpop.f32.mrf.mxu0
    %5751 = vdwg.mxu0
    %5752 = vmatpush.bf16.msra.mxu0 %v5460
    %5753 = vmatpush.bf16.msra.mxu0 %v5456
    %5754 = vmatpush.bf16.msra.mxu0 %v5452
    %5755 = vmatpush.bf16.msra.mxu0 %v5448
    %5756 = vmatpush.bf16.msra.mxu0 %v5444
    %5757 = vmatpush.bf16.msra.mxu0 %v5440
    %5758 = vmatpush.bf16.msra.mxu0 %v5436
    %5759 = vmatpush.bf16.msra.mxu0 %v5432
    %5760 = vmatmul.bf16.gmra.mxu0 %v4842
    %v5761 = vpop.f32.mrf.mxu0
    %v5762 = vadd.f32 %v5749, %v5761
    %v5763 = vpop.f32.mrf.mxu0
    %5764 = vdwg.mxu0
    %5765 = vmatpush.bf16.msra.mxu0 %v5492
    %5766 = vmatpush.bf16.msra.mxu0 %v5488
    %5767 = vmatpush.bf16.msra.mxu0 %v5484
    %5768 = vmatpush.bf16.msra.mxu0 %v5480
    %5769 = vmatpush.bf16.msra.mxu0 %v5476
    %5770 = vmatpush.bf16.msra.mxu0 %v5472
    %5771 = vmatpush.bf16.msra.mxu0 %v5468
    %5772 = vmatpush.bf16.msra.mxu0 %v5464
    %5773 = vmatmul.bf16.gmra.mxu0 %v4843
    %v5774 = vpop.f32.mrf.mxu0
    %v5775 = vadd.f32 %v5762, %v5774
    %v5776 = vpop.f32.mrf.mxu0
    %5777 = vdwg.mxu0
    %5778 = vmatpush.bf16.msra.mxu0 %v5397
    %5779 = vmatpush.bf16.msra.mxu0 %v5393
    %5780 = vmatpush.bf16.msra.mxu0 %v5389
    %5781 = vmatpush.bf16.msra.mxu0 %v5385
    %5782 = vmatpush.bf16.msra.mxu0 %v5381
    %5783 = vmatpush.bf16.msra.mxu0 %v5377
    %5784 = vmatpush.bf16.msra.mxu0 %v5373
    %5785 = vmatpush.bf16.msra.mxu0 %v5369
    %5786 = vmatmul.bf16.gmra.mxu0 %v4840
    %v5787 = vpop.f32.mrf.mxu0
    %v5788 = vadd.f32 %v4977, %v5787
    %v5789 = vpop.f32.mrf.mxu0
    %5790 = vdwg.mxu0
    %5791 = vmatpush.bf16.msra.mxu0 %v5429
    %5792 = vmatpush.bf16.msra.mxu0 %v5425
    %5793 = vmatpush.bf16.msra.mxu0 %v5421
    %5794 = vmatpush.bf16.msra.mxu0 %v5417
    %5795 = vmatpush.bf16.msra.mxu0 %v5413
    %5796 = vmatpush.bf16.msra.mxu0 %v5409
    %5797 = vmatpush.bf16.msra.mxu0 %v5405
    %5798 = vmatpush.bf16.msra.mxu0 %v5401
    %5799 = vmatmul.bf16.gmra.mxu0 %v4841
    %v5800 = vpop.f32.mrf.mxu0
    %v5801 = vadd.f32 %v5788, %v5800
    %v5802 = vpop.f32.mrf.mxu0
    %5803 = vdwg.mxu0
    %5804 = vmatpush.bf16.msra.mxu0 %v5461
    %5805 = vmatpush.bf16.msra.mxu0 %v5457
    %5806 = vmatpush.bf16.msra.mxu0 %v5453
    %5807 = vmatpush.bf16.msra.mxu0 %v5449
    %5808 = vmatpush.bf16.msra.mxu0 %v5445
    %5809 = vmatpush.bf16.msra.mxu0 %v5441
    %5810 = vmatpush.bf16.msra.mxu0 %v5437
    %5811 = vmatpush.bf16.msra.mxu0 %v5433
    %5812 = vmatmul.bf16.gmra.mxu0 %v4842
    %v5813 = vpop.f32.mrf.mxu0
    %v5814 = vadd.f32 %v5801, %v5813
    %v5815 = vpop.f32.mrf.mxu0
    %5816 = vdwg.mxu0
    %5817 = vmatpush.bf16.msra.mxu0 %v5493
    %5818 = vmatpush.bf16.msra.mxu0 %v5489
    %5819 = vmatpush.bf16.msra.mxu0 %v5485
    %5820 = vmatpush.bf16.msra.mxu0 %v5481
    %5821 = vmatpush.bf16.msra.mxu0 %v5477
    %5822 = vmatpush.bf16.msra.mxu0 %v5473
    %5823 = vmatpush.bf16.msra.mxu0 %v5469
    %5824 = vmatpush.bf16.msra.mxu0 %v5465
    %5825 = vmatmul.bf16.gmra.mxu0 %v4843
    %v5826 = vpop.f32.mrf.mxu0
    %v5827 = vadd.f32 %v5814, %v5826
    %v5828 = vpop.f32.mrf.mxu0
    %5829 = vdwg.mxu0
    %v5830 = vmax.f32 %v5671, 0.0
    %v5831 = vmax.f32 %v5723, 0.0
    %v5832 = vmax.f32 %v5775, 0.0
    %v5833 = vmax.f32 %v5827, 0.0
    %v5834 = vpack.c.bf16 %v5830, %v5830
    %v5835 = vpack.c.bf16 %v5831, %v5831
    %v5836 = vpack.c.bf16 %v5832, %v5832
    %v5837 = vpack.c.bf16 %v5833, %v5833
    %v5838 = vld [vmem:[#allocation7 + $0x50] sm:$0xff]
    %v5839 = vld [vmem:[#allocation7 + $0x58] sm:$0xff]
    %v5840 = vld [vmem:[#allocation7 + $0xb0] sm:$0xff]
    %v5841 = vld [vmem:[#allocation7 + $0xb8] sm:$0xff]
    %v5842 = vld [vmem:[#allocation7 + $0x110] sm:$0xff]
    %v5843 = vld [vmem:[#allocation7 + $0x118] sm:$0xff]
    %v5844 = vld [vmem:[#allocation7 + $0x170] sm:$0xff]
    %v5845 = vld [vmem:[#allocation7 + $0x178] sm:$0xff]
    %v5846 = vld [vmem:[#allocation7 + $0x1d0] sm:$0xff]
    %v5847 = vld [vmem:[#allocation7 + $0x1d8] sm:$0xff]
    %v5848 = vld [vmem:[#allocation7 + $0x230] sm:$0xff]
    %v5849 = vld [vmem:[#allocation7 + $0x238] sm:$0xff]
    %v5850 = vld [vmem:[#allocation7 + $0x290] sm:$0xff]
    %v5851 = vld [vmem:[#allocation7 + $0x298] sm:$0xff]
    %v5852 = vld [vmem:[#allocation7 + $0x2f0] sm:$0xff]
    %v5853 = vld [vmem:[#allocation7 + $0x2f8] sm:$0xff]
    %v5854 = vld [vmem:[#allocation7 + $0x350] sm:$0xff]
    %v5855 = vld [vmem:[#allocation7 + $0x358] sm:$0xff]
    %v5856 = vld [vmem:[#allocation7 + $0x3b0] sm:$0xff]
    %v5857 = vld [vmem:[#allocation7 + $0x3b8] sm:$0xff]
    %v5858 = vld [vmem:[#allocation7 + $0x410] sm:$0xff]
    %v5859 = vld [vmem:[#allocation7 + $0x418] sm:$0xff]
    %v5860 = vld [vmem:[#allocation7 + $0x470] sm:$0xff]
    %v5861 = vld [vmem:[#allocation7 + $0x478] sm:$0xff]
    %v5862 = vld [vmem:[#allocation7 + $0x4d0] sm:$0xff]
    %v5863 = vld [vmem:[#allocation7 + $0x4d8] sm:$0xff]
    %v5864 = vld [vmem:[#allocation7 + $0x530] sm:$0xff]
    %v5865 = vld [vmem:[#allocation7 + $0x538] sm:$0xff]
    %v5866 = vld [vmem:[#allocation7 + $0x590] sm:$0xff]
    %v5867 = vld [vmem:[#allocation7 + $0x598] sm:$0xff]
    %v5868 = vld [vmem:[#allocation7 + $0x5f0] sm:$0xff]
    %v5869 = vld [vmem:[#allocation7 + $0x5f8] sm:$0xff]
    %v5870 = vld [vmem:[#allocation7 + $0x650] sm:$0xff]
    %v5871 = vld [vmem:[#allocation7 + $0x658] sm:$0xff]
    %v5872 = vld [vmem:[#allocation7 + $0x6b0] sm:$0xff]
    %v5873 = vld [vmem:[#allocation7 + $0x6b8] sm:$0xff]
    %v5874 = vld [vmem:[#allocation7 + $0x710] sm:$0xff]
    %v5875 = vld [vmem:[#allocation7 + $0x718] sm:$0xff]
    %v5876 = vld [vmem:[#allocation7 + $0x770] sm:$0xff]
    %v5877 = vld [vmem:[#allocation7 + $0x778] sm:$0xff]
    %v5878 = vld [vmem:[#allocation7 + $0x7d0] sm:$0xff]
    %v5879 = vld [vmem:[#allocation7 + $0x7d8] sm:$0xff]
    %v5880 = vld [vmem:[#allocation7 + $0x830] sm:$0xff]
    %v5881 = vld [vmem:[#allocation7 + $0x838] sm:$0xff]
    %v5882 = vld [vmem:[#allocation7 + $0x890] sm:$0xff]
    %v5883 = vld [vmem:[#allocation7 + $0x898] sm:$0xff]
    %v5884 = vld [vmem:[#allocation7 + $0x8f0] sm:$0xff]
    %v5885 = vld [vmem:[#allocation7 + $0x8f8] sm:$0xff]
    %v5886 = vld [vmem:[#allocation7 + $0x950] sm:$0xff]
    %v5887 = vld [vmem:[#allocation7 + $0x958] sm:$0xff]
    %v5888 = vld [vmem:[#allocation7 + $0x9b0] sm:$0xff]
    %v5889 = vld [vmem:[#allocation7 + $0x9b8] sm:$0xff]
    %v5890 = vld [vmem:[#allocation7 + $0xa10] sm:$0xff]
    %v5891 = vld [vmem:[#allocation7 + $0xa18] sm:$0xff]
    %v5892 = vld [vmem:[#allocation7 + $0xa70] sm:$0xff]
    %v5893 = vld [vmem:[#allocation7 + $0xa78] sm:$0xff]
    %v5894 = vld [vmem:[#allocation7 + $0xad0] sm:$0xff]
    %v5895 = vld [vmem:[#allocation7 + $0xad8] sm:$0xff]
    %v5896 = vld [vmem:[#allocation7 + $0xb30] sm:$0xff]
    %v5897 = vld [vmem:[#allocation7 + $0xb38] sm:$0xff]
    %v5898 = vld [vmem:[#allocation7 + $0xb90] sm:$0xff]
    %v5899 = vld [vmem:[#allocation7 + $0xb98] sm:$0xff]
    %v5900 = vld [vmem:[#allocation7 + $0xbf0] sm:$0xff]
    %v5901 = vld [vmem:[#allocation7 + $0xbf8] sm:$0xff]
    %v5902 = vld [vmem:[#allocation7 + $0xc50] sm:$0xff]
    %v5903 = vld [vmem:[#allocation7 + $0xc58] sm:$0xff]
    %v5904 = vld [vmem:[#allocation7 + $0xcb0] sm:$0xff]
    %v5905 = vld [vmem:[#allocation7 + $0xcb8] sm:$0xff]
    %v5906 = vld [vmem:[#allocation7 + $0xd10] sm:$0xff]
    %v5907 = vld [vmem:[#allocation7 + $0xd18] sm:$0xff]
    %v5908 = vld [vmem:[#allocation7 + $0xd70] sm:$0xff]
    %v5909 = vld [vmem:[#allocation7 + $0xd78] sm:$0xff]
    %v5910 = vld [vmem:[#allocation7 + $0xdd0] sm:$0xff]
    %v5911 = vld [vmem:[#allocation7 + $0xdd8] sm:$0xff]
    %v5912 = vld [vmem:[#allocation7 + $0xe30] sm:$0xff]
    %v5913 = vld [vmem:[#allocation7 + $0xe38] sm:$0xff]
    %v5914 = vld [vmem:[#allocation7 + $0xe90] sm:$0xff]
    %v5915 = vld [vmem:[#allocation7 + $0xe98] sm:$0xff]
    %v5916 = vld [vmem:[#allocation7 + $0xef0] sm:$0xff]
    %v5917 = vld [vmem:[#allocation7 + $0xef8] sm:$0xff]
    %v5918 = vld [vmem:[#allocation7 + $0xf50] sm:$0xff]
    %v5919 = vld [vmem:[#allocation7 + $0xf58] sm:$0xff]
    %v5920 = vld [vmem:[#allocation7 + $0xfb0] sm:$0xff]
    %v5921 = vld [vmem:[#allocation7 + $0xfb8] sm:$0xff]
    %v5922 = vld [vmem:[#allocation7 + $0x1010] sm:$0xff]
    %v5923 = vld [vmem:[#allocation7 + $0x1018] sm:$0xff]
    %v5924 = vld [vmem:[#allocation7 + $0x1070] sm:$0xff]
    %v5925 = vld [vmem:[#allocation7 + $0x1078] sm:$0xff]
    %v5926 = vld [vmem:[#allocation7 + $0x10d0] sm:$0xff]
    %v5927 = vld [vmem:[#allocation7 + $0x10d8] sm:$0xff]
    %v5928 = vld [vmem:[#allocation7 + $0x1130] sm:$0xff]
    %v5929 = vld [vmem:[#allocation7 + $0x1138] sm:$0xff]
    %v5930 = vld [vmem:[#allocation7 + $0x1190] sm:$0xff]
    %v5931 = vld [vmem:[#allocation7 + $0x1198] sm:$0xff]
    %v5932 = vld [vmem:[#allocation7 + $0x11f0] sm:$0xff]
    %v5933 = vld [vmem:[#allocation7 + $0x11f8] sm:$0xff]
    %v5934 = vld [vmem:[#allocation7 + $0x1250] sm:$0xff]
    %v5935 = vld [vmem:[#allocation7 + $0x1258] sm:$0xff]
    %v5936 = vld [vmem:[#allocation7 + $0x12b0] sm:$0xff]
    %v5937 = vld [vmem:[#allocation7 + $0x12b8] sm:$0xff]
    %v5938 = vld [vmem:[#allocation7 + $0x1310] sm:$0xff]
    %v5939 = vld [vmem:[#allocation7 + $0x1318] sm:$0xff]
    %v5940 = vld [vmem:[#allocation7 + $0x1370] sm:$0xff]
    %v5941 = vld [vmem:[#allocation7 + $0x1378] sm:$0xff]
    %v5942 = vld [vmem:[#allocation7 + $0x13d0] sm:$0xff]
    %v5943 = vld [vmem:[#allocation7 + $0x13d8] sm:$0xff]
    %v5944 = vld [vmem:[#allocation7 + $0x1430] sm:$0xff]
    %v5945 = vld [vmem:[#allocation7 + $0x1438] sm:$0xff]
    %v5946 = vld [vmem:[#allocation7 + $0x1490] sm:$0xff]
    %v5947 = vld [vmem:[#allocation7 + $0x1498] sm:$0xff]
    %v5948 = vld [vmem:[#allocation7 + $0x14f0] sm:$0xff]
    %v5949 = vld [vmem:[#allocation7 + $0x14f8] sm:$0xff]
    %v5950 = vld [vmem:[#allocation7 + $0x1550] sm:$0xff]
    %v5951 = vld [vmem:[#allocation7 + $0x1558] sm:$0xff]
    %v5952 = vld [vmem:[#allocation7 + $0x15b0] sm:$0xff]
    %v5953 = vld [vmem:[#allocation7 + $0x15b8] sm:$0xff]
    %v5954 = vld [vmem:[#allocation7 + $0x1610] sm:$0xff]
    %v5955 = vld [vmem:[#allocation7 + $0x1618] sm:$0xff]
    %v5956 = vld [vmem:[#allocation7 + $0x1670] sm:$0xff]
    %v5957 = vld [vmem:[#allocation7 + $0x1678] sm:$0xff]
    %v5958 = vld [vmem:[#allocation7 + $0x16d0] sm:$0xff]
    %v5959 = vld [vmem:[#allocation7 + $0x16d8] sm:$0xff]
    %v5960 = vld [vmem:[#allocation7 + $0x1730] sm:$0xff]
    %v5961 = vld [vmem:[#allocation7 + $0x1738] sm:$0xff]
    %v5962 = vld [vmem:[#allocation7 + $0x1790] sm:$0xff]
    %v5963 = vld [vmem:[#allocation7 + $0x1798] sm:$0xff]
    %v5964 = vld [vmem:[#allocation7 + $0x17f0] sm:$0xff]
    %v5965 = vld [vmem:[#allocation7 + $0x17f8] sm:$0xff]
    %v5966 = vld [vmem:[#allocation8 + $0x14] sm:$0xf]
    %v5968 = vperm.slane %v5966, 0
    %v5969 = vperm.slane %v5966, 1
    %v5970 = vperm.slane %v5966, 2
    %v5971 = vperm.slane %v5966, 3
    %v6104 = vunpack.c.l.b16 %v5838
    %v6105 = vunpack.c.h.b16 %v5838
    %v6106 = vunpack.c.l.b16 %v5839
    %v6107 = vunpack.c.h.b16 %v5839
    %v6108 = vunpack.c.l.b16 %v5840
    %v6109 = vunpack.c.h.b16 %v5840
    %v6110 = vunpack.c.l.b16 %v5841
    %v6111 = vunpack.c.h.b16 %v5841
    %v6112 = vunpack.c.l.b16 %v5842
    %v6113 = vunpack.c.h.b16 %v5842
    %v6114 = vunpack.c.l.b16 %v5843
    %v6115 = vunpack.c.h.b16 %v5843
    %v6116 = vunpack.c.l.b16 %v5844
    %v6117 = vunpack.c.h.b16 %v5844
    %v6118 = vunpack.c.l.b16 %v5845
    %v6119 = vunpack.c.h.b16 %v5845
    %v6120 = vunpack.c.l.b16 %v5846
    %v6121 = vunpack.c.h.b16 %v5846
    %v6122 = vunpack.c.l.b16 %v5847
    %v6123 = vunpack.c.h.b16 %v5847
    %v6124 = vunpack.c.l.b16 %v5848
    %v6125 = vunpack.c.h.b16 %v5848
    %v6126 = vunpack.c.l.b16 %v5849
    %v6127 = vunpack.c.h.b16 %v5849
    %v6128 = vunpack.c.l.b16 %v5850
    %v6129 = vunpack.c.h.b16 %v5850
    %v6130 = vunpack.c.l.b16 %v5851
    %v6131 = vunpack.c.h.b16 %v5851
    %v6132 = vunpack.c.l.b16 %v5852
    %v6133 = vunpack.c.h.b16 %v5852
    %v6134 = vunpack.c.l.b16 %v5853
    %v6135 = vunpack.c.h.b16 %v5853
    %v6136 = vunpack.c.l.b16 %v5854
    %v6137 = vunpack.c.h.b16 %v5854
    %v6138 = vunpack.c.l.b16 %v5855
    %v6139 = vunpack.c.h.b16 %v5855
    %v6140 = vunpack.c.l.b16 %v5856
    %v6141 = vunpack.c.h.b16 %v5856
    %v6142 = vunpack.c.l.b16 %v5857
    %v6143 = vunpack.c.h.b16 %v5857
    %v6144 = vunpack.c.l.b16 %v5858
    %v6145 = vunpack.c.h.b16 %v5858
    %v6146 = vunpack.c.l.b16 %v5859
    %v6147 = vunpack.c.h.b16 %v5859
    %v6148 = vunpack.c.l.b16 %v5860
    %v6149 = vunpack.c.h.b16 %v5860
    %v6150 = vunpack.c.l.b16 %v5861
    %v6151 = vunpack.c.h.b16 %v5861
    %v6152 = vunpack.c.l.b16 %v5862
    %v6153 = vunpack.c.h.b16 %v5862
    %v6154 = vunpack.c.l.b16 %v5863
    %v6155 = vunpack.c.h.b16 %v5863
    %v6156 = vunpack.c.l.b16 %v5864
    %v6157 = vunpack.c.h.b16 %v5864
    %v6158 = vunpack.c.l.b16 %v5865
    %v6159 = vunpack.c.h.b16 %v5865
    %v6160 = vunpack.c.l.b16 %v5866
    %v6161 = vunpack.c.h.b16 %v5866
    %v6162 = vunpack.c.l.b16 %v5867
    %v6163 = vunpack.c.h.b16 %v5867
    %v6164 = vunpack.c.l.b16 %v5868
    %v6165 = vunpack.c.h.b16 %v5868
    %v6166 = vunpack.c.l.b16 %v5869
    %v6167 = vunpack.c.h.b16 %v5869
    %v6168 = vunpack.c.l.b16 %v5870
    %v6169 = vunpack.c.h.b16 %v5870
    %v6170 = vunpack.c.l.b16 %v5871
    %v6171 = vunpack.c.h.b16 %v5871
    %v6172 = vunpack.c.l.b16 %v5872
    %v6173 = vunpack.c.h.b16 %v5872
    %v6174 = vunpack.c.l.b16 %v5873
    %v6175 = vunpack.c.h.b16 %v5873
    %v6176 = vunpack.c.l.b16 %v5874
    %v6177 = vunpack.c.h.b16 %v5874
    %v6178 = vunpack.c.l.b16 %v5875
    %v6179 = vunpack.c.h.b16 %v5875
    %v6180 = vunpack.c.l.b16 %v5876
    %v6181 = vunpack.c.h.b16 %v5876
    %v6182 = vunpack.c.l.b16 %v5877
    %v6183 = vunpack.c.h.b16 %v5877
    %v6184 = vunpack.c.l.b16 %v5878
    %v6185 = vunpack.c.h.b16 %v5878
    %v6186 = vunpack.c.l.b16 %v5879
    %v6187 = vunpack.c.h.b16 %v5879
    %v6188 = vunpack.c.l.b16 %v5880
    %v6189 = vunpack.c.h.b16 %v5880
    %v6190 = vunpack.c.l.b16 %v5881
    %v6191 = vunpack.c.h.b16 %v5881
    %v6192 = vunpack.c.l.b16 %v5882
    %v6193 = vunpack.c.h.b16 %v5882
    %v6194 = vunpack.c.l.b16 %v5883
    %v6195 = vunpack.c.h.b16 %v5883
    %v6196 = vunpack.c.l.b16 %v5884
    %v6197 = vunpack.c.h.b16 %v5884
    %v6198 = vunpack.c.l.b16 %v5885
    %v6199 = vunpack.c.h.b16 %v5885
    %v6200 = vunpack.c.l.b16 %v5886
    %v6201 = vunpack.c.h.b16 %v5886
    %v6202 = vunpack.c.l.b16 %v5887
    %v6203 = vunpack.c.h.b16 %v5887
    %v6204 = vunpack.c.l.b16 %v5888
    %v6205 = vunpack.c.h.b16 %v5888
    %v6206 = vunpack.c.l.b16 %v5889
    %v6207 = vunpack.c.h.b16 %v5889
    %v6208 = vunpack.c.l.b16 %v5890
    %v6209 = vunpack.c.h.b16 %v5890
    %v6210 = vunpack.c.l.b16 %v5891
    %v6211 = vunpack.c.h.b16 %v5891
    %v6212 = vunpack.c.l.b16 %v5892
    %v6213 = vunpack.c.h.b16 %v5892
    %v6214 = vunpack.c.l.b16 %v5893
    %v6215 = vunpack.c.h.b16 %v5893
    %v6216 = vunpack.c.l.b16 %v5894
    %v6217 = vunpack.c.h.b16 %v5894
    %v6218 = vunpack.c.l.b16 %v5895
    %v6219 = vunpack.c.h.b16 %v5895
    %v6220 = vunpack.c.l.b16 %v5896
    %v6221 = vunpack.c.h.b16 %v5896
    %v6222 = vunpack.c.l.b16 %v5897
    %v6223 = vunpack.c.h.b16 %v5897
    %v6224 = vunpack.c.l.b16 %v5898
    %v6225 = vunpack.c.h.b16 %v5898
    %v6226 = vunpack.c.l.b16 %v5899
    %v6227 = vunpack.c.h.b16 %v5899
    %v6228 = vunpack.c.l.b16 %v5900
    %v6229 = vunpack.c.h.b16 %v5900
    %v6230 = vunpack.c.l.b16 %v5901
    %v6231 = vunpack.c.h.b16 %v5901
    %v6232 = vunpack.c.l.b16 %v5902
    %v6233 = vunpack.c.h.b16 %v5902
    %v6234 = vunpack.c.l.b16 %v5903
    %v6235 = vunpack.c.h.b16 %v5903
    %v6236 = vunpack.c.l.b16 %v5904
    %v6237 = vunpack.c.h.b16 %v5904
    %v6238 = vunpack.c.l.b16 %v5905
    %v6239 = vunpack.c.h.b16 %v5905
    %v6240 = vunpack.c.l.b16 %v5906
    %v6241 = vunpack.c.h.b16 %v5906
    %v6242 = vunpack.c.l.b16 %v5907
    %v6243 = vunpack.c.h.b16 %v5907
    %v6244 = vunpack.c.l.b16 %v5908
    %v6245 = vunpack.c.h.b16 %v5908
    %v6246 = vunpack.c.l.b16 %v5909
    %v6247 = vunpack.c.h.b16 %v5909
    %v6248 = vunpack.c.l.b16 %v5910
    %v6249 = vunpack.c.h.b16 %v5910
    %v6250 = vunpack.c.l.b16 %v5911
    %v6251 = vunpack.c.h.b16 %v5911
    %v6252 = vunpack.c.l.b16 %v5912
    %v6253 = vunpack.c.h.b16 %v5912
    %v6254 = vunpack.c.l.b16 %v5913
    %v6255 = vunpack.c.h.b16 %v5913
    %v6256 = vunpack.c.l.b16 %v5914
    %v6257 = vunpack.c.h.b16 %v5914
    %v6258 = vunpack.c.l.b16 %v5915
    %v6259 = vunpack.c.h.b16 %v5915
    %v6260 = vunpack.c.l.b16 %v5916
    %v6261 = vunpack.c.h.b16 %v5916
    %v6262 = vunpack.c.l.b16 %v5917
    %v6263 = vunpack.c.h.b16 %v5917
    %v6264 = vunpack.c.l.b16 %v5918
    %v6265 = vunpack.c.h.b16 %v5918
    %v6266 = vunpack.c.l.b16 %v5919
    %v6267 = vunpack.c.h.b16 %v5919
    %v6268 = vunpack.c.l.b16 %v5920
    %v6269 = vunpack.c.h.b16 %v5920
    %v6270 = vunpack.c.l.b16 %v5921
    %v6271 = vunpack.c.h.b16 %v5921
    %v6272 = vunpack.c.l.b16 %v5922
    %v6273 = vunpack.c.h.b16 %v5922
    %v6274 = vunpack.c.l.b16 %v5923
    %v6275 = vunpack.c.h.b16 %v5923
    %v6276 = vunpack.c.l.b16 %v5924
    %v6277 = vunpack.c.h.b16 %v5924
    %v6278 = vunpack.c.l.b16 %v5925
    %v6279 = vunpack.c.h.b16 %v5925
    %v6280 = vunpack.c.l.b16 %v5926
    %v6281 = vunpack.c.h.b16 %v5926
    %v6282 = vunpack.c.l.b16 %v5927
    %v6283 = vunpack.c.h.b16 %v5927
    %v6284 = vunpack.c.l.b16 %v5928
    %v6285 = vunpack.c.h.b16 %v5928
    %v6286 = vunpack.c.l.b16 %v5929
    %v6287 = vunpack.c.h.b16 %v5929
    %v6288 = vunpack.c.l.b16 %v5930
    %v6289 = vunpack.c.h.b16 %v5930
    %v6290 = vunpack.c.l.b16 %v5931
    %v6291 = vunpack.c.h.b16 %v5931
    %v6292 = vunpack.c.l.b16 %v5932
    %v6293 = vunpack.c.h.b16 %v5932
    %v6294 = vunpack.c.l.b16 %v5933
    %v6295 = vunpack.c.h.b16 %v5933
    %v6296 = vunpack.c.l.b16 %v5934
    %v6297 = vunpack.c.h.b16 %v5934
    %v6298 = vunpack.c.l.b16 %v5935
    %v6299 = vunpack.c.h.b16 %v5935
    %v6300 = vunpack.c.l.b16 %v5936
    %v6301 = vunpack.c.h.b16 %v5936
    %v6302 = vunpack.c.l.b16 %v5937
    %v6303 = vunpack.c.h.b16 %v5937
    %v6304 = vunpack.c.l.b16 %v5938
    %v6305 = vunpack.c.h.b16 %v5938
    %v6306 = vunpack.c.l.b16 %v5939
    %v6307 = vunpack.c.h.b16 %v5939
    %v6308 = vunpack.c.l.b16 %v5940
    %v6309 = vunpack.c.h.b16 %v5940
    %v6310 = vunpack.c.l.b16 %v5941
    %v6311 = vunpack.c.h.b16 %v5941
    %v6312 = vunpack.c.l.b16 %v5942
    %v6313 = vunpack.c.h.b16 %v5942
    %v6314 = vunpack.c.l.b16 %v5943
    %v6315 = vunpack.c.h.b16 %v5943
    %v6316 = vunpack.c.l.b16 %v5944
    %v6317 = vunpack.c.h.b16 %v5944
    %v6318 = vunpack.c.l.b16 %v5945
    %v6319 = vunpack.c.h.b16 %v5945
    %v6320 = vunpack.c.l.b16 %v5946
    %v6321 = vunpack.c.h.b16 %v5946
    %v6322 = vunpack.c.l.b16 %v5947
    %v6323 = vunpack.c.h.b16 %v5947
    %v6324 = vunpack.c.l.b16 %v5948
    %v6325 = vunpack.c.h.b16 %v5948
    %v6326 = vunpack.c.l.b16 %v5949
    %v6327 = vunpack.c.h.b16 %v5949
    %v6328 = vunpack.c.l.b16 %v5950
    %v6329 = vunpack.c.h.b16 %v5950
    %v6330 = vunpack.c.l.b16 %v5951
    %v6331 = vunpack.c.h.b16 %v5951
    %v6332 = vunpack.c.l.b16 %v5952
    %v6333 = vunpack.c.h.b16 %v5952
    %v6334 = vunpack.c.l.b16 %v5953
    %v6335 = vunpack.c.h.b16 %v5953
    %v6336 = vunpack.c.l.b16 %v5954
    %v6337 = vunpack.c.h.b16 %v5954
    %v6338 = vunpack.c.l.b16 %v5955
    %v6339 = vunpack.c.h.b16 %v5955
    %v6340 = vunpack.c.l.b16 %v5956
    %v6341 = vunpack.c.h.b16 %v5956
    %v6342 = vunpack.c.l.b16 %v5957
    %v6343 = vunpack.c.h.b16 %v5957
    %v6344 = vunpack.c.l.b16 %v5958
    %v6345 = vunpack.c.h.b16 %v5958
    %v6346 = vunpack.c.l.b16 %v5959
    %v6347 = vunpack.c.h.b16 %v5959
    %v6348 = vunpack.c.l.b16 %v5960
    %v6349 = vunpack.c.h.b16 %v5960
    %v6350 = vunpack.c.l.b16 %v5961
    %v6351 = vunpack.c.h.b16 %v5961
    %v6352 = vunpack.c.l.b16 %v5962
    %v6353 = vunpack.c.h.b16 %v5962
    %v6354 = vunpack.c.l.b16 %v5963
    %v6355 = vunpack.c.h.b16 %v5963
    %v6356 = vunpack.c.l.b16 %v5964
    %v6357 = vunpack.c.h.b16 %v5964
    %v6358 = vunpack.c.l.b16 %v5965
    %v6359 = vunpack.c.h.b16 %v5965
    %v6360 = vpack.c.b16 %v6108, %v6104
    %v6361 = vpack.c.b16 %v6109, %v6105
    %v6362 = vpack.c.b16 %v6110, %v6106
    %v6363 = vpack.c.b16 %v6111, %v6107
    %v6364 = vpack.c.b16 %v6116, %v6112
    %v6365 = vpack.c.b16 %v6117, %v6113
    %v6366 = vpack.c.b16 %v6118, %v6114
    %v6367 = vpack.c.b16 %v6119, %v6115
    %v6368 = vpack.c.b16 %v6124, %v6120
    %v6369 = vpack.c.b16 %v6125, %v6121
    %v6370 = vpack.c.b16 %v6126, %v6122
    %v6371 = vpack.c.b16 %v6127, %v6123
    %v6372 = vpack.c.b16 %v6132, %v6128
    %v6373 = vpack.c.b16 %v6133, %v6129
    %v6374 = vpack.c.b16 %v6134, %v6130
    %v6375 = vpack.c.b16 %v6135, %v6131
    %v6376 = vpack.c.b16 %v6140, %v6136
    %v6377 = vpack.c.b16 %v6141, %v6137
    %v6378 = vpack.c.b16 %v6142, %v6138
    %v6379 = vpack.c.b16 %v6143, %v6139
    %v6380 = vpack.c.b16 %v6148, %v6144
    %v6381 = vpack.c.b16 %v6149, %v6145
    %v6382 = vpack.c.b16 %v6150, %v6146
    %v6383 = vpack.c.b16 %v6151, %v6147
    %v6384 = vpack.c.b16 %v6156, %v6152
    %v6385 = vpack.c.b16 %v6157, %v6153
    %v6386 = vpack.c.b16 %v6158, %v6154
    %v6387 = vpack.c.b16 %v6159, %v6155
    %v6388 = vpack.c.b16 %v6164, %v6160
    %v6389 = vpack.c.b16 %v6165, %v6161
    %v6390 = vpack.c.b16 %v6166, %v6162
    %v6391 = vpack.c.b16 %v6167, %v6163
    %v6392 = vpack.c.b16 %v6172, %v6168
    %v6393 = vpack.c.b16 %v6173, %v6169
    %v6394 = vpack.c.b16 %v6174, %v6170
    %v6395 = vpack.c.b16 %v6175, %v6171
    %v6396 = vpack.c.b16 %v6180, %v6176
    %v6397 = vpack.c.b16 %v6181, %v6177
    %v6398 = vpack.c.b16 %v6182, %v6178
    %v6399 = vpack.c.b16 %v6183, %v6179
    %v6400 = vpack.c.b16 %v6188, %v6184
    %v6401 = vpack.c.b16 %v6189, %v6185
    %v6402 = vpack.c.b16 %v6190, %v6186
    %v6403 = vpack.c.b16 %v6191, %v6187
    %v6404 = vpack.c.b16 %v6196, %v6192
    %v6405 = vpack.c.b16 %v6197, %v6193
    %v6406 = vpack.c.b16 %v6198, %v6194
    %v6407 = vpack.c.b16 %v6199, %v6195
    %v6408 = vpack.c.b16 %v6204, %v6200
    %v6409 = vpack.c.b16 %v6205, %v6201
    %v6410 = vpack.c.b16 %v6206, %v6202
    %v6411 = vpack.c.b16 %v6207, %v6203
    %v6412 = vpack.c.b16 %v6212, %v6208
    %v6413 = vpack.c.b16 %v6213, %v6209
    %v6414 = vpack.c.b16 %v6214, %v6210
    %v6415 = vpack.c.b16 %v6215, %v6211
    %v6416 = vpack.c.b16 %v6220, %v6216
    %v6417 = vpack.c.b16 %v6221, %v6217
    %v6418 = vpack.c.b16 %v6222, %v6218
    %v6419 = vpack.c.b16 %v6223, %v6219
    %v6420 = vpack.c.b16 %v6228, %v6224
    %v6421 = vpack.c.b16 %v6229, %v6225
    %v6422 = vpack.c.b16 %v6230, %v6226
    %v6423 = vpack.c.b16 %v6231, %v6227
    %v6424 = vpack.c.b16 %v6236, %v6232
    %v6425 = vpack.c.b16 %v6237, %v6233
    %v6426 = vpack.c.b16 %v6238, %v6234
    %v6427 = vpack.c.b16 %v6239, %v6235
    %v6428 = vpack.c.b16 %v6244, %v6240
    %v6429 = vpack.c.b16 %v6245, %v6241
    %v6430 = vpack.c.b16 %v6246, %v6242
    %v6431 = vpack.c.b16 %v6247, %v6243
    %v6432 = vpack.c.b16 %v6252, %v6248
    %v6433 = vpack.c.b16 %v6253, %v6249
    %v6434 = vpack.c.b16 %v6254, %v6250
    %v6435 = vpack.c.b16 %v6255, %v6251
    %v6436 = vpack.c.b16 %v6260, %v6256
    %v6437 = vpack.c.b16 %v6261, %v6257
    %v6438 = vpack.c.b16 %v6262, %v6258
    %v6439 = vpack.c.b16 %v6263, %v6259
    %v6440 = vpack.c.b16 %v6268, %v6264
    %v6441 = vpack.c.b16 %v6269, %v6265
    %v6442 = vpack.c.b16 %v6270, %v6266
    %v6443 = vpack.c.b16 %v6271, %v6267
    %v6444 = vpack.c.b16 %v6276, %v6272
    %v6445 = vpack.c.b16 %v6277, %v6273
    %v6446 = vpack.c.b16 %v6278, %v6274
    %v6447 = vpack.c.b16 %v6279, %v6275
    %v6448 = vpack.c.b16 %v6284, %v6280
    %v6449 = vpack.c.b16 %v6285, %v6281
    %v6450 = vpack.c.b16 %v6286, %v6282
    %v6451 = vpack.c.b16 %v6287, %v6283
    %v6452 = vpack.c.b16 %v6292, %v6288
    %v6453 = vpack.c.b16 %v6293, %v6289
    %v6454 = vpack.c.b16 %v6294, %v6290
    %v6455 = vpack.c.b16 %v6295, %v6291
    %v6456 = vpack.c.b16 %v6300, %v6296
    %v6457 = vpack.c.b16 %v6301, %v6297
    %v6458 = vpack.c.b16 %v6302, %v6298
    %v6459 = vpack.c.b16 %v6303, %v6299
    %v6460 = vpack.c.b16 %v6308, %v6304
    %v6461 = vpack.c.b16 %v6309, %v6305
    %v6462 = vpack.c.b16 %v6310, %v6306
    %v6463 = vpack.c.b16 %v6311, %v6307
    %v6464 = vpack.c.b16 %v6316, %v6312
    %v6465 = vpack.c.b16 %v6317, %v6313
    %v6466 = vpack.c.b16 %v6318, %v6314
    %v6467 = vpack.c.b16 %v6319, %v6315
    %v6468 = vpack.c.b16 %v6324, %v6320
    %v6469 = vpack.c.b16 %v6325, %v6321
    %v6470 = vpack.c.b16 %v6326, %v6322
    %v6471 = vpack.c.b16 %v6327, %v6323
    %v6472 = vpack.c.b16 %v6332, %v6328
    %v6473 = vpack.c.b16 %v6333, %v6329
    %v6474 = vpack.c.b16 %v6334, %v6330
    %v6475 = vpack.c.b16 %v6335, %v6331
    %v6476 = vpack.c.b16 %v6340, %v6336
    %v6477 = vpack.c.b16 %v6341, %v6337
    %v6478 = vpack.c.b16 %v6342, %v6338
    %v6479 = vpack.c.b16 %v6343, %v6339
    %v6480 = vpack.c.b16 %v6348, %v6344
    %v6481 = vpack.c.b16 %v6349, %v6345
    %v6482 = vpack.c.b16 %v6350, %v6346
    %v6483 = vpack.c.b16 %v6351, %v6347
    %v6484 = vpack.c.b16 %v6356, %v6352
    %v6485 = vpack.c.b16 %v6357, %v6353
    %v6486 = vpack.c.b16 %v6358, %v6354
    %v6487 = vpack.c.b16 %v6359, %v6355
    %6616 = vmatpush.bf16.msra.mxu0 %v6388
    %6617 = vmatpush.bf16.msra.mxu0 %v6384
    %6618 = vmatpush.bf16.msra.mxu0 %v6380
    %6619 = vmatpush.bf16.msra.mxu0 %v6376
    %6620 = vmatpush.bf16.msra.mxu0 %v6372
    %6621 = vmatpush.bf16.msra.mxu0 %v6368
    %6622 = vmatpush.bf16.msra.mxu0 %v6364
    %6623 = vmatpush.bf16.msra.mxu0 %v6360
    %6624 = vmatmul.bf16.gmra.mxu0 %v5834
    %v6625 = vpop.f32.mrf.mxu0
    %v6626 = vadd.f32 %v5968, %v6625
    %v6627 = vpop.f32.mrf.mxu0
    %6628 = vdwg.mxu0
    %6629 = vmatpush.bf16.msra.mxu0 %v6420
    %6630 = vmatpush.bf16.msra.mxu0 %v6416
    %6631 = vmatpush.bf16.msra.mxu0 %v6412
    %6632 = vmatpush.bf16.msra.mxu0 %v6408
    %6633 = vmatpush.bf16.msra.mxu0 %v6404
    %6634 = vmatpush.bf16.msra.mxu0 %v6400
    %6635 = vmatpush.bf16.msra.mxu0 %v6396
    %6636 = vmatpush.bf16.msra.mxu0 %v6392
    %6637 = vmatmul.bf16.gmra.mxu0 %v5835
    %v6638 = vpop.f32.mrf.mxu0
    %v6639 = vadd.f32 %v6626, %v6638
    %v6640 = vpop.f32.mrf.mxu0
    %6641 = vdwg.mxu0
    %6642 = vmatpush.bf16.msra.mxu0 %v6452
    %6643 = vmatpush.bf16.msra.mxu0 %v6448
    %6644 = vmatpush.bf16.msra.mxu0 %v6444
    %6645 = vmatpush.bf16.msra.mxu0 %v6440
    %6646 = vmatpush.bf16.msra.mxu0 %v6436
    %6647 = vmatpush.bf16.msra.mxu0 %v6432
    %6648 = vmatpush.bf16.msra.mxu0 %v6428
    %6649 = vmatpush.bf16.msra.mxu0 %v6424
    %6650 = vmatmul.bf16.gmra.mxu0 %v5836
    %v6651 = vpop.f32.mrf.mxu0
    %v6652 = vadd.f32 %v6639, %v6651
    %v6653 = vpop.f32.mrf.mxu0
    %6654 = vdwg.mxu0
    %6655 = vmatpush.bf16.msra.mxu0 %v6484
    %6656 = vmatpush.bf16.msra.mxu0 %v6480
    %6657 = vmatpush.bf16.msra.mxu0 %v6476
    %6658 = vmatpush.bf16.msra.mxu0 %v6472
    %6659 = vmatpush.bf16.msra.mxu0 %v6468
    %6660 = vmatpush.bf16.msra.mxu0 %v6464
    %6661 = vmatpush.bf16.msra.mxu0 %v6460
    %6662 = vmatpush.bf16.msra.mxu0 %v6456
    %6663 = vmatmul.bf16.gmra.mxu0 %v5837
    %v6664 = vpop.f32.mrf.mxu0
    %v6665 = vadd.f32 %v6652, %v6664
    %v6666 = vpop.f32.mrf.mxu0
    %6667 = vdwg.mxu0
    %6668 = vmatpush.bf16.msra.mxu0 %v6389
    %6669 = vmatpush.bf16.msra.mxu0 %v6385
    %6670 = vmatpush.bf16.msra.mxu0 %v6381
    %6671 = vmatpush.bf16.msra.mxu0 %v6377
    %6672 = vmatpush.bf16.msra.mxu0 %v6373
    %6673 = vmatpush.bf16.msra.mxu0 %v6369
    %6674 = vmatpush.bf16.msra.mxu0 %v6365
    %6675 = vmatpush.bf16.msra.mxu0 %v6361
    %6676 = vmatmul.bf16.gmra.mxu0 %v5834
    %v6677 = vpop.f32.mrf.mxu0
    %v6678 = vadd.f32 %v5969, %v6677
    %v6679 = vpop.f32.mrf.mxu0
    %6680 = vdwg.mxu0
    %6681 = vmatpush.bf16.msra.mxu0 %v6421
    %6682 = vmatpush.bf16.msra.mxu0 %v6417
    %6683 = vmatpush.bf16.msra.mxu0 %v6413
    %6684 = vmatpush.bf16.msra.mxu0 %v6409
    %6685 = vmatpush.bf16.msra.mxu0 %v6405
    %6686 = vmatpush.bf16.msra.mxu0 %v6401
    %6687 = vmatpush.bf16.msra.mxu0 %v6397
    %6688 = vmatpush.bf16.msra.mxu0 %v6393
    %6689 = vmatmul.bf16.gmra.mxu0 %v5835
    %v6690 = vpop.f32.mrf.mxu0
    %v6691 = vadd.f32 %v6678, %v6690
    %v6692 = vpop.f32.mrf.mxu0
    %6693 = vdwg.mxu0
    %6694 = vmatpush.bf16.msra.mxu0 %v6453
    %6695 = vmatpush.bf16.msra.mxu0 %v6449
    %6696 = vmatpush.bf16.msra.mxu0 %v6445
    %6697 = vmatpush.bf16.msra.mxu0 %v6441
    %6698 = vmatpush.bf16.msra.mxu0 %v6437
    %6699 = vmatpush.bf16.msra.mxu0 %v6433
    %6700 = vmatpush.bf16.msra.mxu0 %v6429
    %6701 = vmatpush.bf16.msra.mxu0 %v6425
    %6702 = vmatmul.bf16.gmra.mxu0 %v5836
    %v6703 = vpop.f32.mrf.mxu0
    %v6704 = vadd.f32 %v6691, %v6703
    %v6705 = vpop.f32.mrf.mxu0
    %6706 = vdwg.mxu0
    %6707 = vmatpush.bf16.msra.mxu0 %v6485
    %6708 = vmatpush.bf16.msra.mxu0 %v6481
    %6709 = vmatpush.bf16.msra.mxu0 %v6477
    %6710 = vmatpush.bf16.msra.mxu0 %v6473
    %6711 = vmatpush.bf16.msra.mxu0 %v6469
    %6712 = vmatpush.bf16.msra.mxu0 %v6465
    %6713 = vmatpush.bf16.msra.mxu0 %v6461
    %6714 = vmatpush.bf16.msra.mxu0 %v6457
    %6715 = vmatmul.bf16.gmra.mxu0 %v5837
    %v6716 = vpop.f32.mrf.mxu0
    %v6717 = vadd.f32 %v6704, %v6716
    %v6718 = vpop.f32.mrf.mxu0
    %6719 = vdwg.mxu0
    %6720 = vmatpush.bf16.msra.mxu0 %v6390
    %6721 = vmatpush.bf16.msra.mxu0 %v6386
    %6722 = vmatpush.bf16.msra.mxu0 %v6382
    %6723 = vmatpush.bf16.msra.mxu0 %v6378
    %6724 = vmatpush.bf16.msra.mxu0 %v6374
    %6725 = vmatpush.bf16.msra.mxu0 %v6370
    %6726 = vmatpush.bf16.msra.mxu0 %v6366
    %6727 = vmatpush.bf16.msra.mxu0 %v6362
    %6728 = vmatmul.bf16.gmra.mxu0 %v5834
    %v6729 = vpop.f32.mrf.mxu0
    %v6730 = vadd.f32 %v5970, %v6729
    %v6731 = vpop.f32.mrf.mxu0
    %6732 = vdwg.mxu0
    %6733 = vmatpush.bf16.msra.mxu0 %v6422
    %6734 = vmatpush.bf16.msra.mxu0 %v6418
    %6735 = vmatpush.bf16.msra.mxu0 %v6414
    %6736 = vmatpush.bf16.msra.mxu0 %v6410
    %6737 = vmatpush.bf16.msra.mxu0 %v6406
    %6738 = vmatpush.bf16.msra.mxu0 %v6402
    %6739 = vmatpush.bf16.msra.mxu0 %v6398
    %6740 = vmatpush.bf16.msra.mxu0 %v6394
    %6741 = vmatmul.bf16.gmra.mxu0 %v5835
    %v6742 = vpop.f32.mrf.mxu0
    %v6743 = vadd.f32 %v6730, %v6742
    %v6744 = vpop.f32.mrf.mxu0
    %6745 = vdwg.mxu0
    %6746 = vmatpush.bf16.msra.mxu0 %v6454
    %6747 = vmatpush.bf16.msra.mxu0 %v6450
    %6748 = vmatpush.bf16.msra.mxu0 %v6446
    %6749 = vmatpush.bf16.msra.mxu0 %v6442
    %6750 = vmatpush.bf16.msra.mxu0 %v6438
    %6751 = vmatpush.bf16.msra.mxu0 %v6434
    %6752 = vmatpush.bf16.msra.mxu0 %v6430
    %6753 = vmatpush.bf16.msra.mxu0 %v6426
    %6754 = vmatmul.bf16.gmra.mxu0 %v5836
    %v6755 = vpop.f32.mrf.mxu0
    %v6756 = vadd.f32 %v6743, %v6755
    %v6757 = vpop.f32.mrf.mxu0
    %6758 = vdwg.mxu0
    %6759 = vmatpush.bf16.msra.mxu0 %v6486
    %6760 = vmatpush.bf16.msra.mxu0 %v6482
    %6761 = vmatpush.bf16.msra.mxu0 %v6478
    %6762 = vmatpush.bf16.msra.mxu0 %v6474
    %6763 = vmatpush.bf16.msra.mxu0 %v6470
    %6764 = vmatpush.bf16.msra.mxu0 %v6466
    %6765 = vmatpush.bf16.msra.mxu0 %v6462
    %6766 = vmatpush.bf16.msra.mxu0 %v6458
    %6767 = vmatmul.bf16.gmra.mxu0 %v5837
    %v6768 = vpop.f32.mrf.mxu0
    %v6769 = vadd.f32 %v6756, %v6768
    %v6770 = vpop.f32.mrf.mxu0
    %6771 = vdwg.mxu0
    %6772 = vmatpush.bf16.msra.mxu0 %v6391
    %6773 = vmatpush.bf16.msra.mxu0 %v6387
    %6774 = vmatpush.bf16.msra.mxu0 %v6383
    %6775 = vmatpush.bf16.msra.mxu0 %v6379
    %6776 = vmatpush.bf16.msra.mxu0 %v6375
    %6777 = vmatpush.bf16.msra.mxu0 %v6371
    %6778 = vmatpush.bf16.msra.mxu0 %v6367
    %6779 = vmatpush.bf16.msra.mxu0 %v6363
    %6780 = vmatmul.bf16.gmra.mxu0 %v5834
    %v6781 = vpop.f32.mrf.mxu0
    %v6782 = vadd.f32 %v5971, %v6781
    %v6783 = vpop.f32.mrf.mxu0
    %6784 = vdwg.mxu0
    %6785 = vmatpush.bf16.msra.mxu0 %v6423
    %6786 = vmatpush.bf16.msra.mxu0 %v6419
    %6787 = vmatpush.bf16.msra.mxu0 %v6415
    %6788 = vmatpush.bf16.msra.mxu0 %v6411
    %6789 = vmatpush.bf16.msra.mxu0 %v6407
    %6790 = vmatpush.bf16.msra.mxu0 %v6403
    %6791 = vmatpush.bf16.msra.mxu0 %v6399
    %6792 = vmatpush.bf16.msra.mxu0 %v6395
    %6793 = vmatmul.bf16.gmra.mxu0 %v5835
    %v6794 = vpop.f32.mrf.mxu0
    %v6795 = vadd.f32 %v6782, %v6794
    %v6796 = vpop.f32.mrf.mxu0
    %6797 = vdwg.mxu0
    %6798 = vmatpush.bf16.msra.mxu0 %v6455
    %6799 = vmatpush.bf16.msra.mxu0 %v6451
    %6800 = vmatpush.bf16.msra.mxu0 %v6447
    %6801 = vmatpush.bf16.msra.mxu0 %v6443
    %6802 = vmatpush.bf16.msra.mxu0 %v6439
    %6803 = vmatpush.bf16.msra.mxu0 %v6435
    %6804 = vmatpush.bf16.msra.mxu0 %v6431
    %6805 = vmatpush.bf16.msra.mxu0 %v6427
    %6806 = vmatmul.bf16.gmra.mxu0 %v5836
    %v6807 = vpop.f32.mrf.mxu0
    %v6808 = vadd.f32 %v6795, %v6807
    %v6809 = vpop.f32.mrf.mxu0
    %6810 = vdwg.mxu0
    %6811 = vmatpush.bf16.msra.mxu0 %v6487
    %6812 = vmatpush.bf16.msra.mxu0 %v6483
    %6813 = vmatpush.bf16.msra.mxu0 %v6479
    %6814 = vmatpush.bf16.msra.mxu0 %v6475
    %6815 = vmatpush.bf16.msra.mxu0 %v6471
    %6816 = vmatpush.bf16.msra.mxu0 %v6467
    %6817 = vmatpush.bf16.msra.mxu0 %v6463
    %6818 = vmatpush.bf16.msra.mxu0 %v6459
    %6819 = vmatmul.bf16.gmra.mxu0 %v5837
    %v6820 = vpop.f32.mrf.mxu0
    %v6821 = vadd.f32 %v6808, %v6820
    %v6822 = vpop.f32.mrf.mxu0
    %6823 = vdwg.mxu0
    %v6824 = vadd.f32 %v4681, %v6665
    %v6825 = vadd.f32 %v4733, %v6717
    %v6826 = vadd.f32 %v4785, %v6769
    %v6827 = vadd.f32 %v4837, %v6821
    %vm6828 = vcmask 1041408
    %v6829 = vsel %vm6828, %v6824, 0.0
    %v6830 = vsel %vm6828, %v6825, 0.0
    %v6831 = vadd.f32 %v6829, %v6830
    %v6832 = vsel %vm6828, %v6826, 0.0
    %v6833 = vadd.f32 %v6831, %v6832
    %v6834 = vsel %vm6828, %v6827, 0.0
    %v6835 = vadd.f32 %v6833, %v6834
    %6836 = vadd.xlane.f32.xlu0 %v6835
    %v6837 = vpop.xlane.xlu0 %6836
    %v6838 = vrcp.pop 512.0
    %v6839 = vmul.f32 512.0, %v6838
    %v6840 = vsub.f32 1.0, %v6839
    %v6841 = vmul.f32 %v6838, %v6840
    %v6842 = vadd.f32 %v6838, %v6841
    %vm6843 = vweird.f32 %v6838
    %v6844 = vsel %vm6843, %v6838, %v6842
    %v6845 = vmul.f32 %v6837, %v6844
    %v6846 = vsub.f32 %v6824, %v6845
    %v6847 = vsub.f32 %v6825, %v6845
    %v6848 = vsub.f32 %v6826, %v6845
    %v6849 = vsub.f32 %v6827, %v6845
    %v6850 = vmul.f32 %v6846, %v6846
    %v6851 = vmul.f32 %v6847, %v6847
    %v6852 = vmul.f32 %v6848, %v6848
    %v6853 = vmul.f32 %v6849, %v6849
    %v6854 = vsel %vm6828, %v6850, 0.0
    %v6855 = vsel %vm6828, %v6851, 0.0
    %v6856 = vadd.f32 %v6854, %v6855
    %v6857 = vsel %vm6828, %v6852, 0.0
    %v6858 = vadd.f32 %v6856, %v6857
    %v6859 = vsel %vm6828, %v6853, 0.0
    %v6860 = vadd.f32 %v6858, %v6859
    %6861 = vadd.xlane.f32.xlu0 %v6860
    %v6862 = vpop.xlane.xlu0 %6861
    %v6863 = vmul.f32 %v6862, %v6844
    %v6864 = vadd.f32 %v6863, 1e-05
    %v6865 = vrsqrt.pop %v6864
    %v6866 = vmul.f32 %v6865, %v6864
    %v6867 = vmul.f32 %v6866, %v6865
    %v6868 = vmul.f32 0.5, %v6867
    %v6869 = vsub.f32 1.5, %v6868
    %v6870 = vmul.f32 %v6865, %v6869
    %vm6871 = vweird.f32 %v6864
    %vm6872 = vweird.f32 %v6865
    %vm6873 = vmor %vm6871, %vm6872
    %v6874 = vsel %vm6873, %v6865, %v6870
    %v6875 = vmul.f32 %v6846, %v6874
    %v6876 = vmul.f32 %v6847, %v6874
    %v6877 = vmul.f32 %v6848, %v6874
    %v6878 = vmul.f32 %v6849, %v6874
    %v6879 = vld [vmem:[#allocation8 + $0x18] sm:$0xf]
    %v6881 = vperm.slane %v6879, 0
    %v6882 = vperm.slane %v6879, 1
    %v6883 = vperm.slane %v6879, 2
    %v6884 = vperm.slane %v6879, 3
    %v6889 = vmul.f32 %v6875, %v6881
    %v6890 = vmul.f32 %v6876, %v6882
    %v6891 = vmul.f32 %v6877, %v6883
    %v6892 = vmul.f32 %v6878, %v6884
    %v6893 = vld [vmem:[#allocation8 + $0x1c] sm:$0xf]
    %v6895 = vperm.slane %v6893, 0
    %v6896 = vperm.slane %v6893, 1
    %v6897 = vperm.slane %v6893, 2
    %v6898 = vperm.slane %v6893, 3
    %v6903 = vadd.f32 %v6889, %v6895
    %v6904 = vadd.f32 %v6890, %v6896
    %v6905 = vadd.f32 %v6891, %v6897
    %v6906 = vadd.f32 %v6892, %v6898
    %v6911 = vrot.slane %v6904, 6
    %v6912 = vrot.slane %v6905, 4
    %v6913 = vrot.slane %v6906, 2
    %v6914 = vsel %vm6828, %v6903, %v6911
    %vm6915 = vcmask 1045508
    %v6916 = vsel %vm6915, %v6912, %v6913
    %vm6917 = vcmask 1043456
    %v6918 = vsel %vm6917, %v6914, %v6916
    %6920 = vst [vmem:[#allocation10] sm:$0xff] %v6918
    // Predicated region
    $region34: #{tpu_custom_call.1} parent=1 // pred_check
      _
    $region35: #{tpu_custom_call.1} parent=1 // pred_check_branch
      %6922 = sbr.rel (0) target = $region37
    $region36: #{tpu_custom_call.1} parent=1 // pred_region
      %6924 = vsyncadd [#allocation4], 0
      %s6926 = sshll.u32 [#allocation10], 4
      %s6927 = int_to_ptr.vmem [resolvable:$true] %s6926
      %s6928 = sshll.u32 %s4, 4
      %s6929 = int_to_ptr.hbm [resolvable:$true] %s6928
      %6931 = dma.vmem_to_hbm [thread:$0]  %s6927, 128, %s6929, [#allocation4]
    $region37: #{tpu_custom_call.1} parent=1 // pred_fallthru
      _
    // Predicated region
    $region38: #{tpu_custom_call.1} parent=1 // pred_check
      _
    $region39: #{tpu_custom_call.1} parent=1 // pred_check_branch
      %6933 = sbr.rel (0) target = $region41
    $region40: #{tpu_custom_call.1} parent=1 // pred_region
      %6935 = vsyncadd [#allocation12], 0
      %s6937 = sshll.u32 [#allocation11], 4
      %s6938 = int_to_ptr.vmem [resolvable:$true] %s6937
      %s6939 = sshll.u32 %s5, 4
      %s6940 = int_to_ptr.hbm [resolvable:$true] %s6939
      %6942 = dma.vmem_to_hbm [thread:$0]  %s6938, 32, %s6940, [#allocation12]
    $region41: #{tpu_custom_call.1} parent=1 // pred_fallthru
      _
    // Predicated region
    $region42: #{tpu_custom_call.1} parent=1 // pred_check
      _
    $region43: #{tpu_custom_call.1} parent=1 // pred_check_branch
      %6944 = sbr.rel (0) target = $region45
    $region44: #{tpu_custom_call.1} parent=1 // pred_region
      %6946 = dma.done [#allocation4], 128
    $region45: #{tpu_custom_call.1} parent=1 // pred_fallthru
      _
    // Predicated region
    $region46: #{tpu_custom_call.1} parent=1 // pred_check
      _
    $region47: #{tpu_custom_call.1} parent=1 // pred_check_branch
      %6948 = sbr.rel (0) target = $region49
    $region48: #{tpu_custom_call.1} parent=1 // pred_region
      %6950 = dma.done [#allocation12], 32
    $region49: #{tpu_custom_call.1} parent=1 // pred_fallthru
      _
    %6951 = vsyncpa [#allocation3], 1
    %6952 = vsyncpa [#allocation6], 1
    %6953 = vsyncpa [#allocation9], 1
    %6954 = vsyncpa [#allocation4], 1
    %6955 = vsyncpa [#allocation12], 1

</llo_original>
